<compile_context>
chip_gen: v5e
topology: v5e:2x2
jax: 0.10.0
libtpu: 0.0.40
codegen_flags: <defaults>
</compile_context>

<pallas_src>
import numpy as np
import jax
import jax.numpy as jnp
from jax.experimental import pallas as pl
from jax.experimental.pallas import tpu as pltpu

HIDDEN = 400        # logical hidden width of the PyTorch model
HIDDEN_PAD = 512    # lane/MXU aligned padded hidden width (4 x 128, 2 x 256)
OUT_PAD = 128       # lane-dense padded output width (real output sliced outside)


def _round_up(x, m):
    return (x + m - 1) // m * m


def actor_kernel(state_ref, w1_ref, b1_ref, w2_ref, b2_ref, w3_ref, b3_ref,
                 out_ref):
    # fc1 + relu  (bf16 MXU inputs, f32 accumulation)
    x = state_ref[...].astype(jnp.bfloat16)
    h1 = jnp.dot(x, w1_ref[...], preferred_element_type=jnp.float32) + b1_ref[...]
    h1 = jnp.maximum(h1, 0.0).astype(jnp.bfloat16)

    # fc2 + relu
    h2 = jnp.dot(h1, w2_ref[...], preferred_element_type=jnp.float32) + b2_ref[...]
    h2 = jnp.maximum(h2, 0.0).astype(jnp.bfloat16)

    # fc3 + tanh (output padded to 128 lanes -> dense unmasked store)
    z = jnp.dot(h2, w3_ref[...], preferred_element_type=jnp.float32) + b3_ref[...]
    out_ref[...] = jnp.tanh(z)


def init_actor_params(key, input_size, output_size):
    """Re-implementation of actor.init_weights().

    PyTorch: fc1.weight (400, in), fc2.weight (400, 400), fc3.weight (out, 400).
    fanin_init draws normal(0, 1/sqrt(size[0])) with size[0] == 400 for fc1/fc2
    (as written in the reference code); fc3.weight ~ N(0, 0.003).  Biases keep
    nn.Linear's default uniform(-1/sqrt(fan_in), 1/sqrt(fan_in)).

    Weights are stored transposed (in, out), zero-padded to lane-aligned sizes
    (input padded to a multiple of 128, hidden to 512, output to 128) and cast
    to bf16; biases stay f32.  Zero padding is inert through dot/ReLU/tanh.
    """
    ks = jax.random.split(key, 6)
    std12 = 1.0 / np.sqrt(HIDDEN)   # fanin_init: size[0] == out_features == 400
    std3 = 0.003

    w1 = jax.random.normal(ks[0], (input_size, HIDDEN), jnp.float32) * std12
    b1 = jax.random.uniform(ks[1], (1, HIDDEN), jnp.float32,
                            -1.0 / np.sqrt(input_size), 1.0 / np.sqrt(input_size))
    w2 = jax.random.normal(ks[2], (HIDDEN, HIDDEN), jnp.float32) * std12
    b2 = jax.random.uniform(ks[3], (1, HIDDEN), jnp.float32,
                            -1.0 / np.sqrt(HIDDEN), 1.0 / np.sqrt(HIDDEN))
    w3 = jax.random.normal(ks[4], (HIDDEN, output_size), jnp.float32) * std3
    b3 = jax.random.uniform(ks[5], (1, output_size), jnp.float32,
                            -1.0 / np.sqrt(HIDDEN), 1.0 / np.sqrt(HIDDEN))

    in_pad = _round_up(input_size, 128)     # lane-aligned input feature dim
    HP, OP = HIDDEN_PAD, OUT_PAD

    w1p = jnp.zeros((in_pad, HP), jnp.bfloat16).at[:input_size, :HIDDEN].set(
        w1.astype(jnp.bfloat16))
    b1p = jnp.zeros((1, HP), jnp.float32).at[:, :HIDDEN].set(b1)
    w2p = jnp.zeros((HP, HP), jnp.bfloat16).at[:HIDDEN, :HIDDEN].set(
        w2.astype(jnp.bfloat16))
    b2p = jnp.zeros((1, HP), jnp.float32).at[:, :HIDDEN].set(b2)
    w3p = jnp.zeros((HP, OP), jnp.bfloat16).at[:HIDDEN, :output_size].set(
        w3.astype(jnp.bfloat16))
    b3p = jnp.zeros((1, OP), jnp.float32).at[:, :output_size].set(b3)

    return dict(w1=w1p, b1=b1p, w2=w2p, b2=b2p, w3=w3p, b3=b3p,
                out_size=output_size)


def actor_forward(state, params, *, block_b=1024):
    """Pallas forward pass. state: (B, input_size) f32 -> (B, output_size) f32."""
    B, S = state.shape
    out_size = params["out_size"]
    HP, OP = HIDDEN_PAD, OUT_PAD
    S_pad = params["w1"].shape[0]           # lane-aligned input width
    assert S <= S_pad

    # --- padding-aware batch tiling -------------------------------------
    # Derive the number of grid steps first, then the tile, so B slightly
    # above a tile boundary doesn't double the padded work.
    grid_n = max(1, pl.cdiv(B, block_b))
    # Ensure >= 2 grid steps when the batch is big enough so the "parallel"
    # batch axis shards across both TensorCores on v7x.
    if grid_n == 1 and B > 8:
        grid_n = 2
    tb = _round_up(pl.cdiv(B, grid_n), 8)
    Bp = grid_n * tb

    if Bp != B or S_pad != S:
        state = jnp.pad(state, ((0, Bp - B), (0, S_pad - S)))

    flops = 2 * Bp * (S_pad * HP + HP * HP + HP * OP)
    bytes_accessed = (Bp * S_pad * 4                          # state (f32)
                      + (S_pad * HP + HP * HP + HP * OP) * 2  # bf16 weights
                      + (2 * HP + OP) * 4                     # biases
                      + Bp * OP * 4)                          # output (f32)

    def run(single_buffer_weights):
        def resident(shape):
            # Constant index map -> block stays VMEM-resident; single-buffer it
            # when supported (the default double buffer is wasted VMEM).
            if single_buffer_weights:
                return pl.BlockSpec(shape, lambda i: (0, 0),
                                    pipeline_mode=pl.Buffered(1))
            return pl.BlockSpec(shape, lambda i: (0, 0))

        return pl.pallas_call(
            actor_kernel,
            out_shape=jax.ShapeDtypeStruct((Bp, OP), jnp.float32),
            grid_spec=pltpu.PrefetchScalarGridSpec(
                num_scalar_prefetch=0,
                grid=(grid_n,),
                in_specs=[
                    pl.BlockSpec((tb, S_pad), lambda i: (i, 0)),  # state (batch-tiled)
                    resident((S_pad, HP)),                        # w1
                    resident((1, HP)),                            # b1
                    resident((HP, HP)),                           # w2
                    resident((1, HP)),                            # b2
                    resident((HP, OP)),                           # w3
                    resident((1, OP)),                            # b3
                ],
                out_specs=pl.BlockSpec((tb, OP), lambda i: (i, 0)),
            ),
            compiler_params=pltpu.CompilerParams(
                dimension_semantics=("parallel",),
                vmem_limit_bytes=32 * 1024 * 1024),
            cost_estimate=pl.CostEstimate(
                flops=flops, transcendentals=Bp * OP,
                bytes_accessed=bytes_accessed),
        )(state, params["w1"], params["b1"], params["w2"], params["b2"],
          params["w3"], params["b3"])

    if hasattr(pl, "Buffered"):
        try:
            out = run(True)
        except Exception:
            # Buffered(1) not accepted by this jax/Mosaic version -> default
            # double-buffering (correctness identical, slightly more VMEM).
            out = run(False)
    else:
        out = run(False)

    return out[:B, :out_size]


def actor_forward_ref(state, params):
    """Pure-JAX reference with the same bf16-input / f32-accumulate numerics."""
    out_size = params["out_size"]
    S_pad = params["w1"].shape[0]
    x = jnp.pad(state, ((0, 0), (0, S_pad - state.shape[1]))).astype(jnp.bfloat16)
    h1 = jnp.maximum(
        jnp.dot(x, params["w1"], preferred_element_type=jnp.float32)
        + params["b1"], 0.0).astype(jnp.bfloat16)
    h2 = jnp.maximum(
        jnp.dot(h1, params["w2"], preferred_element_type=jnp.float32)
        + params["b2"], 0.0).astype(jnp.bfloat16)
    z = jnp.dot(h2, params["w3"], preferred_element_type=jnp.float32) + params["b3"]
    return jnp.tanh(z)[:, :out_size]


if __name__ == "__main__":
    input_size, output_size = 32, 4
    batch = 16

    key = jax.random.PRNGKey(0)
    k_params, k_state = jax.random.split(key)

    params = init_actor_params(k_params, input_size, output_size)
    state = jax.random.normal(k_state, (batch, input_size), jnp.float32)

    action = actor_forward(state, params)
    action = jax.block_until_ready(action)

    action_ref = actor_forward_ref(state, params)
    np.testing.assert_allclose(np.asarray(action), np.asarray(action_ref),
                               rtol=2e-3, atol=2e-3)
    assert action.shape == (batch, output_size)
    assert bool(jnp.all(jnp.abs(action) <= 1.0))  # tanh range

    print("KERNEL_OK")
</pallas_src>

<mosaic_0001>
module attributes {stable_mosaic.version = 11 : i64} {
  func.func @actor_kernel(%arg0: i32, %arg1: memref<8x128xf32, #tpu.memory_space<vmem>>, %arg2: memref<128x512xbf16, #tpu.memory_space<vmem>>, %arg3: memref<1x512xf32, #tpu.memory_space<vmem>>, %arg4: memref<512x512xbf16, #tpu.memory_space<vmem>>, %arg5: memref<1x512xf32, #tpu.memory_space<vmem>>, %arg6: memref<512x128xbf16, #tpu.memory_space<vmem>>, %arg7: memref<1x128xf32, #tpu.memory_space<vmem>>, %arg8: memref<8x128xf32, #tpu.memory_space<vmem>>) attributes {dimension_semantics = [#tpu.dimension_semantics<parallel>], iteration_bounds = array<i64: 2>, scalar_prefetch = 0 : i64, scratch_operands = 0 : i64, tpu.core_type = #tpu.core_type<tc>, window_params = [{transform_indices = @transform_0, window_bounds = array<i64: 8, 128>}, {pipeline_mode = #tpu.pipeline_mode<synchronous>, transform_indices = @transform_1, window_bounds = array<i64: 128, 512>}, {pipeline_mode = #tpu.pipeline_mode<synchronous>, transform_indices = @transform_2, window_bounds = array<i64: 1, 512>}, {pipeline_mode = #tpu.pipeline_mode<synchronous>, transform_indices = @transform_3, window_bounds = array<i64: 512, 512>}, {pipeline_mode = #tpu.pipeline_mode<synchronous>, transform_indices = @transform_4, window_bounds = array<i64: 1, 512>}, {pipeline_mode = #tpu.pipeline_mode<synchronous>, transform_indices = @transform_5, window_bounds = array<i64: 512, 128>}, {pipeline_mode = #tpu.pipeline_mode<synchronous>, transform_indices = @transform_6, window_bounds = array<i64: 1, 128>}, {transform_indices = @transform_7, window_bounds = array<i64: 8, 128>}]} {
    %c0 = arith.constant 0 : index
    %c0_0 = arith.constant 0 : index
    %0 = vector.load %arg1[%c0, %c0_0] : memref<8x128xf32, #tpu.memory_space<vmem>>, vector<8x128xf32>
    %1 = arith.truncf %0 : vector<8x128xf32> to vector<8x128xbf16>
    %c0_1 = arith.constant 0 : index
    %c0_2 = arith.constant 0 : index
    %2 = vector.load %arg2[%c0_1, %c0_2] : memref<128x512xbf16, #tpu.memory_space<vmem>>, vector<128x512xbf16>
    %cst = arith.constant dense<0.000000e+00> : vector<8x512xf32>
    %3 = tpu.matmul %1, %2, %cst {dimension_numbers = #tpu.dot_dimension_numbers<[1], [0], [0], [1], [0, 0, 1, 1], [], []>} : vector<8x128xbf16>, vector<128x512xbf16>, vector<8x512xf32> -> vector<8x512xf32>
    %c0_3 = arith.constant 0 : index
    %c0_4 = arith.constant 0 : index
    %4 = vector.load %arg3[%c0_3, %c0_4] : memref<1x512xf32, #tpu.memory_space<vmem>>, vector<1x512xf32>
    %5 = vector.broadcast %4 : vector<1x512xf32> to vector<8x512xf32>
    %6 = arith.addf %3, %5 : vector<8x512xf32>
    %cst_5 = arith.constant 0.000000e+00 : f32
    %7 = vector.broadcast %cst_5 : f32 to vector<8x512xf32>
    %8 = arith.maximumf %6, %7 : vector<8x512xf32>
    %9 = arith.truncf %8 : vector<8x512xf32> to vector<8x512xbf16>
    %c0_6 = arith.constant 0 : index
    %c0_7 = arith.constant 0 : index
    %10 = vector.load %arg4[%c0_6, %c0_7] : memref<512x512xbf16, #tpu.memory_space<vmem>>, vector<512x512xbf16>
    %cst_8 = arith.constant dense<0.000000e+00> : vector<8x512xf32>
    %11 = tpu.matmul %9, %10, %cst_8 {dimension_numbers = #tpu.dot_dimension_numbers<[1], [0], [0], [1], [0, 0, 1, 1], [], []>} : vector<8x512xbf16>, vector<512x512xbf16>, vector<8x512xf32> -> vector<8x512xf32>
    %c0_9 = arith.constant 0 : index
    %c0_10 = arith.constant 0 : index
    %12 = vector.load %arg5[%c0_9, %c0_10] : memref<1x512xf32, #tpu.memory_space<vmem>>, vector<1x512xf32>
    %13 = vector.broadcast %12 : vector<1x512xf32> to vector<8x512xf32>
    %14 = arith.addf %11, %13 : vector<8x512xf32>
    %cst_11 = arith.constant 0.000000e+00 : f32
    %15 = vector.broadcast %cst_11 : f32 to vector<8x512xf32>
    %16 = arith.maximumf %14, %15 : vector<8x512xf32>
    %17 = arith.truncf %16 : vector<8x512xf32> to vector<8x512xbf16>
    %c0_12 = arith.constant 0 : index
    %c0_13 = arith.constant 0 : index
    %18 = vector.load %arg6[%c0_12, %c0_13] : memref<512x128xbf16, #tpu.memory_space<vmem>>, vector<512x128xbf16>
    %cst_14 = arith.constant dense<0.000000e+00> : vector<8x128xf32>
    %19 = tpu.matmul %17, %18, %cst_14 {dimension_numbers = #tpu.dot_dimension_numbers<[1], [0], [0], [1], [0, 0, 1, 1], [], []>} : vector<8x512xbf16>, vector<512x128xbf16>, vector<8x128xf32> -> vector<8x128xf32>
    %c0_15 = arith.constant 0 : index
    %c0_16 = arith.constant 0 : index
    %20 = vector.load %arg7[%c0_15, %c0_16] : memref<1x128xf32, #tpu.memory_space<vmem>>, vector<1x128xf32>
    %21 = vector.broadcast %20 : vector<1x128xf32> to vector<8x128xf32>
    %22 = arith.addf %19, %21 : vector<8x128xf32>
    %23 = math.tanh %22 : vector<8x128xf32>
    %c0_17 = arith.constant 0 : index
    %c0_18 = arith.constant 0 : index
    %24 = vector.load %arg8[%c0_17, %c0_18] : memref<8x128xf32, #tpu.memory_space<vmem>>, vector<8x128xf32>
    tpu.vector_store %arg8[%c0_17, %c0_18], %23 {strides = array<i32>} : memref<8x128xf32, #tpu.memory_space<vmem>>, vector<8x128xf32>,
    return
  }
  func.func @transform_0(%arg0: i32) -> (i32, i32) {
    %c0_i32 = arith.constant 0 : i32
    %c0_i32_0 = arith.constant 0 : i32
    return %arg0, %c0_i32 : i32, i32
  }
  func.func @transform_1(%arg0: i32) -> (i32, i32) {
    %c0_i32 = arith.constant 0 : i32
    %c0_i32_0 = arith.constant 0 : i32
    %c0_i32_1 = arith.constant 0 : i32
    return %c0_i32, %c0_i32_0 : i32, i32
  }
  func.func @transform_2(%arg0: i32) -> (i32, i32) {
    %c0_i32 = arith.constant 0 : i32
    %c0_i32_0 = arith.constant 0 : i32
    %c0_i32_1 = arith.constant 0 : i32
    return %c0_i32, %c0_i32_0 : i32, i32
  }
  func.func @transform_3(%arg0: i32) -> (i32, i32) {
    %c0_i32 = arith.constant 0 : i32
    %c0_i32_0 = arith.constant 0 : i32
    %c0_i32_1 = arith.constant 0 : i32
    return %c0_i32, %c0_i32_0 : i32, i32
  }
  func.func @transform_4(%arg0: i32) -> (i32, i32) {
    %c0_i32 = arith.constant 0 : i32
    %c0_i32_0 = arith.constant 0 : i32
    %c0_i32_1 = arith.constant 0 : i32
    return %c0_i32, %c0_i32_0 : i32, i32
  }
  func.func @transform_5(%arg0: i32) -> (i32, i32) {
    %c0_i32 = arith.constant 0 : i32
    %c0_i32_0 = arith.constant 0 : i32
    %c0_i32_1 = arith.constant 0 : i32
    return %c0_i32, %c0_i32_0 : i32, i32
  }
  func.func @transform_6(%arg0: i32) -> (i32, i32) {
    %c0_i32 = arith.constant 0 : i32
    %c0_i32_0 = arith.constant 0 : i32
    %c0_i32_1 = arith.constant 0 : i32
    return %c0_i32, %c0_i32_0 : i32, i32
  }
  func.func @transform_7(%arg0: i32) -> (i32, i32) {
    %c0_i32 = arith.constant 0 : i32
    %c0_i32_0 = arith.constant 0 : i32
    return %arg0, %c0_i32 : i32, i32
  }
}

module attributes {stable_mosaic.version = 11 : i64} {
  func.func @actor_kernel(%arg0: i32, %arg1: memref<8x128xf32, #tpu.memory_space<vmem>>, %arg2: memref<128x512xbf16, #tpu.memory_space<vmem>>, %arg3: memref<1x512xf32, #tpu.memory_space<vmem>>, %arg4: memref<512x512xbf16, #tpu.memory_space<vmem>>, %arg5: memref<1x512xf32, #tpu.memory_space<vmem>>, %arg6: memref<512x128xbf16, #tpu.memory_space<vmem>>, %arg7: memref<1x128xf32, #tpu.memory_space<vmem>>, %arg8: memref<8x128xf32, #tpu.memory_space<vmem>>) attributes {dimension_semantics = [#tpu.dimension_semantics<parallel>], iteration_bounds = array<i64: 2>, scalar_prefetch = 0 : i64, scratch_operands = 0 : i64, tpu.core_type = #tpu.core_type<tc>, window_params = [{transform_indices = @transform_0, window_bounds = array<i64: 8, 128>}, {pipeline_mode = #tpu.pipeline_mode<synchronous>, transform_indices = @transform_1, window_bounds = array<i64: 128, 512>}, {pipeline_mode = #tpu.pipeline_mode<synchronous>, transform_indices = @transform_2, window_bounds = array<i64: 1, 512>}, {pipeline_mode = #tpu.pipeline_mode<synchronous>, transform_indices = @transform_3, window_bounds = array<i64: 512, 512>}, {pipeline_mode = #tpu.pipeline_mode<synchronous>, transform_indices = @transform_4, window_bounds = array<i64: 1, 512>}, {pipeline_mode = #tpu.pipeline_mode<synchronous>, transform_indices = @transform_5, window_bounds = array<i64: 512, 128>}, {pipeline_mode = #tpu.pipeline_mode<synchronous>, transform_indices = @transform_6, window_bounds = array<i64: 1, 128>}, {transform_indices = @transform_7, window_bounds = array<i64: 8, 128>}]} {
    %c0 = arith.constant 0 : index
    %c0_0 = arith.constant 0 : index
    %0 = vector.load %arg1[%c0, %c0_0] : memref<8x128xf32, #tpu.memory_space<vmem>>, vector<8x128xf32>
    %1 = arith.truncf %0 : vector<8x128xf32> to vector<8x128xbf16>
    %c0_1 = arith.constant 0 : index
    %c0_2 = arith.constant 0 : index
    %2 = vector.load %arg2[%c0_1, %c0_2] : memref<128x512xbf16, #tpu.memory_space<vmem>>, vector<128x512xbf16>
    %cst = arith.constant dense<0.000000e+00> : vector<8x512xf32>
    %3 = tpu.matmul %1, %2, %cst {dimension_numbers = #tpu.dot_dimension_numbers<[1], [0], [0], [1], [0, 0, 1, 1], [], []>} : vector<8x128xbf16>, vector<128x512xbf16>, vector<8x512xf32> -> vector<8x512xf32>
    %c0_3 = arith.constant 0 : index
    %c0_4 = arith.constant 0 : index
    %4 = vector.load %arg3[%c0_3, %c0_4] : memref<1x512xf32, #tpu.memory_space<vmem>>, vector<1x512xf32>
    %5 = vector.broadcast %4 : vector<1x512xf32> to vector<8x512xf32>
    %6 = arith.addf %3, %5 : vector<8x512xf32>
    %cst_5 = arith.constant 0.000000e+00 : f32
    %7 = vector.broadcast %cst_5 : f32 to vector<8x512xf32>
    %8 = arith.maximumf %6, %7 : vector<8x512xf32>
    %9 = arith.truncf %8 : vector<8x512xf32> to vector<8x512xbf16>
    %c0_6 = arith.constant 0 : index
    %c0_7 = arith.constant 0 : index
    %10 = vector.load %arg4[%c0_6, %c0_7] : memref<512x512xbf16, #tpu.memory_space<vmem>>, vector<512x512xbf16>
    %cst_8 = arith.constant dense<0.000000e+00> : vector<8x512xf32>
    %11 = tpu.matmul %9, %10, %cst_8 {dimension_numbers = #tpu.dot_dimension_numbers<[1], [0], [0], [1], [0, 0, 1, 1], [], []>} : vector<8x512xbf16>, vector<512x512xbf16>, vector<8x512xf32> -> vector<8x512xf32>
    %c0_9 = arith.constant 0 : index
    %c0_10 = arith.constant 0 : index
    %12 = vector.load %arg5[%c0_9, %c0_10] : memref<1x512xf32, #tpu.memory_space<vmem>>, vector<1x512xf32>
    %13 = vector.broadcast %12 : vector<1x512xf32> to vector<8x512xf32>
    %14 = arith.addf %11, %13 : vector<8x512xf32>
    %cst_11 = arith.constant 0.000000e+00 : f32
    %15 = vector.broadcast %cst_11 : f32 to vector<8x512xf32>
    %16 = arith.maximumf %14, %15 : vector<8x512xf32>
    %17 = arith.truncf %16 : vector<8x512xf32> to vector<8x512xbf16>
    %c0_12 = arith.constant 0 : index
    %c0_13 = arith.constant 0 : index
    %18 = vector.load %arg6[%c0_12, %c0_13] : memref<512x128xbf16, #tpu.memory_space<vmem>>, vector<512x128xbf16>
    %cst_14 = arith.constant dense<0.000000e+00> : vector<8x128xf32>
    %19 = tpu.matmul %17, %18, %cst_14 {dimension_numbers = #tpu.dot_dimension_numbers<[1], [0], [0], [1], [0, 0, 1, 1], [], []>} : vector<8x512xbf16>, vector<512x128xbf16>, vector<8x128xf32> -> vector<8x128xf32>
    %c0_15 = arith.constant 0 : index
    %c0_16 = arith.constant 0 : index
    %20 = vector.load %arg7[%c0_15, %c0_16] : memref<1x128xf32, #tpu.memory_space<vmem>>, vector<1x128xf32>
    %21 = vector.broadcast %20 : vector<1x128xf32> to vector<8x128xf32>
    %22 = arith.addf %19, %21 : vector<8x128xf32>
    %23 = math.tanh %22 : vector<8x128xf32>
    %c0_17 = arith.constant 0 : index
    %c0_18 = arith.constant 0 : index
    %24 = vector.load %arg8[%c0_17, %c0_18] : memref<8x128xf32, #tpu.memory_space<vmem>>, vector<8x128xf32>
    tpu.vector_store %arg8[%c0_17, %c0_18], %23 {strides = array<i32>} : memref<8x128xf32, #tpu.memory_space<vmem>>, vector<8x128xf32>,
    return
  }
  func.func @transform_0(%arg0: i32) -> (i32, i32) {
    %c0_i32 = arith.constant 0 : i32
    %c0_i32_0 = arith.constant 0 : i32
    return %arg0, %c0_i32 : i32, i32
  }
  func.func @transform_1(%arg0: i32) -> (i32, i32) {
    %c0_i32 = arith.constant 0 : i32
    %c0_i32_0 = arith.constant 0 : i32
    %c0_i32_1 = arith.constant 0 : i32
    return %c0_i32, %c0_i32_0 : i32, i32
  }
  func.func @transform_2(%arg0: i32) -> (i32, i32) {
    %c0_i32 = arith.constant 0 : i32
    %c0_i32_0 = arith.constant 0 : i32
    %c0_i32_1 = arith.constant 0 : i32
    return %c0_i32, %c0_i32_0 : i32, i32
  }
  func.func @transform_3(%arg0: i32) -> (i32, i32) {
    %c0_i32 = arith.constant 0 : i32
    %c0_i32_0 = arith.constant 0 : i32
    %c0_i32_1 = arith.constant 0 : i32
    return %c0_i32, %c0_i32_0 : i32, i32
  }
  func.func @transform_4(%arg0: i32) -> (i32, i32) {
    %c0_i32 = arith.constant 0 : i32
    %c0_i32_0 = arith.constant 0 : i32
    %c0_i32_1 = arith.constant 0 : i32
    return %c0_i32, %c0_i32_0 : i32, i32
  }
  func.func @transform_5(%arg0: i32) -> (i32, i32) {
    %c0_i32 = arith.constant 0 : i32
    %c0_i32_0 = arith.constant 0 : i32
    %c0_i32_1 = arith.constant 0 : i32
    return %c0_i32, %c0_i32_0 : i32, i32
  }
  func.func @transform_6(%arg0: i32) -> (i32, i32) {
    %c0_i32 = arith.constant 0 : i32
    %c0_i32_0 = arith.constant 0 : i32
    %c0_i32_1 = arith.constant 0 : i32
    return %c0_i32, %c0_i32_0 : i32, i32
  }
  func.func @transform_7(%arg0: i32) -> (i32, i32) {
    %c0_i32 = arith.constant 0 : i32
    %c0_i32_0 = arith.constant 0 : i32
    return %arg0, %c0_i32 : i32, i32
  }
}

</mosaic_0001>

<llo_original>
// kernel: tpu_custom_call.1
$region0: #{tpu_custom_call.1}
  #allocation0 [shape = 'u32[]', space=smem, size = 0x4, offset = 0x4, fixed_abs, tag = 'smem constant byte address 0x4 - core index']
  #allocation1 [shape = 'u32[72,128]{1,0:T(1,128)}', space=vmem, size = 0x9000, scoped, tag = 'internal scratch']
  %s0 = inlined_call_operand.hbm [shape: f32[16,128], index: 0, kind: input, shape index: {}]
  %s1 = inlined_call_operand.hbm [shape: bf16[128,512], index: 1, kind: input, shape index: {}]
  %s2 = inlined_call_operand.hbm [shape: f32[1,512], index: 2, kind: input, shape index: {}]
  %s3 = inlined_call_operand.hbm [shape: bf16[512,512], index: 3, kind: input, shape index: {}]
  %s4 = inlined_call_operand.hbm [shape: f32[1,512], index: 4, kind: input, shape index: {}]
  %s5 = inlined_call_operand.hbm [shape: bf16[512,128], index: 5, kind: input, shape index: {}]
  %s6 = inlined_call_operand.vmem [shape: f32[1,128], index: 6, kind: input, shape index: {}]
  %s7 = inlined_call_operand.hbm [shape: f32[16,128], index: 7, kind: output, shape index: {}]
  %s8 = sld [smem:[#allocation0]]
  $region85: #{tpu_custom_call.1} parent=0
    _
  %s10 = ssub.s32 1, %s8
  %s11 = scalar_select 0, %s10, %s8
  $region1: #{tpu_custom_call.1} parent=0
    #allocation2 [shape = 'u8[8192]{0}', space=vmem, size = 0x2000, scoped, tag = 'input window, operand 0']
    #allocation3 [shape = 's32[2]{0}', space=sflag, size = 0x8, scoped, tag = 'scoped memory for tpu_custom_call.1']
    #allocation4 [shape = 's32[2]{0}', space=sflag, size = 0x8, scoped, tag = 'scoped memory for tpu_custom_call.1']
    #allocation5 [shape = 'u8[131072]{0}', space=vmem, size = 0x20000, scoped, tag = 'input window, operand 1, single buffered']
    #allocation6 [shape = 's32[1]{0}', space=sflag, size = 0x4, scoped, tag = 'scoped memory for tpu_custom_call.1']
    #allocation7 [shape = 'u8[2048]{0}', space=vmem, size = 0x800, scoped, tag = 'input window, operand 2, single buffered']
    #allocation8 [shape = 'u8[524288]{0}', space=vmem, size = 0x80000, scoped, tag = 'input window, operand 3, single buffered']
    #allocation9 [shape = 's32[1]{0}', space=sflag, size = 0x4, scoped, tag = 'scoped memory for tpu_custom_call.1']
    #allocation10 [shape = 'u8[2048]{0}', space=vmem, size = 0x800, scoped, tag = 'input window, operand 4, single buffered']
    #allocation11 [shape = 'u8[131072]{0}', space=vmem, size = 0x20000, scoped, tag = 'input window, operand 5, single buffered']
    #allocation12 [shape = 's32[1]{0}', space=sflag, size = 0x4, scoped, tag = 'scoped memory for tpu_custom_call.1']
    #allocation13 [shape = 'u8[8192]{0}', space=vmem, size = 0x2000, scoped, tag = 'output window, operand 0']
    %12 = vsyncpa [#allocation3], 0
    %s13 = scalar_lea.sflag [#allocation3], 1
    %14 = vsyncpa %s13, 0
    %15 = vsyncpa [#allocation6], 0
    %16 = vsyncpa [#allocation9], 0
    %17 = vsyncpa [#allocation12], 0
    %18 = vsyncpa [#allocation4], 0
    %s19 = scalar_lea.sflag [#allocation4], 1
    %20 = vsyncpa %s19, 0
    loop: start=0, step=1, limit=4
    $region2: #{tpu_custom_call.1} parent=1 // loop_pre_header
      _
    $region3: #{tpu_custom_call.1} parent=1 // loop_header
      %s22 = sphi 0, %s26
      %p23 = scmp.ge.s32.totalorder %s22, 4
      %s32 = sphi 0, %s34
      %s35 = sphi 0, %s32
      %s36 = sphi 0, %s35
      %s52 = sphi 0, %s36
      %s56 = sphi 0, %s56
      %s58 = sphi 0, %s56
      %s59 = sphi 0, %s58
      %s73 = sphi 0, %s59
      %s77 = sphi 0, %s77
      %s79 = sphi 0, %s77
      %s80 = sphi 0, %s79
      %s94 = sphi 0, %s80
      %s98 = sphi 0, %s98
      %s100 = sphi 0, %s98
      %s101 = sphi 0, %s100
      %s115 = sphi 0, %s101
      %s119 = sphi 0, %s119
      %s121 = sphi 0, %s119
      %s122 = sphi 0, %s121
      %s136 = sphi 0, %s122
      %s140 = sphi 0, %s140
      %s142 = sphi 0, %s140
      %s143 = sphi 0, %s142
      %s157 = sphi 0, %s143
      %s161 = sphi 0, %s161
      %s163 = sphi 0, %s161
      %s164 = sphi 0, %s163
      %s178 = sphi 0, %s164
      %s184 = sphi 0, %s186
      %s187 = sphi 0, %s184
      %s188 = sphi 0, %s187
      %s204 = sphi 0, %s188
    $region4: #{tpu_custom_call.1} parent=1 // loop_header_branch
      %25 = sbr.rel (%p23) target = $region8
    $region5: #{tpu_custom_call.1} parent=1 // loop_body
      %s27 = ssub.s32 %s22, 1
      %s28 = ssub.s32 %s22, 2
      %s29 = sadd.s32 %s22, 1
      %s30 = ssub.s32 %s22, %s29
      %p31 = scmp.eq.s32.totalorder %s30, 0
      %s33 = sadd.s32 %s32, 1
      %s34 = scalar_select %p31, %s32, %s33
      %p37 = pneg %p31
      %p38 = scmp.eq.s32.totalorder %s22, 1
      %p39 = por %p37, %p38
      %p40 = scmp.ne.s32.totalorder %s32, %s35
      %p41 = scmp.eq.s32.totalorder %s22, 0
      %p42 = por %p40, %p41
      %p43 = scmp.ne.s32.totalorder %s32, %s35
      %p44 = scmp.eq.s32.totalorder %s27, 1
      %p45 = por %p43, %p44
      %p46 = scmp.ne.s32.totalorder %s35, %s36
      %p47 = scmp.eq.s32.totalorder %s27, 0
      %p48 = por %p46, %p47
      %p49 = scmp.ne.s32.totalorder %s35, %s36
      %p50 = scmp.eq.s32.totalorder %s28, 1
      %p51 = por %p49, %p50
      %p53 = scmp.ne.s32.totalorder %s36, %s52
      %p54 = scmp.eq.s32.totalorder %s28, 0
      %p55 = por %p53, %p54
      %s57 = sadd.s32 %s56, 1
      %p60 = scmp.eq.s32.totalorder %s22, 1
      %p61 = scmp.ne.s32.totalorder %s56, %s58
      %p62 = scmp.eq.s32.totalorder %s22, 0
      %p63 = por %p61, %p62
      %p64 = scmp.ne.s32.totalorder %s56, %s58
      %p65 = scmp.eq.s32.totalorder %s27, 1
      %p66 = por %p64, %p65
      %p67 = scmp.ne.s32.totalorder %s58, %s59
      %p68 = scmp.eq.s32.totalorder %s27, 0
      %p69 = por %p67, %p68
      %p70 = scmp.ne.s32.totalorder %s58, %s59
      %p71 = scmp.eq.s32.totalorder %s28, 1
      %p72 = por %p70, %p71
      %p74 = scmp.ne.s32.totalorder %s59, %s73
      %p75 = scmp.eq.s32.totalorder %s28, 0
      %p76 = por %p74, %p75
      %s78 = sadd.s32 %s77, 1
      %p81 = scmp.eq.s32.totalorder %s22, 1
      %p82 = scmp.ne.s32.totalorder %s77, %s79
      %p83 = scmp.eq.s32.totalorder %s22, 0
      %p84 = por %p82, %p83
      %p85 = scmp.ne.s32.totalorder %s77, %s79
      %p86 = scmp.eq.s32.totalorder %s27, 1
      %p87 = por %p85, %p86
      %p88 = scmp.ne.s32.totalorder %s79, %s80
      %p89 = scmp.eq.s32.totalorder %s27, 0
      %p90 = por %p88, %p89
      %p91 = scmp.ne.s32.totalorder %s79, %s80
      %p92 = scmp.eq.s32.totalorder %s28, 1
      %p93 = por %p91, %p92
      %p95 = scmp.ne.s32.totalorder %s80, %s94
      %p96 = scmp.eq.s32.totalorder %s28, 0
      %p97 = por %p95, %p96
      %s99 = sadd.s32 %s98, 1
      %p102 = scmp.eq.s32.totalorder %s22, 1
      %p103 = scmp.ne.s32.totalorder %s98, %s100
      %p104 = scmp.eq.s32.totalorder %s22, 0
      %p105 = por %p103, %p104
      %p106 = scmp.ne.s32.totalorder %s98, %s100
      %p107 = scmp.eq.s32.totalorder %s27, 1
      %p108 = por %p106, %p107
      %p109 = scmp.ne.s32.totalorder %s100, %s101
      %p110 = scmp.eq.s32.totalorder %s27, 0
      %p111 = por %p109, %p110
      %p112 = scmp.ne.s32.totalorder %s100, %s101
      %p113 = scmp.eq.s32.totalorder %s28, 1
      %p114 = por %p112, %p113
      %p116 = scmp.ne.s32.totalorder %s101, %s115
      %p117 = scmp.eq.s32.totalorder %s28, 0
      %p118 = por %p116, %p117
      %s120 = sadd.s32 %s119, 1
      %p123 = scmp.eq.s32.totalorder %s22, 1
      %p124 = scmp.ne.s32.totalorder %s119, %s121
      %p125 = scmp.eq.s32.totalorder %s22, 0
      %p126 = por %p124, %p125
      %p127 = scmp.ne.s32.totalorder %s119, %s121
      %p128 = scmp.eq.s32.totalorder %s27, 1
      %p129 = por %p127, %p128
      %p130 = scmp.ne.s32.totalorder %s121, %s122
      %p131 = scmp.eq.s32.totalorder %s27, 0
      %p132 = por %p130, %p131
      %p133 = scmp.ne.s32.totalorder %s121, %s122
      %p134 = scmp.eq.s32.totalorder %s28, 1
      %p135 = por %p133, %p134
      %p137 = scmp.ne.s32.totalorder %s122, %s136
      %p138 = scmp.eq.s32.totalorder %s28, 0
      %p139 = por %p137, %p138
      %s141 = sadd.s32 %s140, 1
      %p144 = scmp.eq.s32.totalorder %s22, 1
      %p145 = scmp.ne.s32.totalorder %s140, %s142
      %p146 = scmp.eq.s32.totalorder %s22, 0
      %p147 = por %p145, %p146
      %p148 = scmp.ne.s32.totalorder %s140, %s142
      %p149 = scmp.eq.s32.totalorder %s27, 1
      %p150 = por %p148, %p149
      %p151 = scmp.ne.s32.totalorder %s142, %s143
      %p152 = scmp.eq.s32.totalorder %s27, 0
      %p153 = por %p151, %p152
      %p154 = scmp.ne.s32.totalorder %s142, %s143
      %p155 = scmp.eq.s32.totalorder %s28, 1
      %p156 = por %p154, %p155
      %p158 = scmp.ne.s32.totalorder %s143, %s157
      %p159 = scmp.eq.s32.totalorder %s28, 0
      %p160 = por %p158, %p159
      %s162 = sadd.s32 %s161, 1
      %p165 = scmp.eq.s32.totalorder %s22, 1
      %p166 = scmp.ne.s32.totalorder %s161, %s163
      %p167 = scmp.eq.s32.totalorder %s22, 0
      %p168 = por %p166, %p167
      %p169 = scmp.ne.s32.totalorder %s161, %s163
      %p170 = scmp.eq.s32.totalorder %s27, 1
      %p171 = por %p169, %p170
      %p172 = scmp.ne.s32.totalorder %s163, %s164
      %p173 = scmp.eq.s32.totalorder %s27, 0
      %p174 = por %p172, %p173
      %p175 = scmp.ne.s32.totalorder %s163, %s164
      %p176 = scmp.eq.s32.totalorder %s28, 1
      %p177 = por %p175, %p176
      %p179 = scmp.ne.s32.totalorder %s164, %s178
      %p180 = scmp.eq.s32.totalorder %s28, 0
      %p181 = por %p179, %p180
      %s182 = ssub.s32 %s22, %s29
      %p183 = scmp.eq.s32.totalorder %s182, 0
      %s185 = sadd.s32 %s184, 1
      %s186 = scalar_select %p183, %s184, %s185
      %p189 = pneg %p183
      %p190 = scmp.eq.s32.totalorder %s22, 1
      %p191 = por %p189, %p190
      %p192 = scmp.ne.s32.totalorder %s184, %s187
      %p193 = scmp.eq.s32.totalorder %s22, 0
      %p194 = por %p192, %p193
      %p195 = scmp.ne.s32.totalorder %s184, %s187
      %p196 = scmp.eq.s32.totalorder %s27, 1
      %p197 = por %p195, %p196
      %p198 = scmp.ne.s32.totalorder %s187, %s188
      %p199 = scmp.eq.s32.totalorder %s27, 0
      %p200 = por %p198, %p199
      %p201 = scmp.ne.s32.totalorder %s187, %s188
      %p202 = scmp.eq.s32.totalorder %s28, 1
      %p203 = por %p201, %p202
      %p205 = scmp.ne.s32.totalorder %s188, %s204
      %p206 = scmp.eq.s32.totalorder %s28, 0
      %p207 = por %p205, %p206
      %p208 = scmp.le.s32.totalorder 1, %s22
      %p209 = scmp.lt.s32.totalorder %s22, 3
      %p210 = pnand %p208, %p209
      %p211 = pneg %p210
      // Predicated region
      $region9: #{tpu_custom_call.1} parent=5 // pred_check
        _
      $region10: #{tpu_custom_call.1} parent=5 // pred_check_branch
        %213 = sbr.rel (%p210) target = $region12
      $region11: #{tpu_custom_call.1} parent=5 // pred_region
        %s214 = ssub.s32 %s22, 1
        // Predicated region
        $region13: #{tpu_custom_call.1} parent=11 // pred_check
          %p215 = pneg %p69
        $region14: #{tpu_custom_call.1} parent=11 // pred_check_branch
          %217 = sbr.rel (%p215) target = $region16
        $region15: #{tpu_custom_call.1} parent=11 // pred_region
          %219 = vsyncadd [#allocation6], 0
          %s220 = sshll.u32 %s1, 4
          %s221 = int_to_ptr.hbm [resolvable:$true] %s220
          %s222 = sshll.u32 [#allocation5], 4
          %s223 = int_to_ptr.vmem [resolvable:$true] %s222
          %228 = dma.hbm_to_vmem [thread:$0]  %s221, 4096, %s223, [#allocation6], 256, 256, 16
        $region16: #{tpu_custom_call.1} parent=11 // pred_fallthru
          _
        // Predicated region
        $region17: #{tpu_custom_call.1} parent=11 // pred_check
          %p229 = pneg %p90
        $region18: #{tpu_custom_call.1} parent=11 // pred_check_branch
          %231 = sbr.rel (%p229) target = $region20
        $region19: #{tpu_custom_call.1} parent=11 // pred_region
          %233 = vsyncadd [#allocation6], 0
          %s235 = sshll.u32 %s2, 4
          %s236 = int_to_ptr.hbm [resolvable:$true] %s235
          %s237 = sshll.u32 [#allocation7], 4
          %s238 = int_to_ptr.vmem [resolvable:$true] %s237
          %240 = dma.hbm_to_vmem [thread:$0]  %s236, 64, %s238, [#allocation6]
        $region20: #{tpu_custom_call.1} parent=11 // pred_fallthru
          _
        // Predicated region
        $region21: #{tpu_custom_call.1} parent=11 // pred_check
          %p241 = pneg %p111
        $region22: #{tpu_custom_call.1} parent=11 // pred_check_branch
          %243 = sbr.rel (%p241) target = $region24
        $region23: #{tpu_custom_call.1} parent=11 // pred_region
          %245 = vsyncadd [#allocation9], 0
          %s246 = sshll.u32 %s3, 4
          %s247 = int_to_ptr.hbm [resolvable:$true] %s246
          %s248 = sshll.u32 [#allocation8], 4
          %s249 = int_to_ptr.vmem [resolvable:$true] %s248
          %254 = dma.hbm_to_vmem [thread:$0]  %s247, 16384, %s249, [#allocation9], 256, 256, 16
        $region24: #{tpu_custom_call.1} parent=11 // pred_fallthru
          _
        // Predicated region
        $region25: #{tpu_custom_call.1} parent=11 // pred_check
          %p255 = pneg %p132
        $region26: #{tpu_custom_call.1} parent=11 // pred_check_branch
          %257 = sbr.rel (%p255) target = $region28
        $region27: #{tpu_custom_call.1} parent=11 // pred_region
          %259 = vsyncadd [#allocation9], 0
          %s261 = sshll.u32 %s4, 4
          %s262 = int_to_ptr.hbm [resolvable:$true] %s261
          %s263 = sshll.u32 [#allocation10], 4
          %s264 = int_to_ptr.vmem [resolvable:$true] %s263
          %266 = dma.hbm_to_vmem [thread:$0]  %s262, 64, %s264, [#allocation9]
        $region28: #{tpu_custom_call.1} parent=11 // pred_fallthru
          _
        // Predicated region
        $region29: #{tpu_custom_call.1} parent=11 // pred_check
          %p267 = pneg %p153
        $region30: #{tpu_custom_call.1} parent=11 // pred_check_branch
          %269 = sbr.rel (%p267) target = $region32
        $region31: #{tpu_custom_call.1} parent=11 // pred_region
          %271 = vsyncadd [#allocation12], 0
          %s272 = sshll.u32 %s5, 4
          %s273 = int_to_ptr.hbm [resolvable:$true] %s272
          %s274 = sshll.u32 [#allocation11], 4
          %s275 = int_to_ptr.vmem [resolvable:$true] %s274
          %280 = dma.hbm_to_vmem [thread:$0]  %s273, 4096, %s275, [#allocation12], 64, 64, 4
        $region32: #{tpu_custom_call.1} parent=11 // pred_fallthru
          _
        // Predicated region
        $region33: #{tpu_custom_call.1} parent=11 // pred_check
          %p281 = pneg %p174
        $region34: #{tpu_custom_call.1} parent=11 // pred_check_branch
          %283 = sbr.rel (%p281) target = $region36
        $region35: #{tpu_custom_call.1} parent=11 // pred_region
          _
        $region36: #{tpu_custom_call.1} parent=11 // pred_fallthru
          _
      $region12: #{tpu_custom_call.1} parent=5 // pred_fallthru
        _
      %p284 = scmp.lt.s32.totalorder %s22, 2
      // Predicated region
      $region37: #{tpu_custom_call.1} parent=5 // pred_check
        %p285 = pneg %p284
      $region38: #{tpu_custom_call.1} parent=5 // pred_check_branch
        %287 = sbr.rel (%p285) target = $region40
      $region39: #{tpu_custom_call.1} parent=5 // pred_region
        // Predicated region
        $region41: #{tpu_custom_call.1} parent=39 // pred_check
          %p288 = pneg %p42
        $region42: #{tpu_custom_call.1} parent=39 // pred_check_branch
          %290 = sbr.rel (%p288) target = $region44
        $region43: #{tpu_custom_call.1} parent=39 // pred_region
          %s291 = sand.u32 %s32, 1
          %s292 = scalar_lea.sflag [#allocation3], %s291
          %s293 = sand.u32 %s32, 1
          %s294 = smul.addr %s293, 8
          %s295 = scalar_lea.vmem [#allocation2], %s294
          %297 = vsyncadd %s292, 0
          %s298 = smul.addr %s22, 8
          %s299 = scalar_lea.hbm %s0, %s298
          %s301 = sshll.u32 %s299, 4
          %s302 = int_to_ptr.hbm [resolvable:$true] %s301
          %s303 = sshll.u32 %s295, 4
          %s304 = int_to_ptr.vmem [resolvable:$true] %s303
          %306 = dma.hbm_to_vmem [thread:$0]  %s302, 128, %s304, %s292
        $region44: #{tpu_custom_call.1} parent=39 // pred_fallthru
          _
      $region40: #{tpu_custom_call.1} parent=5 // pred_fallthru
        _
      %p307 = scmp.le.s32.totalorder 1, %s22
      %p308 = scmp.lt.s32.totalorder %s22, 3
      %p309 = pnand %p307, %p308
      %p310 = pneg %p309
      // Predicated region
      $region45: #{tpu_custom_call.1} parent=5 // pred_check
        _
      $region46: #{tpu_custom_call.1} parent=5 // pred_check_branch
        %312 = sbr.rel (%p309) target = $region48
      $region47: #{tpu_custom_call.1} parent=5 // pred_region
        %s313 = ssub.s32 %s22, 1
        %s314 = sand.u32 %s35, 1
        %s315 = scalar_lea.sflag [#allocation3], %s314
        %s316 = sand.u32 %s35, 1
        %s317 = smul.addr %s316, 8
        %s318 = scalar_lea.vmem [#allocation2], %s317
        // Predicated region
        $region49: #{tpu_custom_call.1} parent=47 // pred_check
          %p319 = pneg %p48
        $region50: #{tpu_custom_call.1} parent=47 // pred_check_branch
          %321 = sbr.rel (%p319) target = $region52
        $region51: #{tpu_custom_call.1} parent=47 // pred_region
          %323 = dma.done %s315, 128
        $region52: #{tpu_custom_call.1} parent=47 // pred_fallthru
          _
        // Predicated region
        $region53: #{tpu_custom_call.1} parent=47 // pred_check
          %p324 = pneg %p69
        $region54: #{tpu_custom_call.1} parent=47 // pred_check_branch
          %326 = sbr.rel (%p324) target = $region56
        $region55: #{tpu_custom_call.1} parent=47 // pred_region
          %328 = dma.done [#allocation6], 4096
        $region56: #{tpu_custom_call.1} parent=47 // pred_fallthru
          _
        // Predicated region
        $region57: #{tpu_custom_call.1} parent=47 // pred_check
          %p329 = pneg %p90
        $region58: #{tpu_custom_call.1} parent=47 // pred_check_branch
          %331 = sbr.rel (%p329) target = $region60
        $region59: #{tpu_custom_call.1} parent=47 // pred_region
          %333 = dma.done [#allocation6], 64
        $region60: #{tpu_custom_call.1} parent=47 // pred_fallthru
          _
        // Predicated region
        $region61: #{tpu_custom_call.1} parent=47 // pred_check
          %p334 = pneg %p111
        $region62: #{tpu_custom_call.1} parent=47 // pred_check_branch
          %336 = sbr.rel (%p334) target = $region64
        $region63: #{tpu_custom_call.1} parent=47 // pred_region
          %338 = dma.done [#allocation9], 16384
        $region64: #{tpu_custom_call.1} parent=47 // pred_fallthru
          _
        // Predicated region
        $region65: #{tpu_custom_call.1} parent=47 // pred_check
          %p339 = pneg %p132
        $region66: #{tpu_custom_call.1} parent=47 // pred_check_branch
          %341 = sbr.rel (%p339) target = $region68
        $region67: #{tpu_custom_call.1} parent=47 // pred_region
          %343 = dma.done [#allocation9], 64
        $region68: #{tpu_custom_call.1} parent=47 // pred_fallthru
          _
        // Predicated region
        $region69: #{tpu_custom_call.1} parent=47 // pred_check
          %p344 = pneg %p153
        $region70: #{tpu_custom_call.1} parent=47 // pred_check_branch
          %346 = sbr.rel (%p344) target = $region72
        $region71: #{tpu_custom_call.1} parent=47 // pred_region
          %348 = dma.done [#allocation12], 4096
        $region72: #{tpu_custom_call.1} parent=47 // pred_fallthru
          _
        %s349 = sand.u32 %s35, 1
        %s350 = scalar_lea.sflag [#allocation3], %s349
        %s351 = sand.u32 %s35, 1
        %s352 = smul.addr %s351, 8
        %s353 = scalar_lea.vmem [#allocation2], %s352
        %p354 = pneg %p48
        %p355 = pneg %p45
        %p356 = pneg %p69
        %p357 = pneg %p66
        %p358 = pneg %p90
        %p359 = pneg %p87
        %p360 = pneg %p111
        %p361 = pneg %p108
        %p362 = pneg %p132
        %p363 = pneg %p129
        %p364 = pneg %p153
        %p365 = pneg %p150
        %p366 = pneg %p174
        %p367 = pneg %p171
        %p368 = pneg %p200
        %p369 = pneg %p197
        %s370 = sand.u32 %s187, 1
        %s371 = scalar_lea.sflag [#allocation4], %s370
        %s372 = sand.u32 %s187, 1
        %s373 = smul.addr %s372, 8
        %s374 = scalar_lea.vmem [#allocation13], %s373
        %v375 = vld [vmem:[%s318] sm:$0xff]
        %v376 = vpack.c.bf16 %v375, %v375
        %v377 = vld [vmem:[#allocation5] sm:$0xff]
        %v378 = vld [vmem:[#allocation5 + $0x8] sm:$0xff]
        %v379 = vld [vmem:[#allocation5 + $0x10] sm:$0xff]
        %v380 = vld [vmem:[#allocation5 + $0x18] sm:$0xff]
        %v381 = vld [vmem:[#allocation5 + $0x20] sm:$0xff]
        %v382 = vld [vmem:[#allocation5 + $0x28] sm:$0xff]
        %v383 = vld [vmem:[#allocation5 + $0x30] sm:$0xff]
        %v384 = vld [vmem:[#allocation5 + $0x38] sm:$0xff]
        %v385 = vld [vmem:[#allocation5 + $0x40] sm:$0xff]
        %v386 = vld [vmem:[#allocation5 + $0x48] sm:$0xff]
        %v387 = vld [vmem:[#allocation5 + $0x50] sm:$0xff]
        %v388 = vld [vmem:[#allocation5 + $0x58] sm:$0xff]
        %v389 = vld [vmem:[#allocation5 + $0x60] sm:$0xff]
        %v390 = vld [vmem:[#allocation5 + $0x68] sm:$0xff]
        %v391 = vld [vmem:[#allocation5 + $0x70] sm:$0xff]
        %v392 = vld [vmem:[#allocation5 + $0x78] sm:$0xff]
        %v393 = vld [vmem:[#allocation5 + $0x80] sm:$0xff]
        %v394 = vld [vmem:[#allocation5 + $0x88] sm:$0xff]
        %v395 = vld [vmem:[#allocation5 + $0x90] sm:$0xff]
        %v396 = vld [vmem:[#allocation5 + $0x98] sm:$0xff]
        %v397 = vld [vmem:[#allocation5 + $0xa0] sm:$0xff]
        %v398 = vld [vmem:[#allocation5 + $0xa8] sm:$0xff]
        %v399 = vld [vmem:[#allocation5 + $0xb0] sm:$0xff]
        %v400 = vld [vmem:[#allocation5 + $0xb8] sm:$0xff]
        %v401 = vld [vmem:[#allocation5 + $0xc0] sm:$0xff]
        %v402 = vld [vmem:[#allocation5 + $0xc8] sm:$0xff]
        %v403 = vld [vmem:[#allocation5 + $0xd0] sm:$0xff]
        %v404 = vld [vmem:[#allocation5 + $0xd8] sm:$0xff]
        %v405 = vld [vmem:[#allocation5 + $0xe0] sm:$0xff]
        %v406 = vld [vmem:[#allocation5 + $0xe8] sm:$0xff]
        %v407 = vld [vmem:[#allocation5 + $0xf0] sm:$0xff]
        %v408 = vld [vmem:[#allocation5 + $0xf8] sm:$0xff]
        %v409 = vld [vmem:[#allocation7] sm:$0xf]
        %v411 = vperm.slane %v409, 0
        %v412 = vperm.slane %v409, 1
        %v413 = vperm.slane %v409, 2
        %v414 = vperm.slane %v409, 3
        %v451 = vunpack.c.l.b16 %v377
        %v452 = vunpack.c.h.b16 %v377
        %v453 = vunpack.c.l.b16 %v378
        %v454 = vunpack.c.h.b16 %v378
        %v455 = vunpack.c.l.b16 %v379
        %v456 = vunpack.c.h.b16 %v379
        %v457 = vunpack.c.l.b16 %v380
        %v458 = vunpack.c.h.b16 %v380
        %v459 = vunpack.c.l.b16 %v381
        %v460 = vunpack.c.h.b16 %v381
        %v461 = vunpack.c.l.b16 %v382
        %v462 = vunpack.c.h.b16 %v382
        %v463 = vunpack.c.l.b16 %v383
        %v464 = vunpack.c.h.b16 %v383
        %v465 = vunpack.c.l.b16 %v384
        %v466 = vunpack.c.h.b16 %v384
        %v467 = vunpack.c.l.b16 %v385
        %v468 = vunpack.c.h.b16 %v385
        %v469 = vunpack.c.l.b16 %v386
        %v470 = vunpack.c.h.b16 %v386
        %v471 = vunpack.c.l.b16 %v387
        %v472 = vunpack.c.h.b16 %v387
        %v473 = vunpack.c.l.b16 %v388
        %v474 = vunpack.c.h.b16 %v388
        %v475 = vunpack.c.l.b16 %v389
        %v476 = vunpack.c.h.b16 %v389
        %v477 = vunpack.c.l.b16 %v390
        %v478 = vunpack.c.h.b16 %v390
        %v479 = vunpack.c.l.b16 %v391
        %v480 = vunpack.c.h.b16 %v391
        %v481 = vunpack.c.l.b16 %v392
        %v482 = vunpack.c.h.b16 %v392
        %v483 = vunpack.c.l.b16 %v393
        %v484 = vunpack.c.h.b16 %v393
        %v485 = vunpack.c.l.b16 %v394
        %v486 = vunpack.c.h.b16 %v394
        %v487 = vunpack.c.l.b16 %v395
        %v488 = vunpack.c.h.b16 %v395
        %v489 = vunpack.c.l.b16 %v396
        %v490 = vunpack.c.h.b16 %v396
        %v491 = vunpack.c.l.b16 %v397
        %v492 = vunpack.c.h.b16 %v397
        %v493 = vunpack.c.l.b16 %v398
        %v494 = vunpack.c.h.b16 %v398
        %v495 = vunpack.c.l.b16 %v399
        %v496 = vunpack.c.h.b16 %v399
        %v497 = vunpack.c.l.b16 %v400
        %v498 = vunpack.c.h.b16 %v400
        %v499 = vunpack.c.l.b16 %v401
        %v500 = vunpack.c.h.b16 %v401
        %v501 = vunpack.c.l.b16 %v402
        %v502 = vunpack.c.h.b16 %v402
        %v503 = vunpack.c.l.b16 %v403
        %v504 = vunpack.c.h.b16 %v403
        %v505 = vunpack.c.l.b16 %v404
        %v506 = vunpack.c.h.b16 %v404
        %v507 = vunpack.c.l.b16 %v405
        %v508 = vunpack.c.h.b16 %v405
        %v509 = vunpack.c.l.b16 %v406
        %v510 = vunpack.c.h.b16 %v406
        %v511 = vunpack.c.l.b16 %v407
        %v512 = vunpack.c.h.b16 %v407
        %v513 = vunpack.c.l.b16 %v408
        %v514 = vunpack.c.h.b16 %v408
        %v515 = vpack.c.b16 %v455, %v451
        %v516 = vpack.c.b16 %v456, %v452
        %v517 = vpack.c.b16 %v457, %v453
        %v518 = vpack.c.b16 %v458, %v454
        %v519 = vpack.c.b16 %v463, %v459
        %v520 = vpack.c.b16 %v464, %v460
        %v521 = vpack.c.b16 %v465, %v461
        %v522 = vpack.c.b16 %v466, %v462
        %v523 = vpack.c.b16 %v471, %v467
        %v524 = vpack.c.b16 %v472, %v468
        %v525 = vpack.c.b16 %v473, %v469
        %v526 = vpack.c.b16 %v474, %v470
        %v527 = vpack.c.b16 %v479, %v475
        %v528 = vpack.c.b16 %v480, %v476
        %v529 = vpack.c.b16 %v481, %v477
        %v530 = vpack.c.b16 %v482, %v478
        %v531 = vpack.c.b16 %v487, %v483
        %v532 = vpack.c.b16 %v488, %v484
        %v533 = vpack.c.b16 %v489, %v485
        %v534 = vpack.c.b16 %v490, %v486
        %v535 = vpack.c.b16 %v495, %v491
        %v536 = vpack.c.b16 %v496, %v492
        %v537 = vpack.c.b16 %v497, %v493
        %v538 = vpack.c.b16 %v498, %v494
        %v539 = vpack.c.b16 %v503, %v499
        %v540 = vpack.c.b16 %v504, %v500
        %v541 = vpack.c.b16 %v505, %v501
        %v542 = vpack.c.b16 %v506, %v502
        %v543 = vpack.c.b16 %v511, %v507
        %v544 = vpack.c.b16 %v512, %v508
        %v545 = vpack.c.b16 %v513, %v509
        %v546 = vpack.c.b16 %v514, %v510
        %579 = vmatpush.bf16.msra.mxu0 %v543
        %580 = vmatpush.bf16.msra.mxu0 %v539
        %581 = vmatpush.bf16.msra.mxu0 %v535
        %582 = vmatpush.bf16.msra.mxu0 %v531
        %583 = vmatpush.bf16.msra.mxu0 %v527
        %584 = vmatpush.bf16.msra.mxu0 %v523
        %585 = vmatpush.bf16.msra.mxu0 %v519
        %586 = vmatpush.bf16.msra.mxu0 %v515
        %587 = vmatmul.bf16.gmra.mxu0 %v376
        %v588 = vpop.f32.mrf.mxu0
        %v589 = vadd.f32 %v411, %v588
        %v590 = vpop.f32.mrf.mxu0
        %591 = vdwg.mxu0
        %592 = vmatpush.bf16.msra.mxu0 %v544
        %593 = vmatpush.bf16.msra.mxu0 %v540
        %594 = vmatpush.bf16.msra.mxu0 %v536
        %595 = vmatpush.bf16.msra.mxu0 %v532
        %596 = vmatpush.bf16.msra.mxu0 %v528
        %597 = vmatpush.bf16.msra.mxu0 %v524
        %598 = vmatpush.bf16.msra.mxu0 %v520
        %599 = vmatpush.bf16.msra.mxu0 %v516
        %600 = vmatmul.bf16.gmra.mxu0 %v376
        %v601 = vpop.f32.mrf.mxu0
        %v602 = vadd.f32 %v412, %v601
        %v603 = vpop.f32.mrf.mxu0
        %604 = vdwg.mxu0
        %605 = vmatpush.bf16.msra.mxu0 %v545
        %606 = vmatpush.bf16.msra.mxu0 %v541
        %607 = vmatpush.bf16.msra.mxu0 %v537
        %608 = vmatpush.bf16.msra.mxu0 %v533
        %609 = vmatpush.bf16.msra.mxu0 %v529
        %610 = vmatpush.bf16.msra.mxu0 %v525
        %611 = vmatpush.bf16.msra.mxu0 %v521
        %612 = vmatpush.bf16.msra.mxu0 %v517
        %613 = vmatmul.bf16.gmra.mxu0 %v376
        %v614 = vpop.f32.mrf.mxu0
        %v615 = vadd.f32 %v413, %v614
        %v616 = vpop.f32.mrf.mxu0
        %617 = vdwg.mxu0
        %618 = vmatpush.bf16.msra.mxu0 %v546
        %619 = vmatpush.bf16.msra.mxu0 %v542
        %620 = vmatpush.bf16.msra.mxu0 %v538
        %621 = vmatpush.bf16.msra.mxu0 %v534
        %622 = vmatpush.bf16.msra.mxu0 %v530
        %623 = vmatpush.bf16.msra.mxu0 %v526
        %624 = vmatpush.bf16.msra.mxu0 %v522
        %625 = vmatpush.bf16.msra.mxu0 %v518
        %626 = vmatmul.bf16.gmra.mxu0 %v376
        %v627 = vpop.f32.mrf.mxu0
        %v628 = vadd.f32 %v414, %v627
        %v629 = vpop.f32.mrf.mxu0
        %630 = vdwg.mxu0
        %v631 = vmax.f32 %v589, 0.0
        %v632 = vmax.f32 %v602, 0.0
        %v633 = vmax.f32 %v615, 0.0
        %v634 = vmax.f32 %v628, 0.0
        %v635 = vpack.c.bf16 %v631, %v631
        %v636 = vpack.c.bf16 %v632, %v632
        %v637 = vpack.c.bf16 %v633, %v633
        %v638 = vpack.c.bf16 %v634, %v634
        %v639 = vld [vmem:[#allocation8] sm:$0xff]
        %v640 = vld [vmem:[#allocation8 + $0x8] sm:$0xff]
        %v641 = vld [vmem:[#allocation8 + $0x10] sm:$0xff]
        %v642 = vld [vmem:[#allocation8 + $0x18] sm:$0xff]
        %v643 = vld [vmem:[#allocation8 + $0x20] sm:$0xff]
        %v644 = vld [vmem:[#allocation8 + $0x28] sm:$0xff]
        %v645 = vld [vmem:[#allocation8 + $0x30] sm:$0xff]
        %v646 = vld [vmem:[#allocation8 + $0x38] sm:$0xff]
        %v647 = vld [vmem:[#allocation8 + $0x40] sm:$0xff]
        %v648 = vld [vmem:[#allocation8 + $0x48] sm:$0xff]
        %v649 = vld [vmem:[#allocation8 + $0x50] sm:$0xff]
        %v650 = vld [vmem:[#allocation8 + $0x58] sm:$0xff]
        %v651 = vld [vmem:[#allocation8 + $0x60] sm:$0xff]
        %v652 = vld [vmem:[#allocation8 + $0x68] sm:$0xff]
        %v653 = vld [vmem:[#allocation8 + $0x70] sm:$0xff]
        %v654 = vld [vmem:[#allocation8 + $0x78] sm:$0xff]
        %v655 = vld [vmem:[#allocation8 + $0x80] sm:$0xff]
        %v656 = vld [vmem:[#allocation8 + $0x88] sm:$0xff]
        %v657 = vld [vmem:[#allocation8 + $0x90] sm:$0xff]
        %v658 = vld [vmem:[#allocation8 + $0x98] sm:$0xff]
        %v659 = vld [vmem:[#allocation8 + $0xa0] sm:$0xff]
        %v660 = vld [vmem:[#allocation8 + $0xa8] sm:$0xff]
        %v661 = vld [vmem:[#allocation8 + $0xb0] sm:$0xff]
        %v662 = vld [vmem:[#allocation8 + $0xb8] sm:$0xff]
        %v663 = vld [vmem:[#allocation8 + $0xc0] sm:$0xff]
        %v664 = vld [vmem:[#allocation8 + $0xc8] sm:$0xff]
        %v665 = vld [vmem:[#allocation8 + $0xd0] sm:$0xff]
        %v666 = vld [vmem:[#allocation8 + $0xd8] sm:$0xff]
        %v667 = vld [vmem:[#allocation8 + $0xe0] sm:$0xff]
        %v668 = vld [vmem:[#allocation8 + $0xe8] sm:$0xff]
        %v669 = vld [vmem:[#allocation8 + $0xf0] sm:$0xff]
        %v670 = vld [vmem:[#allocation8 + $0xf8] sm:$0xff]
        %v671 = vld [vmem:[#allocation8 + $0x100] sm:$0xff]
        %v672 = vld [vmem:[#allocation8 + $0x108] sm:$0xff]
        %v673 = vld [vmem:[#allocation8 + $0x110] sm:$0xff]
        %v674 = vld [vmem:[#allocation8 + $0x118] sm:$0xff]
        %v675 = vld [vmem:[#allocation8 + $0x120] sm:$0xff]
        %v676 = vld [vmem:[#allocation8 + $0x128] sm:$0xff]
        %v677 = vld [vmem:[#allocation8 + $0x130] sm:$0xff]
        %v678 = vld [vmem:[#allocation8 + $0x138] sm:$0xff]
        %v679 = vld [vmem:[#allocation8 + $0x140] sm:$0xff]
        %v680 = vld [vmem:[#allocation8 + $0x148] sm:$0xff]
        %v681 = vld [vmem:[#allocation8 + $0x150] sm:$0xff]
        %v682 = vld [vmem:[#allocation8 + $0x158] sm:$0xff]
        %v683 = vld [vmem:[#allocation8 + $0x160] sm:$0xff]
        %v684 = vld [vmem:[#allocation8 + $0x168] sm:$0xff]
        %v685 = vld [vmem:[#allocation8 + $0x170] sm:$0xff]
        %v686 = vld [vmem:[#allocation8 + $0x178] sm:$0xff]
        %v687 = vld [vmem:[#allocation8 + $0x180] sm:$0xff]
        %v688 = vld [vmem:[#allocation8 + $0x188] sm:$0xff]
        %v689 = vld [vmem:[#allocation8 + $0x190] sm:$0xff]
        %v690 = vld [vmem:[#allocation8 + $0x198] sm:$0xff]
        %v691 = vld [vmem:[#allocation8 + $0x1a0] sm:$0xff]
        %v692 = vld [vmem:[#allocation8 + $0x1a8] sm:$0xff]
        %v693 = vld [vmem:[#allocation8 + $0x1b0] sm:$0xff]
        %v694 = vld [vmem:[#allocation8 + $0x1b8] sm:$0xff]
        %v695 = vld [vmem:[#allocation8 + $0x1c0] sm:$0xff]
        %v696 = vld [vmem:[#allocation8 + $0x1c8] sm:$0xff]
        %v697 = vld [vmem:[#allocation8 + $0x1d0] sm:$0xff]
        %v698 = vld [vmem:[#allocation8 + $0x1d8] sm:$0xff]
        %v699 = vld [vmem:[#allocation8 + $0x1e0] sm:$0xff]
        %v700 = vld [vmem:[#allocation8 + $0x1e8] sm:$0xff]
        %v701 = vld [vmem:[#allocation8 + $0x1f0] sm:$0xff]
        %v702 = vld [vmem:[#allocation8 + $0x1f8] sm:$0xff]
        %v703 = vld [vmem:[#allocation8 + $0x200] sm:$0xff]
        %v704 = vld [vmem:[#allocation8 + $0x208] sm:$0xff]
        %v705 = vld [vmem:[#allocation8 + $0x210] sm:$0xff]
        %v706 = vld [vmem:[#allocation8 + $0x218] sm:$0xff]
        %v707 = vld [vmem:[#allocation8 + $0x220] sm:$0xff]
        %v708 = vld [vmem:[#allocation8 + $0x228] sm:$0xff]
        %v709 = vld [vmem:[#allocation8 + $0x230] sm:$0xff]
        %v710 = vld [vmem:[#allocation8 + $0x238] sm:$0xff]
        %v711 = vld [vmem:[#allocation8 + $0x240] sm:$0xff]
        %v712 = vld [vmem:[#allocation8 + $0x248] sm:$0xff]
        %v713 = vld [vmem:[#allocation8 + $0x250] sm:$0xff]
        %v714 = vld [vmem:[#allocation8 + $0x258] sm:$0xff]
        %v715 = vld [vmem:[#allocation8 + $0x260] sm:$0xff]
        %v716 = vld [vmem:[#allocation8 + $0x268] sm:$0xff]
        %v717 = vld [vmem:[#allocation8 + $0x270] sm:$0xff]
        %v718 = vld [vmem:[#allocation8 + $0x278] sm:$0xff]
        %v719 = vld [vmem:[#allocation8 + $0x280] sm:$0xff]
        %v720 = vld [vmem:[#allocation8 + $0x288] sm:$0xff]
        %v721 = vld [vmem:[#allocation8 + $0x290] sm:$0xff]
        %v722 = vld [vmem:[#allocation8 + $0x298] sm:$0xff]
        %v723 = vld [vmem:[#allocation8 + $0x2a0] sm:$0xff]
        %v724 = vld [vmem:[#allocation8 + $0x2a8] sm:$0xff]
        %v725 = vld [vmem:[#allocation8 + $0x2b0] sm:$0xff]
        %v726 = vld [vmem:[#allocation8 + $0x2b8] sm:$0xff]
        %v727 = vld [vmem:[#allocation8 + $0x2c0] sm:$0xff]
        %v728 = vld [vmem:[#allocation8 + $0x2c8] sm:$0xff]
        %v729 = vld [vmem:[#allocation8 + $0x2d0] sm:$0xff]
        %v730 = vld [vmem:[#allocation8 + $0x2d8] sm:$0xff]
        %v731 = vld [vmem:[#allocation8 + $0x2e0] sm:$0xff]
        %v732 = vld [vmem:[#allocation8 + $0x2e8] sm:$0xff]
        %v733 = vld [vmem:[#allocation8 + $0x2f0] sm:$0xff]
        %v734 = vld [vmem:[#allocation8 + $0x2f8] sm:$0xff]
        %v735 = vld [vmem:[#allocation8 + $0x300] sm:$0xff]
        %v736 = vld [vmem:[#allocation8 + $0x308] sm:$0xff]
        %v737 = vld [vmem:[#allocation8 + $0x310] sm:$0xff]
        %v738 = vld [vmem:[#allocation8 + $0x318] sm:$0xff]
        %v739 = vld [vmem:[#allocation8 + $0x320] sm:$0xff]
        %v740 = vld [vmem:[#allocation8 + $0x328] sm:$0xff]
        %v741 = vld [vmem:[#allocation8 + $0x330] sm:$0xff]
        %v742 = vld [vmem:[#allocation8 + $0x338] sm:$0xff]
        %v743 = vld [vmem:[#allocation8 + $0x340] sm:$0xff]
        %v744 = vld [vmem:[#allocation8 + $0x348] sm:$0xff]
        %v745 = vld [vmem:[#allocation8 + $0x350] sm:$0xff]
        %v746 = vld [vmem:[#allocation8 + $0x358] sm:$0xff]
        %v747 = vld [vmem:[#allocation8 + $0x360] sm:$0xff]
        %v748 = vld [vmem:[#allocation8 + $0x368] sm:$0xff]
        %v749 = vld [vmem:[#allocation8 + $0x370] sm:$0xff]
        %v750 = vld [vmem:[#allocation8 + $0x378] sm:$0xff]
        %v751 = vld [vmem:[#allocation8 + $0x380] sm:$0xff]
        %v752 = vld [vmem:[#allocation8 + $0x388] sm:$0xff]
        %v753 = vld [vmem:[#allocation8 + $0x390] sm:$0xff]
        %v754 = vld [vmem:[#allocation8 + $0x398] sm:$0xff]
        %v755 = vld [vmem:[#allocation8 + $0x3a0] sm:$0xff]
        %v756 = vld [vmem:[#allocation8 + $0x3a8] sm:$0xff]
        %v757 = vld [vmem:[#allocation8 + $0x3b0] sm:$0xff]
        %v758 = vld [vmem:[#allocation8 + $0x3b8] sm:$0xff]
        %v759 = vld [vmem:[#allocation8 + $0x3c0] sm:$0xff]
        %v760 = vld [vmem:[#allocation8 + $0x3c8] sm:$0xff]
        %v761 = vld [vmem:[#allocation8 + $0x3d0] sm:$0xff]
        %v762 = vld [vmem:[#allocation8 + $0x3d8] sm:$0xff]
        %v763 = vld [vmem:[#allocation8 + $0x3e0] sm:$0xff]
        %v764 = vld [vmem:[#allocation8 + $0x3e8] sm:$0xff]
        %v765 = vld [vmem:[#allocation8 + $0x3f0] sm:$0xff]
        %v766 = vld [vmem:[#allocation8 + $0x3f8] sm:$0xff]
        %v767 = vld [vmem:[#allocation10] sm:$0xf]
        %v769 = vperm.slane %v767, 0
        %v770 = vperm.slane %v767, 1
        %v771 = vperm.slane %v767, 2
        %v772 = vperm.slane %v767, 3
        %v905 = vunpack.c.l.b16 %v639
        %v906 = vunpack.c.h.b16 %v639
        %v907 = vunpack.c.l.b16 %v640
        %v908 = vunpack.c.h.b16 %v640
        %v909 = vunpack.c.l.b16 %v641
        %v910 = vunpack.c.h.b16 %v641
        %v911 = vunpack.c.l.b16 %v642
        %v912 = vunpack.c.h.b16 %v642
        %v913 = vunpack.c.l.b16 %v643
        %v914 = vunpack.c.h.b16 %v643
        %v915 = vunpack.c.l.b16 %v644
        %v916 = vunpack.c.h.b16 %v644
        %v917 = vunpack.c.l.b16 %v645
        %v918 = vunpack.c.h.b16 %v645
        %v919 = vunpack.c.l.b16 %v646
        %v920 = vunpack.c.h.b16 %v646
        %v921 = vunpack.c.l.b16 %v647
        %v922 = vunpack.c.h.b16 %v647
        %v923 = vunpack.c.l.b16 %v648
        %v924 = vunpack.c.h.b16 %v648
        %v925 = vunpack.c.l.b16 %v649
        %v926 = vunpack.c.h.b16 %v649
        %v927 = vunpack.c.l.b16 %v650
        %v928 = vunpack.c.h.b16 %v650
        %v929 = vunpack.c.l.b16 %v651
        %v930 = vunpack.c.h.b16 %v651
        %v931 = vunpack.c.l.b16 %v652
        %v932 = vunpack.c.h.b16 %v652
        %v933 = vunpack.c.l.b16 %v653
        %v934 = vunpack.c.h.b16 %v653
        %v935 = vunpack.c.l.b16 %v654
        %v936 = vunpack.c.h.b16 %v654
        %v937 = vunpack.c.l.b16 %v655
        %v938 = vunpack.c.h.b16 %v655
        %v939 = vunpack.c.l.b16 %v656
        %v940 = vunpack.c.h.b16 %v656
        %v941 = vunpack.c.l.b16 %v657
        %v942 = vunpack.c.h.b16 %v657
        %v943 = vunpack.c.l.b16 %v658
        %v944 = vunpack.c.h.b16 %v658
        %v945 = vunpack.c.l.b16 %v659
        %v946 = vunpack.c.h.b16 %v659
        %v947 = vunpack.c.l.b16 %v660
        %v948 = vunpack.c.h.b16 %v660
        %v949 = vunpack.c.l.b16 %v661
        %v950 = vunpack.c.h.b16 %v661
        %v951 = vunpack.c.l.b16 %v662
        %v952 = vunpack.c.h.b16 %v662
        %v953 = vunpack.c.l.b16 %v663
        %v954 = vunpack.c.h.b16 %v663
        %v955 = vunpack.c.l.b16 %v664
        %v956 = vunpack.c.h.b16 %v664
        %v957 = vunpack.c.l.b16 %v665
        %v958 = vunpack.c.h.b16 %v665
        %v959 = vunpack.c.l.b16 %v666
        %v960 = vunpack.c.h.b16 %v666
        %v961 = vunpack.c.l.b16 %v667
        %v962 = vunpack.c.h.b16 %v667
        %v963 = vunpack.c.l.b16 %v668
        %v964 = vunpack.c.h.b16 %v668
        %v965 = vunpack.c.l.b16 %v669
        %v966 = vunpack.c.h.b16 %v669
        %v967 = vunpack.c.l.b16 %v670
        %v968 = vunpack.c.h.b16 %v670
        %v969 = vunpack.c.l.b16 %v671
        %v970 = vunpack.c.h.b16 %v671
        %v971 = vunpack.c.l.b16 %v672
        %v972 = vunpack.c.h.b16 %v672
        %v973 = vunpack.c.l.b16 %v673
        %v974 = vunpack.c.h.b16 %v673
        %v975 = vunpack.c.l.b16 %v674
        %v976 = vunpack.c.h.b16 %v674
        %v977 = vunpack.c.l.b16 %v675
        %v978 = vunpack.c.h.b16 %v675
        %v979 = vunpack.c.l.b16 %v676
        %v980 = vunpack.c.h.b16 %v676
        %v981 = vunpack.c.l.b16 %v677
        %v982 = vunpack.c.h.b16 %v677
        %v983 = vunpack.c.l.b16 %v678
        %v984 = vunpack.c.h.b16 %v678
        %v985 = vunpack.c.l.b16 %v679
        %v986 = vunpack.c.h.b16 %v679
        %v987 = vunpack.c.l.b16 %v680
        %v988 = vunpack.c.h.b16 %v680
        %v989 = vunpack.c.l.b16 %v681
        %v990 = vunpack.c.h.b16 %v681
        %v991 = vunpack.c.l.b16 %v682
        %v992 = vunpack.c.h.b16 %v682
        %v993 = vunpack.c.l.b16 %v683
        %v994 = vunpack.c.h.b16 %v683
        %v995 = vunpack.c.l.b16 %v684
        %v996 = vunpack.c.h.b16 %v684
        %v997 = vunpack.c.l.b16 %v685
        %v998 = vunpack.c.h.b16 %v685
        %v999 = vunpack.c.l.b16 %v686
        %v1000 = vunpack.c.h.b16 %v686
        %v1001 = vunpack.c.l.b16 %v687
        %v1002 = vunpack.c.h.b16 %v687
        %v1003 = vunpack.c.l.b16 %v688
        %v1004 = vunpack.c.h.b16 %v688
        %v1005 = vunpack.c.l.b16 %v689
        %v1006 = vunpack.c.h.b16 %v689
        %v1007 = vunpack.c.l.b16 %v690
        %v1008 = vunpack.c.h.b16 %v690
        %v1009 = vunpack.c.l.b16 %v691
        %v1010 = vunpack.c.h.b16 %v691
        %v1011 = vunpack.c.l.b16 %v692
        %v1012 = vunpack.c.h.b16 %v692
        %v1013 = vunpack.c.l.b16 %v693
        %v1014 = vunpack.c.h.b16 %v693
        %v1015 = vunpack.c.l.b16 %v694
        %v1016 = vunpack.c.h.b16 %v694
        %v1017 = vunpack.c.l.b16 %v695
        %v1018 = vunpack.c.h.b16 %v695
        %v1019 = vunpack.c.l.b16 %v696
        %v1020 = vunpack.c.h.b16 %v696
        %v1021 = vunpack.c.l.b16 %v697
        %v1022 = vunpack.c.h.b16 %v697
        %v1023 = vunpack.c.l.b16 %v698
        %v1024 = vunpack.c.h.b16 %v698
        %v1025 = vunpack.c.l.b16 %v699
        %v1026 = vunpack.c.h.b16 %v699
        %v1027 = vunpack.c.l.b16 %v700
        %v1028 = vunpack.c.h.b16 %v700
        %v1029 = vunpack.c.l.b16 %v701
        %v1030 = vunpack.c.h.b16 %v701
        %v1031 = vunpack.c.l.b16 %v702
        %v1032 = vunpack.c.h.b16 %v702
        %v1033 = vunpack.c.l.b16 %v703
        %v1034 = vunpack.c.h.b16 %v703
        %v1035 = vunpack.c.l.b16 %v704
        %v1036 = vunpack.c.h.b16 %v704
        %v1037 = vunpack.c.l.b16 %v705
        %v1038 = vunpack.c.h.b16 %v705
        %v1039 = vunpack.c.l.b16 %v706
        %v1040 = vunpack.c.h.b16 %v706
        %v1041 = vunpack.c.l.b16 %v707
        %v1042 = vunpack.c.h.b16 %v707
        %v1043 = vunpack.c.l.b16 %v708
        %v1044 = vunpack.c.h.b16 %v708
        %v1045 = vunpack.c.l.b16 %v709
        %v1046 = vunpack.c.h.b16 %v709
        %v1047 = vunpack.c.l.b16 %v710
        %v1048 = vunpack.c.h.b16 %v710
        %v1049 = vunpack.c.l.b16 %v711
        %v1050 = vunpack.c.h.b16 %v711
        %v1051 = vunpack.c.l.b16 %v712
        %v1052 = vunpack.c.h.b16 %v712
        %v1053 = vunpack.c.l.b16 %v713
        %v1054 = vunpack.c.h.b16 %v713
        %v1055 = vunpack.c.l.b16 %v714
        %v1056 = vunpack.c.h.b16 %v714
        %v1057 = vunpack.c.l.b16 %v715
        %v1058 = vunpack.c.h.b16 %v715
        %v1059 = vunpack.c.l.b16 %v716
        %v1060 = vunpack.c.h.b16 %v716
        %v1061 = vunpack.c.l.b16 %v717
        %v1062 = vunpack.c.h.b16 %v717
        %v1063 = vunpack.c.l.b16 %v718
        %v1064 = vunpack.c.h.b16 %v718
        %v1065 = vunpack.c.l.b16 %v719
        %v1066 = vunpack.c.h.b16 %v719
        %v1067 = vunpack.c.l.b16 %v720
        %v1068 = vunpack.c.h.b16 %v720
        %v1069 = vunpack.c.l.b16 %v721
        %v1070 = vunpack.c.h.b16 %v721
        %v1071 = vunpack.c.l.b16 %v722
        %v1072 = vunpack.c.h.b16 %v722
        %v1073 = vunpack.c.l.b16 %v723
        %v1074 = vunpack.c.h.b16 %v723
        %v1075 = vunpack.c.l.b16 %v724
        %v1076 = vunpack.c.h.b16 %v724
        %v1077 = vunpack.c.l.b16 %v725
        %v1078 = vunpack.c.h.b16 %v725
        %v1079 = vunpack.c.l.b16 %v726
        %v1080 = vunpack.c.h.b16 %v726
        %v1081 = vunpack.c.l.b16 %v727
        %v1082 = vunpack.c.h.b16 %v727
        %v1083 = vunpack.c.l.b16 %v728
        %v1084 = vunpack.c.h.b16 %v728
        %v1085 = vunpack.c.l.b16 %v729
        %v1086 = vunpack.c.h.b16 %v729
        %v1087 = vunpack.c.l.b16 %v730
        %v1088 = vunpack.c.h.b16 %v730
        %v1089 = vunpack.c.l.b16 %v731
        %v1090 = vunpack.c.h.b16 %v731
        %v1091 = vunpack.c.l.b16 %v732
        %v1092 = vunpack.c.h.b16 %v732
        %v1093 = vunpack.c.l.b16 %v733
        %v1094 = vunpack.c.h.b16 %v733
        %v1095 = vunpack.c.l.b16 %v734
        %v1096 = vunpack.c.h.b16 %v734
        %v1097 = vunpack.c.l.b16 %v735
        %v1098 = vunpack.c.h.b16 %v735
        %v1099 = vunpack.c.l.b16 %v736
        %v1100 = vunpack.c.h.b16 %v736
        %v1101 = vunpack.c.l.b16 %v737
        %v1102 = vunpack.c.h.b16 %v737
        %v1103 = vunpack.c.l.b16 %v738
        %v1104 = vunpack.c.h.b16 %v738
        %v1105 = vunpack.c.l.b16 %v739
        %v1106 = vunpack.c.h.b16 %v739
        %v1107 = vunpack.c.l.b16 %v740
        %v1108 = vunpack.c.h.b16 %v740
        %v1109 = vunpack.c.l.b16 %v741
        %v1110 = vunpack.c.h.b16 %v741
        %v1111 = vunpack.c.l.b16 %v742
        %v1112 = vunpack.c.h.b16 %v742
        %v1113 = vunpack.c.l.b16 %v743
        %v1114 = vunpack.c.h.b16 %v743
        %v1115 = vunpack.c.l.b16 %v744
        %v1116 = vunpack.c.h.b16 %v744
        %v1117 = vunpack.c.l.b16 %v745
        %v1118 = vunpack.c.h.b16 %v745
        %v1119 = vunpack.c.l.b16 %v746
        %v1120 = vunpack.c.h.b16 %v746
        %v1121 = vunpack.c.l.b16 %v747
        %v1122 = vunpack.c.h.b16 %v747
        %v1123 = vunpack.c.l.b16 %v748
        %v1124 = vunpack.c.h.b16 %v748
        %v1125 = vunpack.c.l.b16 %v749
        %v1126 = vunpack.c.h.b16 %v749
        %v1127 = vunpack.c.l.b16 %v750
        %v1128 = vunpack.c.h.b16 %v750
        %v1129 = vunpack.c.l.b16 %v751
        %v1130 = vunpack.c.h.b16 %v751
        %v1131 = vunpack.c.l.b16 %v752
        %v1132 = vunpack.c.h.b16 %v752
        %v1133 = vunpack.c.l.b16 %v753
        %v1134 = vunpack.c.h.b16 %v753
        %v1135 = vunpack.c.l.b16 %v754
        %v1136 = vunpack.c.h.b16 %v754
        %v1137 = vunpack.c.l.b16 %v755
        %v1138 = vunpack.c.h.b16 %v755
        %v1139 = vunpack.c.l.b16 %v756
        %v1140 = vunpack.c.h.b16 %v756
        %v1141 = vunpack.c.l.b16 %v757
        %v1142 = vunpack.c.h.b16 %v757
        %v1143 = vunpack.c.l.b16 %v758
        %v1144 = vunpack.c.h.b16 %v758
        %v1145 = vunpack.c.l.b16 %v759
        %v1146 = vunpack.c.h.b16 %v759
        %v1147 = vunpack.c.l.b16 %v760
        %v1148 = vunpack.c.h.b16 %v760
        %v1149 = vunpack.c.l.b16 %v761
        %v1150 = vunpack.c.h.b16 %v761
        %v1151 = vunpack.c.l.b16 %v762
        %v1152 = vunpack.c.h.b16 %v762
        %v1153 = vunpack.c.l.b16 %v763
        %v1154 = vunpack.c.h.b16 %v763
        %v1155 = vunpack.c.l.b16 %v764
        %v1156 = vunpack.c.h.b16 %v764
        %v1157 = vunpack.c.l.b16 %v765
        %v1158 = vunpack.c.h.b16 %v765
        %v1159 = vunpack.c.l.b16 %v766
        %v1160 = vunpack.c.h.b16 %v766
        %v1161 = vpack.c.b16 %v909, %v905
        %v1162 = vpack.c.b16 %v910, %v906
        %v1163 = vpack.c.b16 %v911, %v907
        %v1164 = vpack.c.b16 %v912, %v908
        %v1165 = vpack.c.b16 %v917, %v913
        %v1166 = vpack.c.b16 %v918, %v914
        %v1167 = vpack.c.b16 %v919, %v915
        %v1168 = vpack.c.b16 %v920, %v916
        %v1169 = vpack.c.b16 %v925, %v921
        %v1170 = vpack.c.b16 %v926, %v922
        %v1171 = vpack.c.b16 %v927, %v923
        %v1172 = vpack.c.b16 %v928, %v924
        %v1173 = vpack.c.b16 %v933, %v929
        %v1174 = vpack.c.b16 %v934, %v930
        %v1175 = vpack.c.b16 %v935, %v931
        %v1176 = vpack.c.b16 %v936, %v932
        %v1177 = vpack.c.b16 %v941, %v937
        %v1178 = vpack.c.b16 %v942, %v938
        %v1179 = vpack.c.b16 %v943, %v939
        %v1180 = vpack.c.b16 %v944, %v940
        %v1181 = vpack.c.b16 %v949, %v945
        %v1182 = vpack.c.b16 %v950, %v946
        %v1183 = vpack.c.b16 %v951, %v947
        %v1184 = vpack.c.b16 %v952, %v948
        %v1185 = vpack.c.b16 %v957, %v953
        %v1186 = vpack.c.b16 %v958, %v954
        %v1187 = vpack.c.b16 %v959, %v955
        %v1188 = vpack.c.b16 %v960, %v956
        %v1189 = vpack.c.b16 %v965, %v961
        %v1190 = vpack.c.b16 %v966, %v962
        %v1191 = vpack.c.b16 %v967, %v963
        %v1192 = vpack.c.b16 %v968, %v964
        %v1193 = vpack.c.b16 %v973, %v969
        %v1194 = vpack.c.b16 %v974, %v970
        %v1195 = vpack.c.b16 %v975, %v971
        %v1196 = vpack.c.b16 %v976, %v972
        %v1197 = vpack.c.b16 %v981, %v977
        %v1198 = vpack.c.b16 %v982, %v978
        %v1199 = vpack.c.b16 %v983, %v979
        %v1200 = vpack.c.b16 %v984, %v980
        %v1201 = vpack.c.b16 %v989, %v985
        %v1202 = vpack.c.b16 %v990, %v986
        %v1203 = vpack.c.b16 %v991, %v987
        %v1204 = vpack.c.b16 %v992, %v988
        %v1205 = vpack.c.b16 %v997, %v993
        %v1206 = vpack.c.b16 %v998, %v994
        %v1207 = vpack.c.b16 %v999, %v995
        %v1208 = vpack.c.b16 %v1000, %v996
        %v1209 = vpack.c.b16 %v1005, %v1001
        %v1210 = vpack.c.b16 %v1006, %v1002
        %v1211 = vpack.c.b16 %v1007, %v1003
        %v1212 = vpack.c.b16 %v1008, %v1004
        %v1213 = vpack.c.b16 %v1013, %v1009
        %v1214 = vpack.c.b16 %v1014, %v1010
        %v1215 = vpack.c.b16 %v1015, %v1011
        %v1216 = vpack.c.b16 %v1016, %v1012
        %v1217 = vpack.c.b16 %v1021, %v1017
        %v1218 = vpack.c.b16 %v1022, %v1018
        %v1219 = vpack.c.b16 %v1023, %v1019
        %v1220 = vpack.c.b16 %v1024, %v1020
        %v1221 = vpack.c.b16 %v1029, %v1025
        %v1222 = vpack.c.b16 %v1030, %v1026
        %v1223 = vpack.c.b16 %v1031, %v1027
        %v1224 = vpack.c.b16 %v1032, %v1028
        %v1225 = vpack.c.b16 %v1037, %v1033
        %v1226 = vpack.c.b16 %v1038, %v1034
        %v1227 = vpack.c.b16 %v1039, %v1035
        %v1228 = vpack.c.b16 %v1040, %v1036
        %v1229 = vpack.c.b16 %v1045, %v1041
        %v1230 = vpack.c.b16 %v1046, %v1042
        %v1231 = vpack.c.b16 %v1047, %v1043
        %v1232 = vpack.c.b16 %v1048, %v1044
        %v1233 = vpack.c.b16 %v1053, %v1049
        %v1234 = vpack.c.b16 %v1054, %v1050
        %v1235 = vpack.c.b16 %v1055, %v1051
        %v1236 = vpack.c.b16 %v1056, %v1052
        %v1237 = vpack.c.b16 %v1061, %v1057
        %v1238 = vpack.c.b16 %v1062, %v1058
        %v1239 = vpack.c.b16 %v1063, %v1059
        %v1240 = vpack.c.b16 %v1064, %v1060
        %v1241 = vpack.c.b16 %v1069, %v1065
        %v1242 = vpack.c.b16 %v1070, %v1066
        %v1243 = vpack.c.b16 %v1071, %v1067
        %v1244 = vpack.c.b16 %v1072, %v1068
        %v1245 = vpack.c.b16 %v1077, %v1073
        %v1246 = vpack.c.b16 %v1078, %v1074
        %v1247 = vpack.c.b16 %v1079, %v1075
        %v1248 = vpack.c.b16 %v1080, %v1076
        %v1249 = vpack.c.b16 %v1085, %v1081
        %v1250 = vpack.c.b16 %v1086, %v1082
        %v1251 = vpack.c.b16 %v1087, %v1083
        %v1252 = vpack.c.b16 %v1088, %v1084
        %v1253 = vpack.c.b16 %v1093, %v1089
        %v1254 = vpack.c.b16 %v1094, %v1090
        %v1255 = vpack.c.b16 %v1095, %v1091
        %v1256 = vpack.c.b16 %v1096, %v1092
        %v1257 = vpack.c.b16 %v1101, %v1097
        %v1258 = vpack.c.b16 %v1102, %v1098
        %v1259 = vpack.c.b16 %v1103, %v1099
        %v1260 = vpack.c.b16 %v1104, %v1100
        %v1261 = vpack.c.b16 %v1109, %v1105
        %v1262 = vpack.c.b16 %v1110, %v1106
        %v1263 = vpack.c.b16 %v1111, %v1107
        %v1264 = vpack.c.b16 %v1112, %v1108
        %v1265 = vpack.c.b16 %v1117, %v1113
        %v1266 = vpack.c.b16 %v1118, %v1114
        %v1267 = vpack.c.b16 %v1119, %v1115
        %v1268 = vpack.c.b16 %v1120, %v1116
        %v1269 = vpack.c.b16 %v1125, %v1121
        %v1270 = vpack.c.b16 %v1126, %v1122
        %v1271 = vpack.c.b16 %v1127, %v1123
        %v1272 = vpack.c.b16 %v1128, %v1124
        %v1273 = vpack.c.b16 %v1133, %v1129
        %v1274 = vpack.c.b16 %v1134, %v1130
        %v1275 = vpack.c.b16 %v1135, %v1131
        %v1276 = vpack.c.b16 %v1136, %v1132
        %v1277 = vpack.c.b16 %v1141, %v1137
        %v1278 = vpack.c.b16 %v1142, %v1138
        %v1279 = vpack.c.b16 %v1143, %v1139
        %v1280 = vpack.c.b16 %v1144, %v1140
        %v1281 = vpack.c.b16 %v1149, %v1145
        %v1282 = vpack.c.b16 %v1150, %v1146
        %v1283 = vpack.c.b16 %v1151, %v1147
        %v1284 = vpack.c.b16 %v1152, %v1148
        %v1285 = vpack.c.b16 %v1157, %v1153
        %v1286 = vpack.c.b16 %v1158, %v1154
        %v1287 = vpack.c.b16 %v1159, %v1155
        %v1288 = vpack.c.b16 %v1160, %v1156
        %1417 = vmatpush.bf16.msra.mxu0 %v1189
        %1418 = vmatpush.bf16.msra.mxu0 %v1185
        %1419 = vmatpush.bf16.msra.mxu0 %v1181
        %1420 = vmatpush.bf16.msra.mxu0 %v1177
        %1421 = vmatpush.bf16.msra.mxu0 %v1173
        %1422 = vmatpush.bf16.msra.mxu0 %v1169
        %1423 = vmatpush.bf16.msra.mxu0 %v1165
        %1424 = vmatpush.bf16.msra.mxu0 %v1161
        %1425 = vmatmul.bf16.gmra.mxu0 %v635
        %v1426 = vpop.f32.mrf.mxu0
        %v1427 = vadd.f32 %v769, %v1426
        %v1428 = vpop.f32.mrf.mxu0
        %1429 = vdwg.mxu0
        %1430 = vmatpush.bf16.msra.mxu0 %v1221
        %1431 = vmatpush.bf16.msra.mxu0 %v1217
        %1432 = vmatpush.bf16.msra.mxu0 %v1213
        %1433 = vmatpush.bf16.msra.mxu0 %v1209
        %1434 = vmatpush.bf16.msra.mxu0 %v1205
        %1435 = vmatpush.bf16.msra.mxu0 %v1201
        %1436 = vmatpush.bf16.msra.mxu0 %v1197
        %1437 = vmatpush.bf16.msra.mxu0 %v1193
        %1438 = vmatmul.bf16.gmra.mxu0 %v636
        %v1439 = vpop.f32.mrf.mxu0
        %v1440 = vadd.f32 %v1427, %v1439
        %v1441 = vpop.f32.mrf.mxu0
        %1442 = vdwg.mxu0
        %1443 = vmatpush.bf16.msra.mxu0 %v1253
        %1444 = vmatpush.bf16.msra.mxu0 %v1249
        %1445 = vmatpush.bf16.msra.mxu0 %v1245
        %1446 = vmatpush.bf16.msra.mxu0 %v1241
        %1447 = vmatpush.bf16.msra.mxu0 %v1237
        %1448 = vmatpush.bf16.msra.mxu0 %v1233
        %1449 = vmatpush.bf16.msra.mxu0 %v1229
        %1450 = vmatpush.bf16.msra.mxu0 %v1225
        %1451 = vmatmul.bf16.gmra.mxu0 %v637
        %v1452 = vpop.f32.mrf.mxu0
        %v1453 = vadd.f32 %v1440, %v1452
        %v1454 = vpop.f32.mrf.mxu0
        %1455 = vdwg.mxu0
        %1456 = vmatpush.bf16.msra.mxu0 %v1285
        %1457 = vmatpush.bf16.msra.mxu0 %v1281
        %1458 = vmatpush.bf16.msra.mxu0 %v1277
        %1459 = vmatpush.bf16.msra.mxu0 %v1273
        %1460 = vmatpush.bf16.msra.mxu0 %v1269
        %1461 = vmatpush.bf16.msra.mxu0 %v1265
        %1462 = vmatpush.bf16.msra.mxu0 %v1261
        %1463 = vmatpush.bf16.msra.mxu0 %v1257
        %1464 = vmatmul.bf16.gmra.mxu0 %v638
        %v1465 = vpop.f32.mrf.mxu0
        %v1466 = vadd.f32 %v1453, %v1465
        %v1467 = vpop.f32.mrf.mxu0
        %1468 = vdwg.mxu0
        %1469 = vmatpush.bf16.msra.mxu0 %v1190
        %1470 = vmatpush.bf16.msra.mxu0 %v1186
        %1471 = vmatpush.bf16.msra.mxu0 %v1182
        %1472 = vmatpush.bf16.msra.mxu0 %v1178
        %1473 = vmatpush.bf16.msra.mxu0 %v1174
        %1474 = vmatpush.bf16.msra.mxu0 %v1170
        %1475 = vmatpush.bf16.msra.mxu0 %v1166
        %1476 = vmatpush.bf16.msra.mxu0 %v1162
        %1477 = vmatmul.bf16.gmra.mxu0 %v635
        %v1478 = vpop.f32.mrf.mxu0
        %v1479 = vadd.f32 %v770, %v1478
        %v1480 = vpop.f32.mrf.mxu0
        %1481 = vdwg.mxu0
        %1482 = vmatpush.bf16.msra.mxu0 %v1222
        %1483 = vmatpush.bf16.msra.mxu0 %v1218
        %1484 = vmatpush.bf16.msra.mxu0 %v1214
        %1485 = vmatpush.bf16.msra.mxu0 %v1210
        %1486 = vmatpush.bf16.msra.mxu0 %v1206
        %1487 = vmatpush.bf16.msra.mxu0 %v1202
        %1488 = vmatpush.bf16.msra.mxu0 %v1198
        %1489 = vmatpush.bf16.msra.mxu0 %v1194
        %1490 = vmatmul.bf16.gmra.mxu0 %v636
        %v1491 = vpop.f32.mrf.mxu0
        %v1492 = vadd.f32 %v1479, %v1491
        %v1493 = vpop.f32.mrf.mxu0
        %1494 = vdwg.mxu0
        %1495 = vmatpush.bf16.msra.mxu0 %v1254
        %1496 = vmatpush.bf16.msra.mxu0 %v1250
        %1497 = vmatpush.bf16.msra.mxu0 %v1246
        %1498 = vmatpush.bf16.msra.mxu0 %v1242
        %1499 = vmatpush.bf16.msra.mxu0 %v1238
        %1500 = vmatpush.bf16.msra.mxu0 %v1234
        %1501 = vmatpush.bf16.msra.mxu0 %v1230
        %1502 = vmatpush.bf16.msra.mxu0 %v1226
        %1503 = vmatmul.bf16.gmra.mxu0 %v637
        %v1504 = vpop.f32.mrf.mxu0
        %v1505 = vadd.f32 %v1492, %v1504
        %v1506 = vpop.f32.mrf.mxu0
        %1507 = vdwg.mxu0
        %1508 = vmatpush.bf16.msra.mxu0 %v1286
        %1509 = vmatpush.bf16.msra.mxu0 %v1282
        %1510 = vmatpush.bf16.msra.mxu0 %v1278
        %1511 = vmatpush.bf16.msra.mxu0 %v1274
        %1512 = vmatpush.bf16.msra.mxu0 %v1270
        %1513 = vmatpush.bf16.msra.mxu0 %v1266
        %1514 = vmatpush.bf16.msra.mxu0 %v1262
        %1515 = vmatpush.bf16.msra.mxu0 %v1258
        %1516 = vmatmul.bf16.gmra.mxu0 %v638
        %v1517 = vpop.f32.mrf.mxu0
        %v1518 = vadd.f32 %v1505, %v1517
        %v1519 = vpop.f32.mrf.mxu0
        %1520 = vdwg.mxu0
        %1521 = vmatpush.bf16.msra.mxu0 %v1191
        %1522 = vmatpush.bf16.msra.mxu0 %v1187
        %1523 = vmatpush.bf16.msra.mxu0 %v1183
        %1524 = vmatpush.bf16.msra.mxu0 %v1179
        %1525 = vmatpush.bf16.msra.mxu0 %v1175
        %1526 = vmatpush.bf16.msra.mxu0 %v1171
        %1527 = vmatpush.bf16.msra.mxu0 %v1167
        %1528 = vmatpush.bf16.msra.mxu0 %v1163
        %1529 = vmatmul.bf16.gmra.mxu0 %v635
        %v1530 = vpop.f32.mrf.mxu0
        %v1531 = vadd.f32 %v771, %v1530
        %v1532 = vpop.f32.mrf.mxu0
        %1533 = vdwg.mxu0
        %1534 = vmatpush.bf16.msra.mxu0 %v1223
        %1535 = vmatpush.bf16.msra.mxu0 %v1219
        %1536 = vmatpush.bf16.msra.mxu0 %v1215
        %1537 = vmatpush.bf16.msra.mxu0 %v1211
        %1538 = vmatpush.bf16.msra.mxu0 %v1207
        %1539 = vmatpush.bf16.msra.mxu0 %v1203
        %1540 = vmatpush.bf16.msra.mxu0 %v1199
        %1541 = vmatpush.bf16.msra.mxu0 %v1195
        %1542 = vmatmul.bf16.gmra.mxu0 %v636
        %v1543 = vpop.f32.mrf.mxu0
        %v1544 = vadd.f32 %v1531, %v1543
        %v1545 = vpop.f32.mrf.mxu0
        %1546 = vdwg.mxu0
        %1547 = vmatpush.bf16.msra.mxu0 %v1255
        %1548 = vmatpush.bf16.msra.mxu0 %v1251
        %1549 = vmatpush.bf16.msra.mxu0 %v1247
        %1550 = vmatpush.bf16.msra.mxu0 %v1243
        %1551 = vmatpush.bf16.msra.mxu0 %v1239
        %1552 = vmatpush.bf16.msra.mxu0 %v1235
        %1553 = vmatpush.bf16.msra.mxu0 %v1231
        %1554 = vmatpush.bf16.msra.mxu0 %v1227
        %1555 = vmatmul.bf16.gmra.mxu0 %v637
        %v1556 = vpop.f32.mrf.mxu0
        %v1557 = vadd.f32 %v1544, %v1556
        %v1558 = vpop.f32.mrf.mxu0
        %1559 = vdwg.mxu0
        %1560 = vmatpush.bf16.msra.mxu0 %v1287
        %1561 = vmatpush.bf16.msra.mxu0 %v1283
        %1562 = vmatpush.bf16.msra.mxu0 %v1279
        %1563 = vmatpush.bf16.msra.mxu0 %v1275
        %1564 = vmatpush.bf16.msra.mxu0 %v1271
        %1565 = vmatpush.bf16.msra.mxu0 %v1267
        %1566 = vmatpush.bf16.msra.mxu0 %v1263
        %1567 = vmatpush.bf16.msra.mxu0 %v1259
        %1568 = vmatmul.bf16.gmra.mxu0 %v638
        %v1569 = vpop.f32.mrf.mxu0
        %v1570 = vadd.f32 %v1557, %v1569
        %v1571 = vpop.f32.mrf.mxu0
        %1572 = vdwg.mxu0
        %1573 = vmatpush.bf16.msra.mxu0 %v1192
        %1574 = vmatpush.bf16.msra.mxu0 %v1188
        %1575 = vmatpush.bf16.msra.mxu0 %v1184
        %1576 = vmatpush.bf16.msra.mxu0 %v1180
        %1577 = vmatpush.bf16.msra.mxu0 %v1176
        %1578 = vmatpush.bf16.msra.mxu0 %v1172
        %1579 = vmatpush.bf16.msra.mxu0 %v1168
        %1580 = vmatpush.bf16.msra.mxu0 %v1164
        %1581 = vmatmul.bf16.gmra.mxu0 %v635
        %v1582 = vpop.f32.mrf.mxu0
        %v1583 = vadd.f32 %v772, %v1582
        %v1584 = vpop.f32.mrf.mxu0
        %1585 = vdwg.mxu0
        %1586 = vmatpush.bf16.msra.mxu0 %v1224
        %1587 = vmatpush.bf16.msra.mxu0 %v1220
        %1588 = vmatpush.bf16.msra.mxu0 %v1216
        %1589 = vmatpush.bf16.msra.mxu0 %v1212
        %1590 = vmatpush.bf16.msra.mxu0 %v1208
        %1591 = vmatpush.bf16.msra.mxu0 %v1204
        %1592 = vmatpush.bf16.msra.mxu0 %v1200
        %1593 = vmatpush.bf16.msra.mxu0 %v1196
        %1594 = vmatmul.bf16.gmra.mxu0 %v636
        %v1595 = vpop.f32.mrf.mxu0
        %v1596 = vadd.f32 %v1583, %v1595
        %v1597 = vpop.f32.mrf.mxu0
        %1598 = vdwg.mxu0
        %1599 = vmatpush.bf16.msra.mxu0 %v1256
        %1600 = vmatpush.bf16.msra.mxu0 %v1252
        %1601 = vmatpush.bf16.msra.mxu0 %v1248
        %1602 = vmatpush.bf16.msra.mxu0 %v1244
        %1603 = vmatpush.bf16.msra.mxu0 %v1240
        %1604 = vmatpush.bf16.msra.mxu0 %v1236
        %1605 = vmatpush.bf16.msra.mxu0 %v1232
        %1606 = vmatpush.bf16.msra.mxu0 %v1228
        %1607 = vmatmul.bf16.gmra.mxu0 %v637
        %v1608 = vpop.f32.mrf.mxu0
        %v1609 = vadd.f32 %v1596, %v1608
        %v1610 = vpop.f32.mrf.mxu0
        %1611 = vdwg.mxu0
        %1612 = vmatpush.bf16.msra.mxu0 %v1288
        %1613 = vmatpush.bf16.msra.mxu0 %v1284
        %1614 = vmatpush.bf16.msra.mxu0 %v1280
        %1615 = vmatpush.bf16.msra.mxu0 %v1276
        %1616 = vmatpush.bf16.msra.mxu0 %v1272
        %1617 = vmatpush.bf16.msra.mxu0 %v1268
        %1618 = vmatpush.bf16.msra.mxu0 %v1264
        %1619 = vmatpush.bf16.msra.mxu0 %v1260
        %1620 = vmatmul.bf16.gmra.mxu0 %v638
        %v1621 = vpop.f32.mrf.mxu0
        %v1622 = vadd.f32 %v1609, %v1621
        %v1623 = vpop.f32.mrf.mxu0
        %1624 = vdwg.mxu0
        %v1625 = vmax.f32 %v1466, 0.0
        %v1626 = vmax.f32 %v1518, 0.0
        %v1627 = vmax.f32 %v1570, 0.0
        %v1628 = vmax.f32 %v1622, 0.0
        %v1629 = vpack.c.bf16 %v1625, %v1625
        %v1630 = vpack.c.bf16 %v1626, %v1626
        %v1631 = vpack.c.bf16 %v1627, %v1627
        %v1632 = vpack.c.bf16 %v1628, %v1628
        %v1633 = vld [vmem:[#allocation11] sm:$0xf]
        %v1634 = vld [vmem:[#allocation11 + $0x4] sm:$0xf]
        %v1635 = vld [vmem:[#allocation11 + $0x8] sm:$0xf]
        %v1636 = vld [vmem:[#allocation11 + $0xc] sm:$0xf]
        %v1637 = vld [vmem:[#allocation11 + $0x10] sm:$0xf]
        %v1638 = vld [vmem:[#allocation11 + $0x14] sm:$0xf]
        %v1639 = vld [vmem:[#allocation11 + $0x18] sm:$0xf]
        %v1640 = vld [vmem:[#allocation11 + $0x1c] sm:$0xf]
        %v1641 = vld [vmem:[#allocation11 + $0x20] sm:$0xf]
        %v1642 = vld [vmem:[#allocation11 + $0x24] sm:$0xf]
        %v1643 = vld [vmem:[#allocation11 + $0x28] sm:$0xf]
        %v1644 = vld [vmem:[#allocation11 + $0x2c] sm:$0xf]
        %v1645 = vld [vmem:[#allocation11 + $0x30] sm:$0xf]
        %v1646 = vld [vmem:[#allocation11 + $0x34] sm:$0xf]
        %v1647 = vld [vmem:[#allocation11 + $0x38] sm:$0xf]
        %v1648 = vld [vmem:[#allocation11 + $0x3c] sm:$0xf]
        %v1649 = vld [vmem:[#allocation11 + $0x40] sm:$0xf]
        %v1650 = vld [vmem:[#allocation11 + $0x44] sm:$0xf]
        %v1651 = vld [vmem:[#allocation11 + $0x48] sm:$0xf]
        %v1652 = vld [vmem:[#allocation11 + $0x4c] sm:$0xf]
        %v1653 = vld [vmem:[#allocation11 + $0x50] sm:$0xf]
        %v1654 = vld [vmem:[#allocation11 + $0x54] sm:$0xf]
        %v1655 = vld [vmem:[#allocation11 + $0x58] sm:$0xf]
        %v1656 = vld [vmem:[#allocation11 + $0x5c] sm:$0xf]
        %v1657 = vld [vmem:[#allocation11 + $0x60] sm:$0xf]
        %v1658 = vld [vmem:[#allocation11 + $0x64] sm:$0xf]
        %v1659 = vld [vmem:[#allocation11 + $0x68] sm:$0xf]
        %v1660 = vld [vmem:[#allocation11 + $0x6c] sm:$0xf]
        %v1661 = vld [vmem:[#allocation11 + $0x70] sm:$0xf]
        %v1662 = vld [vmem:[#allocation11 + $0x74] sm:$0xf]
        %v1663 = vld [vmem:[#allocation11 + $0x78] sm:$0xf]
        %v1664 = vld [vmem:[#allocation11 + $0x7c] sm:$0xf]
        %v1665 = vld [vmem:[#allocation11 + $0x80] sm:$0xf]
        %v1666 = vld [vmem:[#allocation11 + $0x84] sm:$0xf]
        %v1667 = vld [vmem:[#allocation11 + $0x88] sm:$0xf]
        %v1668 = vld [vmem:[#allocation11 + $0x8c] sm:$0xf]
        %v1669 = vld [vmem:[#allocation11 + $0x90] sm:$0xf]
        %v1670 = vld [vmem:[#allocation11 + $0x94] sm:$0xf]
        %v1671 = vld [vmem:[#allocation11 + $0x98] sm:$0xf]
        %v1672 = vld [vmem:[#allocation11 + $0x9c] sm:$0xf]
        %v1673 = vld [vmem:[#allocation11 + $0xa0] sm:$0xf]
        %v1674 = vld [vmem:[#allocation11 + $0xa4] sm:$0xf]
        %v1675 = vld [vmem:[#allocation11 + $0xa8] sm:$0xf]
        %v1676 = vld [vmem:[#allocation11 + $0xac] sm:$0xf]
        %v1677 = vld [vmem:[#allocation11 + $0xb0] sm:$0xf]
        %v1678 = vld [vmem:[#allocation11 + $0xb4] sm:$0xf]
        %v1679 = vld [vmem:[#allocation11 + $0xb8] sm:$0xf]
        %v1680 = vld [vmem:[#allocation11 + $0xbc] sm:$0xf]
        %v1681 = vld [vmem:[#allocation11 + $0xc0] sm:$0xf]
        %v1682 = vld [vmem:[#allocation11 + $0xc4] sm:$0xf]
        %v1683 = vld [vmem:[#allocation11 + $0xc8] sm:$0xf]
        %v1684 = vld [vmem:[#allocation11 + $0xcc] sm:$0xf]
        %v1685 = vld [vmem:[#allocation11 + $0xd0] sm:$0xf]
        %v1686 = vld [vmem:[#allocation11 + $0xd4] sm:$0xf]
        %v1687 = vld [vmem:[#allocation11 + $0xd8] sm:$0xf]
        %v1688 = vld [vmem:[#allocation11 + $0xdc] sm:$0xf]
        %v1689 = vld [vmem:[#allocation11 + $0xe0] sm:$0xf]
        %v1690 = vld [vmem:[#allocation11 + $0xe4] sm:$0xf]
        %v1691 = vld [vmem:[#allocation11 + $0xe8] sm:$0xf]
        %v1692 = vld [vmem:[#allocation11 + $0xec] sm:$0xf]
        %v1693 = vld [vmem:[#allocation11 + $0xf0] sm:$0xf]
        %v1694 = vld [vmem:[#allocation11 + $0xf4] sm:$0xf]
        %v1695 = vld [vmem:[#allocation11 + $0xf8] sm:$0xf]
        %v1696 = vld [vmem:[#allocation11 + $0xfc] sm:$0xf]
        %v1697 = vld [vmem:[%s6] sm:$0x1]
        %v1699 = vperm.slane %v1697, 0
        %v1765 = vunpack.c.l.b16 %v1633
        %v1766 = vunpack.c.l.b16 %v1634
        %v1767 = vunpack.c.l.b16 %v1635
        %v1768 = vunpack.c.l.b16 %v1636
        %v1769 = vunpack.c.l.b16 %v1637
        %v1770 = vunpack.c.l.b16 %v1638
        %v1771 = vunpack.c.l.b16 %v1639
        %v1772 = vunpack.c.l.b16 %v1640
        %v1773 = vunpack.c.l.b16 %v1641
        %v1774 = vunpack.c.l.b16 %v1642
        %v1775 = vunpack.c.l.b16 %v1643
        %v1776 = vunpack.c.l.b16 %v1644
        %v1777 = vunpack.c.l.b16 %v1645
        %v1778 = vunpack.c.l.b16 %v1646
        %v1779 = vunpack.c.l.b16 %v1647
        %v1780 = vunpack.c.l.b16 %v1648
        %v1781 = vunpack.c.l.b16 %v1649
        %v1782 = vunpack.c.l.b16 %v1650
        %v1783 = vunpack.c.l.b16 %v1651
        %v1784 = vunpack.c.l.b16 %v1652
        %v1785 = vunpack.c.l.b16 %v1653
        %v1786 = vunpack.c.l.b16 %v1654
        %v1787 = vunpack.c.l.b16 %v1655
        %v1788 = vunpack.c.l.b16 %v1656
        %v1789 = vunpack.c.l.b16 %v1657
        %v1790 = vunpack.c.l.b16 %v1658
        %v1791 = vunpack.c.l.b16 %v1659
        %v1792 = vunpack.c.l.b16 %v1660
        %v1793 = vunpack.c.l.b16 %v1661
        %v1794 = vunpack.c.l.b16 %v1662
        %v1795 = vunpack.c.l.b16 %v1663
        %v1796 = vunpack.c.l.b16 %v1664
        %v1797 = vunpack.c.l.b16 %v1665
        %v1798 = vunpack.c.l.b16 %v1666
        %v1799 = vunpack.c.l.b16 %v1667
        %v1800 = vunpack.c.l.b16 %v1668
        %v1801 = vunpack.c.l.b16 %v1669
        %v1802 = vunpack.c.l.b16 %v1670
        %v1803 = vunpack.c.l.b16 %v1671
        %v1804 = vunpack.c.l.b16 %v1672
        %v1805 = vunpack.c.l.b16 %v1673
        %v1806 = vunpack.c.l.b16 %v1674
        %v1807 = vunpack.c.l.b16 %v1675
        %v1808 = vunpack.c.l.b16 %v1676
        %v1809 = vunpack.c.l.b16 %v1677
        %v1810 = vunpack.c.l.b16 %v1678
        %v1811 = vunpack.c.l.b16 %v1679
        %v1812 = vunpack.c.l.b16 %v1680
        %v1813 = vunpack.c.l.b16 %v1681
        %v1814 = vunpack.c.l.b16 %v1682
        %v1815 = vunpack.c.l.b16 %v1683
        %v1816 = vunpack.c.l.b16 %v1684
        %v1817 = vunpack.c.l.b16 %v1685
        %v1818 = vunpack.c.l.b16 %v1686
        %v1819 = vunpack.c.l.b16 %v1687
        %v1820 = vunpack.c.l.b16 %v1688
        %v1821 = vunpack.c.l.b16 %v1689
        %v1822 = vunpack.c.l.b16 %v1690
        %v1823 = vunpack.c.l.b16 %v1691
        %v1824 = vunpack.c.l.b16 %v1692
        %v1825 = vunpack.c.l.b16 %v1693
        %v1826 = vunpack.c.l.b16 %v1694
        %v1827 = vunpack.c.l.b16 %v1695
        %v1828 = vunpack.c.l.b16 %v1696
        %v1829 = vpack.c.b16 %v1766, %v1765
        %v1830 = vpack.c.b16 %v1768, %v1767
        %v1831 = vpack.c.b16 %v1770, %v1769
        %v1832 = vpack.c.b16 %v1772, %v1771
        %v1833 = vpack.c.b16 %v1774, %v1773
        %v1834 = vpack.c.b16 %v1776, %v1775
        %v1835 = vpack.c.b16 %v1778, %v1777
        %v1836 = vpack.c.b16 %v1780, %v1779
        %v1837 = vpack.c.b16 %v1782, %v1781
        %v1838 = vpack.c.b16 %v1784, %v1783
        %v1839 = vpack.c.b16 %v1786, %v1785
        %v1840 = vpack.c.b16 %v1788, %v1787
        %v1841 = vpack.c.b16 %v1790, %v1789
        %v1842 = vpack.c.b16 %v1792, %v1791
        %v1843 = vpack.c.b16 %v1794, %v1793
        %v1844 = vpack.c.b16 %v1796, %v1795
        %v1845 = vpack.c.b16 %v1798, %v1797
        %v1846 = vpack.c.b16 %v1800, %v1799
        %v1847 = vpack.c.b16 %v1802, %v1801
        %v1848 = vpack.c.b16 %v1804, %v1803
        %v1849 = vpack.c.b16 %v1806, %v1805
        %v1850 = vpack.c.b16 %v1808, %v1807
        %v1851 = vpack.c.b16 %v1810, %v1809
        %v1852 = vpack.c.b16 %v1812, %v1811
        %v1853 = vpack.c.b16 %v1814, %v1813
        %v1854 = vpack.c.b16 %v1816, %v1815
        %v1855 = vpack.c.b16 %v1818, %v1817
        %v1856 = vpack.c.b16 %v1820, %v1819
        %v1857 = vpack.c.b16 %v1822, %v1821
        %v1858 = vpack.c.b16 %v1824, %v1823
        %v1859 = vpack.c.b16 %v1826, %v1825
        %v1860 = vpack.c.b16 %v1828, %v1827
        %1893 = vmatpush.bf16.msra.mxu0 %v1836
        %1894 = vmatpush.bf16.msra.mxu0 %v1835
        %1895 = vmatpush.bf16.msra.mxu0 %v1834
        %1896 = vmatpush.bf16.msra.mxu0 %v1833
        %1897 = vmatpush.bf16.msra.mxu0 %v1832
        %1898 = vmatpush.bf16.msra.mxu0 %v1831
        %1899 = vmatpush.bf16.msra.mxu0 %v1830
        %1900 = vmatpush.bf16.msra.mxu0 %v1829
        %1901 = vmatmul.bf16.gmra.mxu0 %v1629
        %v1902 = vpop.f32.mrf.mxu0
        %v1903 = vadd.f32 %v1699, %v1902
        %v1904 = vpop.f32.mrf.mxu0
        %1905 = vdwg.mxu0
        %1906 = vmatpush.bf16.msra.mxu0 %v1844
        %1907 = vmatpush.bf16.msra.mxu0 %v1843
        %1908 = vmatpush.bf16.msra.mxu0 %v1842
        %1909 = vmatpush.bf16.msra.mxu0 %v1841
        %1910 = vmatpush.bf16.msra.mxu0 %v1840
        %1911 = vmatpush.bf16.msra.mxu0 %v1839
        %1912 = vmatpush.bf16.msra.mxu0 %v1838
        %1913 = vmatpush.bf16.msra.mxu0 %v1837
        %1914 = vmatmul.bf16.gmra.mxu0 %v1630
        %v1915 = vpop.f32.mrf.mxu0
        %v1916 = vadd.f32 %v1903, %v1915
        %v1917 = vpop.f32.mrf.mxu0
        %1918 = vdwg.mxu0
        %1919 = vmatpush.bf16.msra.mxu0 %v1852
        %1920 = vmatpush.bf16.msra.mxu0 %v1851
        %1921 = vmatpush.bf16.msra.mxu0 %v1850
        %1922 = vmatpush.bf16.msra.mxu0 %v1849
        %1923 = vmatpush.bf16.msra.mxu0 %v1848
        %1924 = vmatpush.bf16.msra.mxu0 %v1847
        %1925 = vmatpush.bf16.msra.mxu0 %v1846
        %1926 = vmatpush.bf16.msra.mxu0 %v1845
        %1927 = vmatmul.bf16.gmra.mxu0 %v1631
        %v1928 = vpop.f32.mrf.mxu0
        %v1929 = vadd.f32 %v1916, %v1928
        %v1930 = vpop.f32.mrf.mxu0
        %1931 = vdwg.mxu0
        %1932 = vmatpush.bf16.msra.mxu0 %v1860
        %1933 = vmatpush.bf16.msra.mxu0 %v1859
        %1934 = vmatpush.bf16.msra.mxu0 %v1858
        %1935 = vmatpush.bf16.msra.mxu0 %v1857
        %1936 = vmatpush.bf16.msra.mxu0 %v1856
        %1937 = vmatpush.bf16.msra.mxu0 %v1855
        %1938 = vmatpush.bf16.msra.mxu0 %v1854
        %1939 = vmatpush.bf16.msra.mxu0 %v1853
        %1940 = vmatmul.bf16.gmra.mxu0 %v1632
        %v1941 = vpop.f32.mrf.mxu0
        %v1942 = vadd.f32 %v1929, %v1941
        %v1943 = vpop.f32.mrf.mxu0
        %1944 = vdwg.mxu0
        %v1945 = vtanh.pop %v1942
        %1946 = vst [vmem:[%s374] sm:$0xff] %v1945
        %s1947 = sand.u32 %s187, 1
        %s1948 = scalar_lea.sflag [#allocation4], %s1947
        %s1949 = sand.u32 %s187, 1
        %s1950 = smul.addr %s1949, 8
        %s1951 = scalar_lea.vmem [#allocation13], %s1950
        // Predicated region
        $region73: #{tpu_custom_call.1} parent=47 // pred_check
          %p1952 = pneg %p197
        $region74: #{tpu_custom_call.1} parent=47 // pred_check_branch
          %1954 = sbr.rel (%p1952) target = $region76
        $region75: #{tpu_custom_call.1} parent=47 // pred_region
          %1956 = vsyncadd %s1948, 0
          %s1957 = smul.addr %s27, 8
          %s1958 = scalar_lea.hbm %s7, %s1957
          %s1960 = sshll.u32 %s1951, 4
          %s1961 = int_to_ptr.vmem [resolvable:$true] %s1960
          %s1962 = sshll.u32 %s1958, 4
          %s1963 = int_to_ptr.hbm [resolvable:$true] %s1962
          %1965 = dma.vmem_to_hbm [thread:$0]  %s1961, 128, %s1963, %s1948
        $region76: #{tpu_custom_call.1} parent=47 // pred_fallthru
          _
      $region48: #{tpu_custom_call.1} parent=5 // pred_fallthru
        _
      %p1966 = scmp.le.s32.totalorder 2, %s22
      // Predicated region
      $region77: #{tpu_custom_call.1} parent=5 // pred_check
        %p1967 = pneg %p1966
      $region78: #{tpu_custom_call.1} parent=5 // pred_check_branch
        %1969 = sbr.rel (%p1967) target = $region80
      $region79: #{tpu_custom_call.1} parent=5 // pred_region
        %s1970 = ssub.s32 %s22, 2
        // Predicated region
        $region81: #{tpu_custom_call.1} parent=79 // pred_check
          %p1971 = pneg %p203
        $region82: #{tpu_custom_call.1} parent=79 // pred_check_branch
          %1973 = sbr.rel (%p1971) target = $region84
        $region83: #{tpu_custom_call.1} parent=79 // pred_region
          %s1974 = sand.u32 %s188, 1
          %s1975 = scalar_lea.sflag [#allocation4], %s1974
          %s1976 = sand.u32 %s188, 1
          %s1977 = smul.addr %s1976, 8
          %s1978 = scalar_lea.vmem [#allocation13], %s1977
          %1980 = dma.done %s1975, 128
        $region84: #{tpu_custom_call.1} parent=79 // pred_fallthru
          _
      $region80: #{tpu_custom_call.1} parent=5 // pred_fallthru
        _
    $region6: #{tpu_custom_call.1} parent=1 // loop_footer
      %s26 = sadd.s32 1, %s22
    $region7: #{tpu_custom_call.1} parent=1 // loop_footer_branch
      %21 = sbr.rel target = $region3
    $region8: #{tpu_custom_call.1} parent=1 // loop_exit
      _
    %1981 = vsyncpa [#allocation3], 1
    %s1982 = scalar_lea.sflag [#allocation3], 1
    %1983 = vsyncpa %s1982, 1
    %1984 = vsyncpa [#allocation6], 1
    %1985 = vsyncpa [#allocation9], 1
    %1986 = vsyncpa [#allocation12], 1
    %1987 = vsyncpa [#allocation4], 1
    %s1988 = scalar_lea.sflag [#allocation4], 1
    %1989 = vsyncpa %s1988, 1

// kernel: tpu_custom_call.1
$region0: #{tpu_custom_call.1}
  #allocation0 [shape = 'u32[]', space=smem, size = 0x4, offset = 0x4, fixed_abs, tag = 'smem constant byte address 0x4 - core index']
  #allocation1 [shape = 'u32[72,128]{1,0:T(1,128)}', space=vmem, size = 0x9000, scoped, tag = 'internal scratch']
  %s0 = inlined_call_operand.hbm [shape: f32[16,128], index: 0, kind: input, shape index: {}]
  %s1 = inlined_call_operand.hbm [shape: bf16[128,512], index: 1, kind: input, shape index: {}]
  %s2 = inlined_call_operand.hbm [shape: f32[1,512], index: 2, kind: input, shape index: {}]
  %s3 = inlined_call_operand.hbm [shape: bf16[512,512], index: 3, kind: input, shape index: {}]
  %s4 = inlined_call_operand.hbm [shape: f32[1,512], index: 4, kind: input, shape index: {}]
  %s5 = inlined_call_operand.hbm [shape: bf16[512,128], index: 5, kind: input, shape index: {}]
  %s6 = inlined_call_operand.vmem [shape: f32[1,128], index: 6, kind: input, shape index: {}]
  %s7 = inlined_call_operand.hbm [shape: f32[16,128], index: 7, kind: output, shape index: {}]
  %s8 = sld [smem:[#allocation0]]
  $region85: #{tpu_custom_call.1} parent=0
    _
  %s10 = ssub.s32 1, %s8
  %s11 = scalar_select 0, %s10, %s8
  $region1: #{tpu_custom_call.1} parent=0
    #allocation2 [shape = 'u8[8192]{0}', space=vmem, size = 0x2000, scoped, tag = 'input window, operand 0']
    #allocation3 [shape = 's32[2]{0}', space=sflag, size = 0x8, scoped, tag = 'scoped memory for tpu_custom_call.1']
    #allocation4 [shape = 's32[2]{0}', space=sflag, size = 0x8, scoped, tag = 'scoped memory for tpu_custom_call.1']
    #allocation5 [shape = 'u8[131072]{0}', space=vmem, size = 0x20000, scoped, tag = 'input window, operand 1, single buffered']
    #allocation6 [shape = 's32[1]{0}', space=sflag, size = 0x4, scoped, tag = 'scoped memory for tpu_custom_call.1']
    #allocation7 [shape = 'u8[2048]{0}', space=vmem, size = 0x800, scoped, tag = 'input window, operand 2, single buffered']
    #allocation8 [shape = 'u8[524288]{0}', space=vmem, size = 0x80000, scoped, tag = 'input window, operand 3, single buffered']
    #allocation9 [shape = 's32[1]{0}', space=sflag, size = 0x4, scoped, tag = 'scoped memory for tpu_custom_call.1']
    #allocation10 [shape = 'u8[2048]{0}', space=vmem, size = 0x800, scoped, tag = 'input window, operand 4, single buffered']
    #allocation11 [shape = 'u8[131072]{0}', space=vmem, size = 0x20000, scoped, tag = 'input window, operand 5, single buffered']
    #allocation12 [shape = 's32[1]{0}', space=sflag, size = 0x4, scoped, tag = 'scoped memory for tpu_custom_call.1']
    #allocation13 [shape = 'u8[8192]{0}', space=vmem, size = 0x2000, scoped, tag = 'output window, operand 0']
    %12 = vsyncpa [#allocation3], 0
    %s13 = scalar_lea.sflag [#allocation3], 1
    %14 = vsyncpa %s13, 0
    %15 = vsyncpa [#allocation6], 0
    %16 = vsyncpa [#allocation9], 0
    %17 = vsyncpa [#allocation12], 0
    %18 = vsyncpa [#allocation4], 0
    %s19 = scalar_lea.sflag [#allocation4], 1
    %20 = vsyncpa %s19, 0
    loop: start=0, step=1, limit=4
    $region2: #{tpu_custom_call.1} parent=1 // loop_pre_header
      _
    $region3: #{tpu_custom_call.1} parent=1 // loop_header
      %s22 = sphi 0, %s26
      %p23 = scmp.ge.s32.totalorder %s22, 4
      %s32 = sphi 0, %s34
      %s35 = sphi 0, %s32
      %s36 = sphi 0, %s35
      %s52 = sphi 0, %s36
      %s56 = sphi 0, %s56
      %s58 = sphi 0, %s56
      %s59 = sphi 0, %s58
      %s73 = sphi 0, %s59
      %s77 = sphi 0, %s77
      %s79 = sphi 0, %s77
      %s80 = sphi 0, %s79
      %s94 = sphi 0, %s80
      %s98 = sphi 0, %s98
      %s100 = sphi 0, %s98
      %s101 = sphi 0, %s100
      %s115 = sphi 0, %s101
      %s119 = sphi 0, %s119
      %s121 = sphi 0, %s119
      %s122 = sphi 0, %s121
      %s136 = sphi 0, %s122
      %s140 = sphi 0, %s140
      %s142 = sphi 0, %s140
      %s143 = sphi 0, %s142
      %s157 = sphi 0, %s143
      %s161 = sphi 0, %s161
      %s163 = sphi 0, %s161
      %s164 = sphi 0, %s163
      %s178 = sphi 0, %s164
      %s184 = sphi 0, %s186
      %s187 = sphi 0, %s184
      %s188 = sphi 0, %s187
      %s204 = sphi 0, %s188
    $region4: #{tpu_custom_call.1} parent=1 // loop_header_branch
      %25 = sbr.rel (%p23) target = $region8
    $region5: #{tpu_custom_call.1} parent=1 // loop_body
      %s27 = ssub.s32 %s22, 1
      %s28 = ssub.s32 %s22, 2
      %s29 = sadd.s32 %s22, 1
      %s30 = ssub.s32 %s22, %s29
      %p31 = scmp.eq.s32.totalorder %s30, 0
      %s33 = sadd.s32 %s32, 1
      %s34 = scalar_select %p31, %s32, %s33
      %p37 = pneg %p31
      %p38 = scmp.eq.s32.totalorder %s22, 1
      %p39 = por %p37, %p38
      %p40 = scmp.ne.s32.totalorder %s32, %s35
      %p41 = scmp.eq.s32.totalorder %s22, 0
      %p42 = por %p40, %p41
      %p43 = scmp.ne.s32.totalorder %s32, %s35
      %p44 = scmp.eq.s32.totalorder %s27, 1
      %p45 = por %p43, %p44
      %p46 = scmp.ne.s32.totalorder %s35, %s36
      %p47 = scmp.eq.s32.totalorder %s27, 0
      %p48 = por %p46, %p47
      %p49 = scmp.ne.s32.totalorder %s35, %s36
      %p50 = scmp.eq.s32.totalorder %s28, 1
      %p51 = por %p49, %p50
      %p53 = scmp.ne.s32.totalorder %s36, %s52
      %p54 = scmp.eq.s32.totalorder %s28, 0
      %p55 = por %p53, %p54
      %s57 = sadd.s32 %s56, 1
      %p60 = scmp.eq.s32.totalorder %s22, 1
      %p61 = scmp.ne.s32.totalorder %s56, %s58
      %p62 = scmp.eq.s32.totalorder %s22, 0
      %p63 = por %p61, %p62
      %p64 = scmp.ne.s32.totalorder %s56, %s58
      %p65 = scmp.eq.s32.totalorder %s27, 1
      %p66 = por %p64, %p65
      %p67 = scmp.ne.s32.totalorder %s58, %s59
      %p68 = scmp.eq.s32.totalorder %s27, 0
      %p69 = por %p67, %p68
      %p70 = scmp.ne.s32.totalorder %s58, %s59
      %p71 = scmp.eq.s32.totalorder %s28, 1
      %p72 = por %p70, %p71
      %p74 = scmp.ne.s32.totalorder %s59, %s73
      %p75 = scmp.eq.s32.totalorder %s28, 0
      %p76 = por %p74, %p75
      %s78 = sadd.s32 %s77, 1
      %p81 = scmp.eq.s32.totalorder %s22, 1
      %p82 = scmp.ne.s32.totalorder %s77, %s79
      %p83 = scmp.eq.s32.totalorder %s22, 0
      %p84 = por %p82, %p83
      %p85 = scmp.ne.s32.totalorder %s77, %s79
      %p86 = scmp.eq.s32.totalorder %s27, 1
      %p87 = por %p85, %p86
      %p88 = scmp.ne.s32.totalorder %s79, %s80
      %p89 = scmp.eq.s32.totalorder %s27, 0
      %p90 = por %p88, %p89
      %p91 = scmp.ne.s32.totalorder %s79, %s80
      %p92 = scmp.eq.s32.totalorder %s28, 1
      %p93 = por %p91, %p92
      %p95 = scmp.ne.s32.totalorder %s80, %s94
      %p96 = scmp.eq.s32.totalorder %s28, 0
      %p97 = por %p95, %p96
      %s99 = sadd.s32 %s98, 1
      %p102 = scmp.eq.s32.totalorder %s22, 1
      %p103 = scmp.ne.s32.totalorder %s98, %s100
      %p104 = scmp.eq.s32.totalorder %s22, 0
      %p105 = por %p103, %p104
      %p106 = scmp.ne.s32.totalorder %s98, %s100
      %p107 = scmp.eq.s32.totalorder %s27, 1
      %p108 = por %p106, %p107
      %p109 = scmp.ne.s32.totalorder %s100, %s101
      %p110 = scmp.eq.s32.totalorder %s27, 0
      %p111 = por %p109, %p110
      %p112 = scmp.ne.s32.totalorder %s100, %s101
      %p113 = scmp.eq.s32.totalorder %s28, 1
      %p114 = por %p112, %p113
      %p116 = scmp.ne.s32.totalorder %s101, %s115
      %p117 = scmp.eq.s32.totalorder %s28, 0
      %p118 = por %p116, %p117
      %s120 = sadd.s32 %s119, 1
      %p123 = scmp.eq.s32.totalorder %s22, 1
      %p124 = scmp.ne.s32.totalorder %s119, %s121
      %p125 = scmp.eq.s32.totalorder %s22, 0
      %p126 = por %p124, %p125
      %p127 = scmp.ne.s32.totalorder %s119, %s121
      %p128 = scmp.eq.s32.totalorder %s27, 1
      %p129 = por %p127, %p128
      %p130 = scmp.ne.s32.totalorder %s121, %s122
      %p131 = scmp.eq.s32.totalorder %s27, 0
      %p132 = por %p130, %p131
      %p133 = scmp.ne.s32.totalorder %s121, %s122
      %p134 = scmp.eq.s32.totalorder %s28, 1
      %p135 = por %p133, %p134
      %p137 = scmp.ne.s32.totalorder %s122, %s136
      %p138 = scmp.eq.s32.totalorder %s28, 0
      %p139 = por %p137, %p138
      %s141 = sadd.s32 %s140, 1
      %p144 = scmp.eq.s32.totalorder %s22, 1
      %p145 = scmp.ne.s32.totalorder %s140, %s142
      %p146 = scmp.eq.s32.totalorder %s22, 0
      %p147 = por %p145, %p146
      %p148 = scmp.ne.s32.totalorder %s140, %s142
      %p149 = scmp.eq.s32.totalorder %s27, 1
      %p150 = por %p148, %p149
      %p151 = scmp.ne.s32.totalorder %s142, %s143
      %p152 = scmp.eq.s32.totalorder %s27, 0
      %p153 = por %p151, %p152
      %p154 = scmp.ne.s32.totalorder %s142, %s143
      %p155 = scmp.eq.s32.totalorder %s28, 1
      %p156 = por %p154, %p155
      %p158 = scmp.ne.s32.totalorder %s143, %s157
      %p159 = scmp.eq.s32.totalorder %s28, 0
      %p160 = por %p158, %p159
      %s162 = sadd.s32 %s161, 1
      %p165 = scmp.eq.s32.totalorder %s22, 1
      %p166 = scmp.ne.s32.totalorder %s161, %s163
      %p167 = scmp.eq.s32.totalorder %s22, 0
      %p168 = por %p166, %p167
      %p169 = scmp.ne.s32.totalorder %s161, %s163
      %p170 = scmp.eq.s32.totalorder %s27, 1
      %p171 = por %p169, %p170
      %p172 = scmp.ne.s32.totalorder %s163, %s164
      %p173 = scmp.eq.s32.totalorder %s27, 0
      %p174 = por %p172, %p173
      %p175 = scmp.ne.s32.totalorder %s163, %s164
      %p176 = scmp.eq.s32.totalorder %s28, 1
      %p177 = por %p175, %p176
      %p179 = scmp.ne.s32.totalorder %s164, %s178
      %p180 = scmp.eq.s32.totalorder %s28, 0
      %p181 = por %p179, %p180
      %s182 = ssub.s32 %s22, %s29
      %p183 = scmp.eq.s32.totalorder %s182, 0
      %s185 = sadd.s32 %s184, 1
      %s186 = scalar_select %p183, %s184, %s185
      %p189 = pneg %p183
      %p190 = scmp.eq.s32.totalorder %s22, 1
      %p191 = por %p189, %p190
      %p192 = scmp.ne.s32.totalorder %s184, %s187
      %p193 = scmp.eq.s32.totalorder %s22, 0
      %p194 = por %p192, %p193
      %p195 = scmp.ne.s32.totalorder %s184, %s187
      %p196 = scmp.eq.s32.totalorder %s27, 1
      %p197 = por %p195, %p196
      %p198 = scmp.ne.s32.totalorder %s187, %s188
      %p199 = scmp.eq.s32.totalorder %s27, 0
      %p200 = por %p198, %p199
      %p201 = scmp.ne.s32.totalorder %s187, %s188
      %p202 = scmp.eq.s32.totalorder %s28, 1
      %p203 = por %p201, %p202
      %p205 = scmp.ne.s32.totalorder %s188, %s204
      %p206 = scmp.eq.s32.totalorder %s28, 0
      %p207 = por %p205, %p206
      %p208 = scmp.le.s32.totalorder 1, %s22
      %p209 = scmp.lt.s32.totalorder %s22, 3
      %p210 = pnand %p208, %p209
      %p211 = pneg %p210
      // Predicated region
      $region9: #{tpu_custom_call.1} parent=5 // pred_check
        _
      $region10: #{tpu_custom_call.1} parent=5 // pred_check_branch
        %213 = sbr.rel (%p210) target = $region12
      $region11: #{tpu_custom_call.1} parent=5 // pred_region
        %s214 = ssub.s32 %s22, 1
        // Predicated region
        $region13: #{tpu_custom_call.1} parent=11 // pred_check
          %p215 = pneg %p69
        $region14: #{tpu_custom_call.1} parent=11 // pred_check_branch
          %217 = sbr.rel (%p215) target = $region16
        $region15: #{tpu_custom_call.1} parent=11 // pred_region
          %219 = vsyncadd [#allocation6], 0
          %s220 = sshll.u32 %s1, 4
          %s221 = int_to_ptr.hbm [resolvable:$true] %s220
          %s222 = sshll.u32 [#allocation5], 4
          %s223 = int_to_ptr.vmem [resolvable:$true] %s222
          %228 = dma.hbm_to_vmem [thread:$0]  %s221, 4096, %s223, [#allocation6], 256, 256, 16
        $region16: #{tpu_custom_call.1} parent=11 // pred_fallthru
          _
        // Predicated region
        $region17: #{tpu_custom_call.1} parent=11 // pred_check
          %p229 = pneg %p90
        $region18: #{tpu_custom_call.1} parent=11 // pred_check_branch
          %231 = sbr.rel (%p229) target = $region20
        $region19: #{tpu_custom_call.1} parent=11 // pred_region
          %233 = vsyncadd [#allocation6], 0
          %s235 = sshll.u32 %s2, 4
          %s236 = int_to_ptr.hbm [resolvable:$true] %s235
          %s237 = sshll.u32 [#allocation7], 4
          %s238 = int_to_ptr.vmem [resolvable:$true] %s237
          %240 = dma.hbm_to_vmem [thread:$0]  %s236, 64, %s238, [#allocation6]
        $region20: #{tpu_custom_call.1} parent=11 // pred_fallthru
          _
        // Predicated region
        $region21: #{tpu_custom_call.1} parent=11 // pred_check
          %p241 = pneg %p111
        $region22: #{tpu_custom_call.1} parent=11 // pred_check_branch
          %243 = sbr.rel (%p241) target = $region24
        $region23: #{tpu_custom_call.1} parent=11 // pred_region
          %245 = vsyncadd [#allocation9], 0
          %s246 = sshll.u32 %s3, 4
          %s247 = int_to_ptr.hbm [resolvable:$true] %s246
          %s248 = sshll.u32 [#allocation8], 4
          %s249 = int_to_ptr.vmem [resolvable:$true] %s248
          %254 = dma.hbm_to_vmem [thread:$0]  %s247, 16384, %s249, [#allocation9], 256, 256, 16
        $region24: #{tpu_custom_call.1} parent=11 // pred_fallthru
          _
        // Predicated region
        $region25: #{tpu_custom_call.1} parent=11 // pred_check
          %p255 = pneg %p132
        $region26: #{tpu_custom_call.1} parent=11 // pred_check_branch
          %257 = sbr.rel (%p255) target = $region28
        $region27: #{tpu_custom_call.1} parent=11 // pred_region
          %259 = vsyncadd [#allocation9], 0
          %s261 = sshll.u32 %s4, 4
          %s262 = int_to_ptr.hbm [resolvable:$true] %s261
          %s263 = sshll.u32 [#allocation10], 4
          %s264 = int_to_ptr.vmem [resolvable:$true] %s263
          %266 = dma.hbm_to_vmem [thread:$0]  %s262, 64, %s264, [#allocation9]
        $region28: #{tpu_custom_call.1} parent=11 // pred_fallthru
          _
        // Predicated region
        $region29: #{tpu_custom_call.1} parent=11 // pred_check
          %p267 = pneg %p153
        $region30: #{tpu_custom_call.1} parent=11 // pred_check_branch
          %269 = sbr.rel (%p267) target = $region32
        $region31: #{tpu_custom_call.1} parent=11 // pred_region
          %271 = vsyncadd [#allocation12], 0
          %s272 = sshll.u32 %s5, 4
          %s273 = int_to_ptr.hbm [resolvable:$true] %s272
          %s274 = sshll.u32 [#allocation11], 4
          %s275 = int_to_ptr.vmem [resolvable:$true] %s274
          %280 = dma.hbm_to_vmem [thread:$0]  %s273, 4096, %s275, [#allocation12], 64, 64, 4
        $region32: #{tpu_custom_call.1} parent=11 // pred_fallthru
          _
        // Predicated region
        $region33: #{tpu_custom_call.1} parent=11 // pred_check
          %p281 = pneg %p174
        $region34: #{tpu_custom_call.1} parent=11 // pred_check_branch
          %283 = sbr.rel (%p281) target = $region36
        $region35: #{tpu_custom_call.1} parent=11 // pred_region
          _
        $region36: #{tpu_custom_call.1} parent=11 // pred_fallthru
          _
      $region12: #{tpu_custom_call.1} parent=5 // pred_fallthru
        _
      %p284 = scmp.lt.s32.totalorder %s22, 2
      // Predicated region
      $region37: #{tpu_custom_call.1} parent=5 // pred_check
        %p285 = pneg %p284
      $region38: #{tpu_custom_call.1} parent=5 // pred_check_branch
        %287 = sbr.rel (%p285) target = $region40
      $region39: #{tpu_custom_call.1} parent=5 // pred_region
        // Predicated region
        $region41: #{tpu_custom_call.1} parent=39 // pred_check
          %p288 = pneg %p42
        $region42: #{tpu_custom_call.1} parent=39 // pred_check_branch
          %290 = sbr.rel (%p288) target = $region44
        $region43: #{tpu_custom_call.1} parent=39 // pred_region
          %s291 = sand.u32 %s32, 1
          %s292 = scalar_lea.sflag [#allocation3], %s291
          %s293 = sand.u32 %s32, 1
          %s294 = smul.addr %s293, 8
          %s295 = scalar_lea.vmem [#allocation2], %s294
          %297 = vsyncadd %s292, 0
          %s298 = smul.addr %s22, 8
          %s299 = scalar_lea.hbm %s0, %s298
          %s301 = sshll.u32 %s299, 4
          %s302 = int_to_ptr.hbm [resolvable:$true] %s301
          %s303 = sshll.u32 %s295, 4
          %s304 = int_to_ptr.vmem [resolvable:$true] %s303
          %306 = dma.hbm_to_vmem [thread:$0]  %s302, 128, %s304, %s292
        $region44: #{tpu_custom_call.1} parent=39 // pred_fallthru
          _
      $region40: #{tpu_custom_call.1} parent=5 // pred_fallthru
        _
      %p307 = scmp.le.s32.totalorder 1, %s22
      %p308 = scmp.lt.s32.totalorder %s22, 3
      %p309 = pnand %p307, %p308
      %p310 = pneg %p309
      // Predicated region
      $region45: #{tpu_custom_call.1} parent=5 // pred_check
        _
      $region46: #{tpu_custom_call.1} parent=5 // pred_check_branch
        %312 = sbr.rel (%p309) target = $region48
      $region47: #{tpu_custom_call.1} parent=5 // pred_region
        %s313 = ssub.s32 %s22, 1
        %s314 = sand.u32 %s35, 1
        %s315 = scalar_lea.sflag [#allocation3], %s314
        %s316 = sand.u32 %s35, 1
        %s317 = smul.addr %s316, 8
        %s318 = scalar_lea.vmem [#allocation2], %s317
        // Predicated region
        $region49: #{tpu_custom_call.1} parent=47 // pred_check
          %p319 = pneg %p48
        $region50: #{tpu_custom_call.1} parent=47 // pred_check_branch
          %321 = sbr.rel (%p319) target = $region52
        $region51: #{tpu_custom_call.1} parent=47 // pred_region
          %323 = dma.done %s315, 128
        $region52: #{tpu_custom_call.1} parent=47 // pred_fallthru
          _
        // Predicated region
        $region53: #{tpu_custom_call.1} parent=47 // pred_check
          %p324 = pneg %p69
        $region54: #{tpu_custom_call.1} parent=47 // pred_check_branch
          %326 = sbr.rel (%p324) target = $region56
        $region55: #{tpu_custom_call.1} parent=47 // pred_region
          %328 = dma.done [#allocation6], 4096
        $region56: #{tpu_custom_call.1} parent=47 // pred_fallthru
          _
        // Predicated region
        $region57: #{tpu_custom_call.1} parent=47 // pred_check
          %p329 = pneg %p90
        $region58: #{tpu_custom_call.1} parent=47 // pred_check_branch
          %331 = sbr.rel (%p329) target = $region60
        $region59: #{tpu_custom_call.1} parent=47 // pred_region
          %333 = dma.done [#allocation6], 64
        $region60: #{tpu_custom_call.1} parent=47 // pred_fallthru
          _
        // Predicated region
        $region61: #{tpu_custom_call.1} parent=47 // pred_check
          %p334 = pneg %p111
        $region62: #{tpu_custom_call.1} parent=47 // pred_check_branch
          %336 = sbr.rel (%p334) target = $region64
        $region63: #{tpu_custom_call.1} parent=47 // pred_region
          %338 = dma.done [#allocation9], 16384
        $region64: #{tpu_custom_call.1} parent=47 // pred_fallthru
          _
        // Predicated region
        $region65: #{tpu_custom_call.1} parent=47 // pred_check
          %p339 = pneg %p132
        $region66: #{tpu_custom_call.1} parent=47 // pred_check_branch
          %341 = sbr.rel (%p339) target = $region68
        $region67: #{tpu_custom_call.1} parent=47 // pred_region
          %343 = dma.done [#allocation9], 64
        $region68: #{tpu_custom_call.1} parent=47 // pred_fallthru
          _
        // Predicated region
        $region69: #{tpu_custom_call.1} parent=47 // pred_check
          %p344 = pneg %p153
        $region70: #{tpu_custom_call.1} parent=47 // pred_check_branch
          %346 = sbr.rel (%p344) target = $region72
        $region71: #{tpu_custom_call.1} parent=47 // pred_region
          %348 = dma.done [#allocation12], 4096
        $region72: #{tpu_custom_call.1} parent=47 // pred_fallthru
          _
        %s349 = sand.u32 %s35, 1
        %s350 = scalar_lea.sflag [#allocation3], %s349
        %s351 = sand.u32 %s35, 1
        %s352 = smul.addr %s351, 8
        %s353 = scalar_lea.vmem [#allocation2], %s352
        %p354 = pneg %p48
        %p355 = pneg %p45
        %p356 = pneg %p69
        %p357 = pneg %p66
        %p358 = pneg %p90
        %p359 = pneg %p87
        %p360 = pneg %p111
        %p361 = pneg %p108
        %p362 = pneg %p132
        %p363 = pneg %p129
        %p364 = pneg %p153
        %p365 = pneg %p150
        %p366 = pneg %p174
        %p367 = pneg %p171
        %p368 = pneg %p200
        %p369 = pneg %p197
        %s370 = sand.u32 %s187, 1
        %s371 = scalar_lea.sflag [#allocation4], %s370
        %s372 = sand.u32 %s187, 1
        %s373 = smul.addr %s372, 8
        %s374 = scalar_lea.vmem [#allocation13], %s373
        %v375 = vld [vmem:[%s318] sm:$0xff]
        %v376 = vpack.c.bf16 %v375, %v375
        %v377 = vld [vmem:[#allocation5] sm:$0xff]
        %v378 = vld [vmem:[#allocation5 + $0x8] sm:$0xff]
        %v379 = vld [vmem:[#allocation5 + $0x10] sm:$0xff]
        %v380 = vld [vmem:[#allocation5 + $0x18] sm:$0xff]
        %v381 = vld [vmem:[#allocation5 + $0x20] sm:$0xff]
        %v382 = vld [vmem:[#allocation5 + $0x28] sm:$0xff]
        %v383 = vld [vmem:[#allocation5 + $0x30] sm:$0xff]
        %v384 = vld [vmem:[#allocation5 + $0x38] sm:$0xff]
        %v385 = vld [vmem:[#allocation5 + $0x40] sm:$0xff]
        %v386 = vld [vmem:[#allocation5 + $0x48] sm:$0xff]
        %v387 = vld [vmem:[#allocation5 + $0x50] sm:$0xff]
        %v388 = vld [vmem:[#allocation5 + $0x58] sm:$0xff]
        %v389 = vld [vmem:[#allocation5 + $0x60] sm:$0xff]
        %v390 = vld [vmem:[#allocation5 + $0x68] sm:$0xff]
        %v391 = vld [vmem:[#allocation5 + $0x70] sm:$0xff]
        %v392 = vld [vmem:[#allocation5 + $0x78] sm:$0xff]
        %v393 = vld [vmem:[#allocation5 + $0x80] sm:$0xff]
        %v394 = vld [vmem:[#allocation5 + $0x88] sm:$0xff]
        %v395 = vld [vmem:[#allocation5 + $0x90] sm:$0xff]
        %v396 = vld [vmem:[#allocation5 + $0x98] sm:$0xff]
        %v397 = vld [vmem:[#allocation5 + $0xa0] sm:$0xff]
        %v398 = vld [vmem:[#allocation5 + $0xa8] sm:$0xff]
        %v399 = vld [vmem:[#allocation5 + $0xb0] sm:$0xff]
        %v400 = vld [vmem:[#allocation5 + $0xb8] sm:$0xff]
        %v401 = vld [vmem:[#allocation5 + $0xc0] sm:$0xff]
        %v402 = vld [vmem:[#allocation5 + $0xc8] sm:$0xff]
        %v403 = vld [vmem:[#allocation5 + $0xd0] sm:$0xff]
        %v404 = vld [vmem:[#allocation5 + $0xd8] sm:$0xff]
        %v405 = vld [vmem:[#allocation5 + $0xe0] sm:$0xff]
        %v406 = vld [vmem:[#allocation5 + $0xe8] sm:$0xff]
        %v407 = vld [vmem:[#allocation5 + $0xf0] sm:$0xff]
        %v408 = vld [vmem:[#allocation5 + $0xf8] sm:$0xff]
        %v409 = vld [vmem:[#allocation7] sm:$0xf]
        %v411 = vperm.slane %v409, 0
        %v412 = vperm.slane %v409, 1
        %v413 = vperm.slane %v409, 2
        %v414 = vperm.slane %v409, 3
        %v451 = vunpack.c.l.b16 %v377
        %v452 = vunpack.c.h.b16 %v377
        %v453 = vunpack.c.l.b16 %v378
        %v454 = vunpack.c.h.b16 %v378
        %v455 = vunpack.c.l.b16 %v379
        %v456 = vunpack.c.h.b16 %v379
        %v457 = vunpack.c.l.b16 %v380
        %v458 = vunpack.c.h.b16 %v380
        %v459 = vunpack.c.l.b16 %v381
        %v460 = vunpack.c.h.b16 %v381
        %v461 = vunpack.c.l.b16 %v382
        %v462 = vunpack.c.h.b16 %v382
        %v463 = vunpack.c.l.b16 %v383
        %v464 = vunpack.c.h.b16 %v383
        %v465 = vunpack.c.l.b16 %v384
        %v466 = vunpack.c.h.b16 %v384
        %v467 = vunpack.c.l.b16 %v385
        %v468 = vunpack.c.h.b16 %v385
        %v469 = vunpack.c.l.b16 %v386
        %v470 = vunpack.c.h.b16 %v386
        %v471 = vunpack.c.l.b16 %v387
        %v472 = vunpack.c.h.b16 %v387
        %v473 = vunpack.c.l.b16 %v388
        %v474 = vunpack.c.h.b16 %v388
        %v475 = vunpack.c.l.b16 %v389
        %v476 = vunpack.c.h.b16 %v389
        %v477 = vunpack.c.l.b16 %v390
        %v478 = vunpack.c.h.b16 %v390
        %v479 = vunpack.c.l.b16 %v391
        %v480 = vunpack.c.h.b16 %v391
        %v481 = vunpack.c.l.b16 %v392
        %v482 = vunpack.c.h.b16 %v392
        %v483 = vunpack.c.l.b16 %v393
        %v484 = vunpack.c.h.b16 %v393
        %v485 = vunpack.c.l.b16 %v394
        %v486 = vunpack.c.h.b16 %v394
        %v487 = vunpack.c.l.b16 %v395
        %v488 = vunpack.c.h.b16 %v395
        %v489 = vunpack.c.l.b16 %v396
        %v490 = vunpack.c.h.b16 %v396
        %v491 = vunpack.c.l.b16 %v397
        %v492 = vunpack.c.h.b16 %v397
        %v493 = vunpack.c.l.b16 %v398
        %v494 = vunpack.c.h.b16 %v398
        %v495 = vunpack.c.l.b16 %v399
        %v496 = vunpack.c.h.b16 %v399
        %v497 = vunpack.c.l.b16 %v400
        %v498 = vunpack.c.h.b16 %v400
        %v499 = vunpack.c.l.b16 %v401
        %v500 = vunpack.c.h.b16 %v401
        %v501 = vunpack.c.l.b16 %v402
        %v502 = vunpack.c.h.b16 %v402
        %v503 = vunpack.c.l.b16 %v403
        %v504 = vunpack.c.h.b16 %v403
        %v505 = vunpack.c.l.b16 %v404
        %v506 = vunpack.c.h.b16 %v404
        %v507 = vunpack.c.l.b16 %v405
        %v508 = vunpack.c.h.b16 %v405
        %v509 = vunpack.c.l.b16 %v406
        %v510 = vunpack.c.h.b16 %v406
        %v511 = vunpack.c.l.b16 %v407
        %v512 = vunpack.c.h.b16 %v407
        %v513 = vunpack.c.l.b16 %v408
        %v514 = vunpack.c.h.b16 %v408
        %v515 = vpack.c.b16 %v455, %v451
        %v516 = vpack.c.b16 %v456, %v452
        %v517 = vpack.c.b16 %v457, %v453
        %v518 = vpack.c.b16 %v458, %v454
        %v519 = vpack.c.b16 %v463, %v459
        %v520 = vpack.c.b16 %v464, %v460
        %v521 = vpack.c.b16 %v465, %v461
        %v522 = vpack.c.b16 %v466, %v462
        %v523 = vpack.c.b16 %v471, %v467
        %v524 = vpack.c.b16 %v472, %v468
        %v525 = vpack.c.b16 %v473, %v469
        %v526 = vpack.c.b16 %v474, %v470
        %v527 = vpack.c.b16 %v479, %v475
        %v528 = vpack.c.b16 %v480, %v476
        %v529 = vpack.c.b16 %v481, %v477
        %v530 = vpack.c.b16 %v482, %v478
        %v531 = vpack.c.b16 %v487, %v483
        %v532 = vpack.c.b16 %v488, %v484
        %v533 = vpack.c.b16 %v489, %v485
        %v534 = vpack.c.b16 %v490, %v486
        %v535 = vpack.c.b16 %v495, %v491
        %v536 = vpack.c.b16 %v496, %v492
        %v537 = vpack.c.b16 %v497, %v493
        %v538 = vpack.c.b16 %v498, %v494
        %v539 = vpack.c.b16 %v503, %v499
        %v540 = vpack.c.b16 %v504, %v500
        %v541 = vpack.c.b16 %v505, %v501
        %v542 = vpack.c.b16 %v506, %v502
        %v543 = vpack.c.b16 %v511, %v507
        %v544 = vpack.c.b16 %v512, %v508
        %v545 = vpack.c.b16 %v513, %v509
        %v546 = vpack.c.b16 %v514, %v510
        %579 = vmatpush.bf16.msra.mxu0 %v543
        %580 = vmatpush.bf16.msra.mxu0 %v539
        %581 = vmatpush.bf16.msra.mxu0 %v535
        %582 = vmatpush.bf16.msra.mxu0 %v531
        %583 = vmatpush.bf16.msra.mxu0 %v527
        %584 = vmatpush.bf16.msra.mxu0 %v523
        %585 = vmatpush.bf16.msra.mxu0 %v519
        %586 = vmatpush.bf16.msra.mxu0 %v515
        %587 = vmatmul.bf16.gmra.mxu0 %v376
        %v588 = vpop.f32.mrf.mxu0
        %v589 = vadd.f32 %v411, %v588
        %v590 = vpop.f32.mrf.mxu0
        %591 = vdwg.mxu0
        %592 = vmatpush.bf16.msra.mxu0 %v544
        %593 = vmatpush.bf16.msra.mxu0 %v540
        %594 = vmatpush.bf16.msra.mxu0 %v536
        %595 = vmatpush.bf16.msra.mxu0 %v532
        %596 = vmatpush.bf16.msra.mxu0 %v528
        %597 = vmatpush.bf16.msra.mxu0 %v524
        %598 = vmatpush.bf16.msra.mxu0 %v520
        %599 = vmatpush.bf16.msra.mxu0 %v516
        %600 = vmatmul.bf16.gmra.mxu0 %v376
        %v601 = vpop.f32.mrf.mxu0
        %v602 = vadd.f32 %v412, %v601
        %v603 = vpop.f32.mrf.mxu0
        %604 = vdwg.mxu0
        %605 = vmatpush.bf16.msra.mxu0 %v545
        %606 = vmatpush.bf16.msra.mxu0 %v541
        %607 = vmatpush.bf16.msra.mxu0 %v537
        %608 = vmatpush.bf16.msra.mxu0 %v533
        %609 = vmatpush.bf16.msra.mxu0 %v529
        %610 = vmatpush.bf16.msra.mxu0 %v525
        %611 = vmatpush.bf16.msra.mxu0 %v521
        %612 = vmatpush.bf16.msra.mxu0 %v517
        %613 = vmatmul.bf16.gmra.mxu0 %v376
        %v614 = vpop.f32.mrf.mxu0
        %v615 = vadd.f32 %v413, %v614
        %v616 = vpop.f32.mrf.mxu0
        %617 = vdwg.mxu0
        %618 = vmatpush.bf16.msra.mxu0 %v546
        %619 = vmatpush.bf16.msra.mxu0 %v542
        %620 = vmatpush.bf16.msra.mxu0 %v538
        %621 = vmatpush.bf16.msra.mxu0 %v534
        %622 = vmatpush.bf16.msra.mxu0 %v530
        %623 = vmatpush.bf16.msra.mxu0 %v526
        %624 = vmatpush.bf16.msra.mxu0 %v522
        %625 = vmatpush.bf16.msra.mxu0 %v518
        %626 = vmatmul.bf16.gmra.mxu0 %v376
        %v627 = vpop.f32.mrf.mxu0
        %v628 = vadd.f32 %v414, %v627
        %v629 = vpop.f32.mrf.mxu0
        %630 = vdwg.mxu0
        %v631 = vmax.f32 %v589, 0.0
        %v632 = vmax.f32 %v602, 0.0
        %v633 = vmax.f32 %v615, 0.0
        %v634 = vmax.f32 %v628, 0.0
        %v635 = vpack.c.bf16 %v631, %v631
        %v636 = vpack.c.bf16 %v632, %v632
        %v637 = vpack.c.bf16 %v633, %v633
        %v638 = vpack.c.bf16 %v634, %v634
        %v639 = vld [vmem:[#allocation8] sm:$0xff]
        %v640 = vld [vmem:[#allocation8 + $0x8] sm:$0xff]
        %v641 = vld [vmem:[#allocation8 + $0x10] sm:$0xff]
        %v642 = vld [vmem:[#allocation8 + $0x18] sm:$0xff]
        %v643 = vld [vmem:[#allocation8 + $0x20] sm:$0xff]
        %v644 = vld [vmem:[#allocation8 + $0x28] sm:$0xff]
        %v645 = vld [vmem:[#allocation8 + $0x30] sm:$0xff]
        %v646 = vld [vmem:[#allocation8 + $0x38] sm:$0xff]
        %v647 = vld [vmem:[#allocation8 + $0x40] sm:$0xff]
        %v648 = vld [vmem:[#allocation8 + $0x48] sm:$0xff]
        %v649 = vld [vmem:[#allocation8 + $0x50] sm:$0xff]
        %v650 = vld [vmem:[#allocation8 + $0x58] sm:$0xff]
        %v651 = vld [vmem:[#allocation8 + $0x60] sm:$0xff]
        %v652 = vld [vmem:[#allocation8 + $0x68] sm:$0xff]
        %v653 = vld [vmem:[#allocation8 + $0x70] sm:$0xff]
        %v654 = vld [vmem:[#allocation8 + $0x78] sm:$0xff]
        %v655 = vld [vmem:[#allocation8 + $0x80] sm:$0xff]
        %v656 = vld [vmem:[#allocation8 + $0x88] sm:$0xff]
        %v657 = vld [vmem:[#allocation8 + $0x90] sm:$0xff]
        %v658 = vld [vmem:[#allocation8 + $0x98] sm:$0xff]
        %v659 = vld [vmem:[#allocation8 + $0xa0] sm:$0xff]
        %v660 = vld [vmem:[#allocation8 + $0xa8] sm:$0xff]
        %v661 = vld [vmem:[#allocation8 + $0xb0] sm:$0xff]
        %v662 = vld [vmem:[#allocation8 + $0xb8] sm:$0xff]
        %v663 = vld [vmem:[#allocation8 + $0xc0] sm:$0xff]
        %v664 = vld [vmem:[#allocation8 + $0xc8] sm:$0xff]
        %v665 = vld [vmem:[#allocation8 + $0xd0] sm:$0xff]
        %v666 = vld [vmem:[#allocation8 + $0xd8] sm:$0xff]
        %v667 = vld [vmem:[#allocation8 + $0xe0] sm:$0xff]
        %v668 = vld [vmem:[#allocation8 + $0xe8] sm:$0xff]
        %v669 = vld [vmem:[#allocation8 + $0xf0] sm:$0xff]
        %v670 = vld [vmem:[#allocation8 + $0xf8] sm:$0xff]
        %v671 = vld [vmem:[#allocation8 + $0x100] sm:$0xff]
        %v672 = vld [vmem:[#allocation8 + $0x108] sm:$0xff]
        %v673 = vld [vmem:[#allocation8 + $0x110] sm:$0xff]
        %v674 = vld [vmem:[#allocation8 + $0x118] sm:$0xff]
        %v675 = vld [vmem:[#allocation8 + $0x120] sm:$0xff]
        %v676 = vld [vmem:[#allocation8 + $0x128] sm:$0xff]
        %v677 = vld [vmem:[#allocation8 + $0x130] sm:$0xff]
        %v678 = vld [vmem:[#allocation8 + $0x138] sm:$0xff]
        %v679 = vld [vmem:[#allocation8 + $0x140] sm:$0xff]
        %v680 = vld [vmem:[#allocation8 + $0x148] sm:$0xff]
        %v681 = vld [vmem:[#allocation8 + $0x150] sm:$0xff]
        %v682 = vld [vmem:[#allocation8 + $0x158] sm:$0xff]
        %v683 = vld [vmem:[#allocation8 + $0x160] sm:$0xff]
        %v684 = vld [vmem:[#allocation8 + $0x168] sm:$0xff]
        %v685 = vld [vmem:[#allocation8 + $0x170] sm:$0xff]
        %v686 = vld [vmem:[#allocation8 + $0x178] sm:$0xff]
        %v687 = vld [vmem:[#allocation8 + $0x180] sm:$0xff]
        %v688 = vld [vmem:[#allocation8 + $0x188] sm:$0xff]
        %v689 = vld [vmem:[#allocation8 + $0x190] sm:$0xff]
        %v690 = vld [vmem:[#allocation8 + $0x198] sm:$0xff]
        %v691 = vld [vmem:[#allocation8 + $0x1a0] sm:$0xff]
        %v692 = vld [vmem:[#allocation8 + $0x1a8] sm:$0xff]
        %v693 = vld [vmem:[#allocation8 + $0x1b0] sm:$0xff]
        %v694 = vld [vmem:[#allocation8 + $0x1b8] sm:$0xff]
        %v695 = vld [vmem:[#allocation8 + $0x1c0] sm:$0xff]
        %v696 = vld [vmem:[#allocation8 + $0x1c8] sm:$0xff]
        %v697 = vld [vmem:[#allocation8 + $0x1d0] sm:$0xff]
        %v698 = vld [vmem:[#allocation8 + $0x1d8] sm:$0xff]
        %v699 = vld [vmem:[#allocation8 + $0x1e0] sm:$0xff]
        %v700 = vld [vmem:[#allocation8 + $0x1e8] sm:$0xff]
        %v701 = vld [vmem:[#allocation8 + $0x1f0] sm:$0xff]
        %v702 = vld [vmem:[#allocation8 + $0x1f8] sm:$0xff]
        %v703 = vld [vmem:[#allocation8 + $0x200] sm:$0xff]
        %v704 = vld [vmem:[#allocation8 + $0x208] sm:$0xff]
        %v705 = vld [vmem:[#allocation8 + $0x210] sm:$0xff]
        %v706 = vld [vmem:[#allocation8 + $0x218] sm:$0xff]
        %v707 = vld [vmem:[#allocation8 + $0x220] sm:$0xff]
        %v708 = vld [vmem:[#allocation8 + $0x228] sm:$0xff]
        %v709 = vld [vmem:[#allocation8 + $0x230] sm:$0xff]
        %v710 = vld [vmem:[#allocation8 + $0x238] sm:$0xff]
        %v711 = vld [vmem:[#allocation8 + $0x240] sm:$0xff]
        %v712 = vld [vmem:[#allocation8 + $0x248] sm:$0xff]
        %v713 = vld [vmem:[#allocation8 + $0x250] sm:$0xff]
        %v714 = vld [vmem:[#allocation8 + $0x258] sm:$0xff]
        %v715 = vld [vmem:[#allocation8 + $0x260] sm:$0xff]
        %v716 = vld [vmem:[#allocation8 + $0x268] sm:$0xff]
        %v717 = vld [vmem:[#allocation8 + $0x270] sm:$0xff]
        %v718 = vld [vmem:[#allocation8 + $0x278] sm:$0xff]
        %v719 = vld [vmem:[#allocation8 + $0x280] sm:$0xff]
        %v720 = vld [vmem:[#allocation8 + $0x288] sm:$0xff]
        %v721 = vld [vmem:[#allocation8 + $0x290] sm:$0xff]
        %v722 = vld [vmem:[#allocation8 + $0x298] sm:$0xff]
        %v723 = vld [vmem:[#allocation8 + $0x2a0] sm:$0xff]
        %v724 = vld [vmem:[#allocation8 + $0x2a8] sm:$0xff]
        %v725 = vld [vmem:[#allocation8 + $0x2b0] sm:$0xff]
        %v726 = vld [vmem:[#allocation8 + $0x2b8] sm:$0xff]
        %v727 = vld [vmem:[#allocation8 + $0x2c0] sm:$0xff]
        %v728 = vld [vmem:[#allocation8 + $0x2c8] sm:$0xff]
        %v729 = vld [vmem:[#allocation8 + $0x2d0] sm:$0xff]
        %v730 = vld [vmem:[#allocation8 + $0x2d8] sm:$0xff]
        %v731 = vld [vmem:[#allocation8 + $0x2e0] sm:$0xff]
        %v732 = vld [vmem:[#allocation8 + $0x2e8] sm:$0xff]
        %v733 = vld [vmem:[#allocation8 + $0x2f0] sm:$0xff]
        %v734 = vld [vmem:[#allocation8 + $0x2f8] sm:$0xff]
        %v735 = vld [vmem:[#allocation8 + $0x300] sm:$0xff]
        %v736 = vld [vmem:[#allocation8 + $0x308] sm:$0xff]
        %v737 = vld [vmem:[#allocation8 + $0x310] sm:$0xff]
        %v738 = vld [vmem:[#allocation8 + $0x318] sm:$0xff]
        %v739 = vld [vmem:[#allocation8 + $0x320] sm:$0xff]
        %v740 = vld [vmem:[#allocation8 + $0x328] sm:$0xff]
        %v741 = vld [vmem:[#allocation8 + $0x330] sm:$0xff]
        %v742 = vld [vmem:[#allocation8 + $0x338] sm:$0xff]
        %v743 = vld [vmem:[#allocation8 + $0x340] sm:$0xff]
        %v744 = vld [vmem:[#allocation8 + $0x348] sm:$0xff]
        %v745 = vld [vmem:[#allocation8 + $0x350] sm:$0xff]
        %v746 = vld [vmem:[#allocation8 + $0x358] sm:$0xff]
        %v747 = vld [vmem:[#allocation8 + $0x360] sm:$0xff]
        %v748 = vld [vmem:[#allocation8 + $0x368] sm:$0xff]
        %v749 = vld [vmem:[#allocation8 + $0x370] sm:$0xff]
        %v750 = vld [vmem:[#allocation8 + $0x378] sm:$0xff]
        %v751 = vld [vmem:[#allocation8 + $0x380] sm:$0xff]
        %v752 = vld [vmem:[#allocation8 + $0x388] sm:$0xff]
        %v753 = vld [vmem:[#allocation8 + $0x390] sm:$0xff]
        %v754 = vld [vmem:[#allocation8 + $0x398] sm:$0xff]
        %v755 = vld [vmem:[#allocation8 + $0x3a0] sm:$0xff]
        %v756 = vld [vmem:[#allocation8 + $0x3a8] sm:$0xff]
        %v757 = vld [vmem:[#allocation8 + $0x3b0] sm:$0xff]
        %v758 = vld [vmem:[#allocation8 + $0x3b8] sm:$0xff]
        %v759 = vld [vmem:[#allocation8 + $0x3c0] sm:$0xff]
        %v760 = vld [vmem:[#allocation8 + $0x3c8] sm:$0xff]
        %v761 = vld [vmem:[#allocation8 + $0x3d0] sm:$0xff]
        %v762 = vld [vmem:[#allocation8 + $0x3d8] sm:$0xff]
        %v763 = vld [vmem:[#allocation8 + $0x3e0] sm:$0xff]
        %v764 = vld [vmem:[#allocation8 + $0x3e8] sm:$0xff]
        %v765 = vld [vmem:[#allocation8 + $0x3f0] sm:$0xff]
        %v766 = vld [vmem:[#allocation8 + $0x3f8] sm:$0xff]
        %v767 = vld [vmem:[#allocation10] sm:$0xf]
        %v769 = vperm.slane %v767, 0
        %v770 = vperm.slane %v767, 1
        %v771 = vperm.slane %v767, 2
        %v772 = vperm.slane %v767, 3
        %v905 = vunpack.c.l.b16 %v639
        %v906 = vunpack.c.h.b16 %v639
        %v907 = vunpack.c.l.b16 %v640
        %v908 = vunpack.c.h.b16 %v640
        %v909 = vunpack.c.l.b16 %v641
        %v910 = vunpack.c.h.b16 %v641
        %v911 = vunpack.c.l.b16 %v642
        %v912 = vunpack.c.h.b16 %v642
        %v913 = vunpack.c.l.b16 %v643
        %v914 = vunpack.c.h.b16 %v643
        %v915 = vunpack.c.l.b16 %v644
        %v916 = vunpack.c.h.b16 %v644
        %v917 = vunpack.c.l.b16 %v645
        %v918 = vunpack.c.h.b16 %v645
        %v919 = vunpack.c.l.b16 %v646
        %v920 = vunpack.c.h.b16 %v646
        %v921 = vunpack.c.l.b16 %v647
        %v922 = vunpack.c.h.b16 %v647
        %v923 = vunpack.c.l.b16 %v648
        %v924 = vunpack.c.h.b16 %v648
        %v925 = vunpack.c.l.b16 %v649
        %v926 = vunpack.c.h.b16 %v649
        %v927 = vunpack.c.l.b16 %v650
        %v928 = vunpack.c.h.b16 %v650
        %v929 = vunpack.c.l.b16 %v651
        %v930 = vunpack.c.h.b16 %v651
        %v931 = vunpack.c.l.b16 %v652
        %v932 = vunpack.c.h.b16 %v652
        %v933 = vunpack.c.l.b16 %v653
        %v934 = vunpack.c.h.b16 %v653
        %v935 = vunpack.c.l.b16 %v654
        %v936 = vunpack.c.h.b16 %v654
        %v937 = vunpack.c.l.b16 %v655
        %v938 = vunpack.c.h.b16 %v655
        %v939 = vunpack.c.l.b16 %v656
        %v940 = vunpack.c.h.b16 %v656
        %v941 = vunpack.c.l.b16 %v657
        %v942 = vunpack.c.h.b16 %v657
        %v943 = vunpack.c.l.b16 %v658
        %v944 = vunpack.c.h.b16 %v658
        %v945 = vunpack.c.l.b16 %v659
        %v946 = vunpack.c.h.b16 %v659
        %v947 = vunpack.c.l.b16 %v660
        %v948 = vunpack.c.h.b16 %v660
        %v949 = vunpack.c.l.b16 %v661
        %v950 = vunpack.c.h.b16 %v661
        %v951 = vunpack.c.l.b16 %v662
        %v952 = vunpack.c.h.b16 %v662
        %v953 = vunpack.c.l.b16 %v663
        %v954 = vunpack.c.h.b16 %v663
        %v955 = vunpack.c.l.b16 %v664
        %v956 = vunpack.c.h.b16 %v664
        %v957 = vunpack.c.l.b16 %v665
        %v958 = vunpack.c.h.b16 %v665
        %v959 = vunpack.c.l.b16 %v666
        %v960 = vunpack.c.h.b16 %v666
        %v961 = vunpack.c.l.b16 %v667
        %v962 = vunpack.c.h.b16 %v667
        %v963 = vunpack.c.l.b16 %v668
        %v964 = vunpack.c.h.b16 %v668
        %v965 = vunpack.c.l.b16 %v669
        %v966 = vunpack.c.h.b16 %v669
        %v967 = vunpack.c.l.b16 %v670
        %v968 = vunpack.c.h.b16 %v670
        %v969 = vunpack.c.l.b16 %v671
        %v970 = vunpack.c.h.b16 %v671
        %v971 = vunpack.c.l.b16 %v672
        %v972 = vunpack.c.h.b16 %v672
        %v973 = vunpack.c.l.b16 %v673
        %v974 = vunpack.c.h.b16 %v673
        %v975 = vunpack.c.l.b16 %v674
        %v976 = vunpack.c.h.b16 %v674
        %v977 = vunpack.c.l.b16 %v675
        %v978 = vunpack.c.h.b16 %v675
        %v979 = vunpack.c.l.b16 %v676
        %v980 = vunpack.c.h.b16 %v676
        %v981 = vunpack.c.l.b16 %v677
        %v982 = vunpack.c.h.b16 %v677
        %v983 = vunpack.c.l.b16 %v678
        %v984 = vunpack.c.h.b16 %v678
        %v985 = vunpack.c.l.b16 %v679
        %v986 = vunpack.c.h.b16 %v679
        %v987 = vunpack.c.l.b16 %v680
        %v988 = vunpack.c.h.b16 %v680
        %v989 = vunpack.c.l.b16 %v681
        %v990 = vunpack.c.h.b16 %v681
        %v991 = vunpack.c.l.b16 %v682
        %v992 = vunpack.c.h.b16 %v682
        %v993 = vunpack.c.l.b16 %v683
        %v994 = vunpack.c.h.b16 %v683
        %v995 = vunpack.c.l.b16 %v684
        %v996 = vunpack.c.h.b16 %v684
        %v997 = vunpack.c.l.b16 %v685
        %v998 = vunpack.c.h.b16 %v685
        %v999 = vunpack.c.l.b16 %v686
        %v1000 = vunpack.c.h.b16 %v686
        %v1001 = vunpack.c.l.b16 %v687
        %v1002 = vunpack.c.h.b16 %v687
        %v1003 = vunpack.c.l.b16 %v688
        %v1004 = vunpack.c.h.b16 %v688
        %v1005 = vunpack.c.l.b16 %v689
        %v1006 = vunpack.c.h.b16 %v689
        %v1007 = vunpack.c.l.b16 %v690
        %v1008 = vunpack.c.h.b16 %v690
        %v1009 = vunpack.c.l.b16 %v691
        %v1010 = vunpack.c.h.b16 %v691
        %v1011 = vunpack.c.l.b16 %v692
        %v1012 = vunpack.c.h.b16 %v692
        %v1013 = vunpack.c.l.b16 %v693
        %v1014 = vunpack.c.h.b16 %v693
        %v1015 = vunpack.c.l.b16 %v694
        %v1016 = vunpack.c.h.b16 %v694
        %v1017 = vunpack.c.l.b16 %v695
        %v1018 = vunpack.c.h.b16 %v695
        %v1019 = vunpack.c.l.b16 %v696
        %v1020 = vunpack.c.h.b16 %v696
        %v1021 = vunpack.c.l.b16 %v697
        %v1022 = vunpack.c.h.b16 %v697
        %v1023 = vunpack.c.l.b16 %v698
        %v1024 = vunpack.c.h.b16 %v698
        %v1025 = vunpack.c.l.b16 %v699
        %v1026 = vunpack.c.h.b16 %v699
        %v1027 = vunpack.c.l.b16 %v700
        %v1028 = vunpack.c.h.b16 %v700
        %v1029 = vunpack.c.l.b16 %v701
        %v1030 = vunpack.c.h.b16 %v701
        %v1031 = vunpack.c.l.b16 %v702
        %v1032 = vunpack.c.h.b16 %v702
        %v1033 = vunpack.c.l.b16 %v703
        %v1034 = vunpack.c.h.b16 %v703
        %v1035 = vunpack.c.l.b16 %v704
        %v1036 = vunpack.c.h.b16 %v704
        %v1037 = vunpack.c.l.b16 %v705
        %v1038 = vunpack.c.h.b16 %v705
        %v1039 = vunpack.c.l.b16 %v706
        %v1040 = vunpack.c.h.b16 %v706
        %v1041 = vunpack.c.l.b16 %v707
        %v1042 = vunpack.c.h.b16 %v707
        %v1043 = vunpack.c.l.b16 %v708
        %v1044 = vunpack.c.h.b16 %v708
        %v1045 = vunpack.c.l.b16 %v709
        %v1046 = vunpack.c.h.b16 %v709
        %v1047 = vunpack.c.l.b16 %v710
        %v1048 = vunpack.c.h.b16 %v710
        %v1049 = vunpack.c.l.b16 %v711
        %v1050 = vunpack.c.h.b16 %v711
        %v1051 = vunpack.c.l.b16 %v712
        %v1052 = vunpack.c.h.b16 %v712
        %v1053 = vunpack.c.l.b16 %v713
        %v1054 = vunpack.c.h.b16 %v713
        %v1055 = vunpack.c.l.b16 %v714
        %v1056 = vunpack.c.h.b16 %v714
        %v1057 = vunpack.c.l.b16 %v715
        %v1058 = vunpack.c.h.b16 %v715
        %v1059 = vunpack.c.l.b16 %v716
        %v1060 = vunpack.c.h.b16 %v716
        %v1061 = vunpack.c.l.b16 %v717
        %v1062 = vunpack.c.h.b16 %v717
        %v1063 = vunpack.c.l.b16 %v718
        %v1064 = vunpack.c.h.b16 %v718
        %v1065 = vunpack.c.l.b16 %v719
        %v1066 = vunpack.c.h.b16 %v719
        %v1067 = vunpack.c.l.b16 %v720
        %v1068 = vunpack.c.h.b16 %v720
        %v1069 = vunpack.c.l.b16 %v721
        %v1070 = vunpack.c.h.b16 %v721
        %v1071 = vunpack.c.l.b16 %v722
        %v1072 = vunpack.c.h.b16 %v722
        %v1073 = vunpack.c.l.b16 %v723
        %v1074 = vunpack.c.h.b16 %v723
        %v1075 = vunpack.c.l.b16 %v724
        %v1076 = vunpack.c.h.b16 %v724
        %v1077 = vunpack.c.l.b16 %v725
        %v1078 = vunpack.c.h.b16 %v725
        %v1079 = vunpack.c.l.b16 %v726
        %v1080 = vunpack.c.h.b16 %v726
        %v1081 = vunpack.c.l.b16 %v727
        %v1082 = vunpack.c.h.b16 %v727
        %v1083 = vunpack.c.l.b16 %v728
        %v1084 = vunpack.c.h.b16 %v728
        %v1085 = vunpack.c.l.b16 %v729
        %v1086 = vunpack.c.h.b16 %v729
        %v1087 = vunpack.c.l.b16 %v730
        %v1088 = vunpack.c.h.b16 %v730
        %v1089 = vunpack.c.l.b16 %v731
        %v1090 = vunpack.c.h.b16 %v731
        %v1091 = vunpack.c.l.b16 %v732
        %v1092 = vunpack.c.h.b16 %v732
        %v1093 = vunpack.c.l.b16 %v733
        %v1094 = vunpack.c.h.b16 %v733
        %v1095 = vunpack.c.l.b16 %v734
        %v1096 = vunpack.c.h.b16 %v734
        %v1097 = vunpack.c.l.b16 %v735
        %v1098 = vunpack.c.h.b16 %v735
        %v1099 = vunpack.c.l.b16 %v736
        %v1100 = vunpack.c.h.b16 %v736
        %v1101 = vunpack.c.l.b16 %v737
        %v1102 = vunpack.c.h.b16 %v737
        %v1103 = vunpack.c.l.b16 %v738
        %v1104 = vunpack.c.h.b16 %v738
        %v1105 = vunpack.c.l.b16 %v739
        %v1106 = vunpack.c.h.b16 %v739
        %v1107 = vunpack.c.l.b16 %v740
        %v1108 = vunpack.c.h.b16 %v740
        %v1109 = vunpack.c.l.b16 %v741
        %v1110 = vunpack.c.h.b16 %v741
        %v1111 = vunpack.c.l.b16 %v742
        %v1112 = vunpack.c.h.b16 %v742
        %v1113 = vunpack.c.l.b16 %v743
        %v1114 = vunpack.c.h.b16 %v743
        %v1115 = vunpack.c.l.b16 %v744
        %v1116 = vunpack.c.h.b16 %v744
        %v1117 = vunpack.c.l.b16 %v745
        %v1118 = vunpack.c.h.b16 %v745
        %v1119 = vunpack.c.l.b16 %v746
        %v1120 = vunpack.c.h.b16 %v746
        %v1121 = vunpack.c.l.b16 %v747
        %v1122 = vunpack.c.h.b16 %v747
        %v1123 = vunpack.c.l.b16 %v748
        %v1124 = vunpack.c.h.b16 %v748
        %v1125 = vunpack.c.l.b16 %v749
        %v1126 = vunpack.c.h.b16 %v749
        %v1127 = vunpack.c.l.b16 %v750
        %v1128 = vunpack.c.h.b16 %v750
        %v1129 = vunpack.c.l.b16 %v751
        %v1130 = vunpack.c.h.b16 %v751
        %v1131 = vunpack.c.l.b16 %v752
        %v1132 = vunpack.c.h.b16 %v752
        %v1133 = vunpack.c.l.b16 %v753
        %v1134 = vunpack.c.h.b16 %v753
        %v1135 = vunpack.c.l.b16 %v754
        %v1136 = vunpack.c.h.b16 %v754
        %v1137 = vunpack.c.l.b16 %v755
        %v1138 = vunpack.c.h.b16 %v755
        %v1139 = vunpack.c.l.b16 %v756
        %v1140 = vunpack.c.h.b16 %v756
        %v1141 = vunpack.c.l.b16 %v757
        %v1142 = vunpack.c.h.b16 %v757
        %v1143 = vunpack.c.l.b16 %v758
        %v1144 = vunpack.c.h.b16 %v758
        %v1145 = vunpack.c.l.b16 %v759
        %v1146 = vunpack.c.h.b16 %v759
        %v1147 = vunpack.c.l.b16 %v760
        %v1148 = vunpack.c.h.b16 %v760
        %v1149 = vunpack.c.l.b16 %v761
        %v1150 = vunpack.c.h.b16 %v761
        %v1151 = vunpack.c.l.b16 %v762
        %v1152 = vunpack.c.h.b16 %v762
        %v1153 = vunpack.c.l.b16 %v763
        %v1154 = vunpack.c.h.b16 %v763
        %v1155 = vunpack.c.l.b16 %v764
        %v1156 = vunpack.c.h.b16 %v764
        %v1157 = vunpack.c.l.b16 %v765
        %v1158 = vunpack.c.h.b16 %v765
        %v1159 = vunpack.c.l.b16 %v766
        %v1160 = vunpack.c.h.b16 %v766
        %v1161 = vpack.c.b16 %v909, %v905
        %v1162 = vpack.c.b16 %v910, %v906
        %v1163 = vpack.c.b16 %v911, %v907
        %v1164 = vpack.c.b16 %v912, %v908
        %v1165 = vpack.c.b16 %v917, %v913
        %v1166 = vpack.c.b16 %v918, %v914
        %v1167 = vpack.c.b16 %v919, %v915
        %v1168 = vpack.c.b16 %v920, %v916
        %v1169 = vpack.c.b16 %v925, %v921
        %v1170 = vpack.c.b16 %v926, %v922
        %v1171 = vpack.c.b16 %v927, %v923
        %v1172 = vpack.c.b16 %v928, %v924
        %v1173 = vpack.c.b16 %v933, %v929
        %v1174 = vpack.c.b16 %v934, %v930
        %v1175 = vpack.c.b16 %v935, %v931
        %v1176 = vpack.c.b16 %v936, %v932
        %v1177 = vpack.c.b16 %v941, %v937
        %v1178 = vpack.c.b16 %v942, %v938
        %v1179 = vpack.c.b16 %v943, %v939
        %v1180 = vpack.c.b16 %v944, %v940
        %v1181 = vpack.c.b16 %v949, %v945
        %v1182 = vpack.c.b16 %v950, %v946
        %v1183 = vpack.c.b16 %v951, %v947
        %v1184 = vpack.c.b16 %v952, %v948
        %v1185 = vpack.c.b16 %v957, %v953
        %v1186 = vpack.c.b16 %v958, %v954
        %v1187 = vpack.c.b16 %v959, %v955
        %v1188 = vpack.c.b16 %v960, %v956
        %v1189 = vpack.c.b16 %v965, %v961
        %v1190 = vpack.c.b16 %v966, %v962
        %v1191 = vpack.c.b16 %v967, %v963
        %v1192 = vpack.c.b16 %v968, %v964
        %v1193 = vpack.c.b16 %v973, %v969
        %v1194 = vpack.c.b16 %v974, %v970
        %v1195 = vpack.c.b16 %v975, %v971
        %v1196 = vpack.c.b16 %v976, %v972
        %v1197 = vpack.c.b16 %v981, %v977
        %v1198 = vpack.c.b16 %v982, %v978
        %v1199 = vpack.c.b16 %v983, %v979
        %v1200 = vpack.c.b16 %v984, %v980
        %v1201 = vpack.c.b16 %v989, %v985
        %v1202 = vpack.c.b16 %v990, %v986
        %v1203 = vpack.c.b16 %v991, %v987
        %v1204 = vpack.c.b16 %v992, %v988
        %v1205 = vpack.c.b16 %v997, %v993
        %v1206 = vpack.c.b16 %v998, %v994
        %v1207 = vpack.c.b16 %v999, %v995
        %v1208 = vpack.c.b16 %v1000, %v996
        %v1209 = vpack.c.b16 %v1005, %v1001
        %v1210 = vpack.c.b16 %v1006, %v1002
        %v1211 = vpack.c.b16 %v1007, %v1003
        %v1212 = vpack.c.b16 %v1008, %v1004
        %v1213 = vpack.c.b16 %v1013, %v1009
        %v1214 = vpack.c.b16 %v1014, %v1010
        %v1215 = vpack.c.b16 %v1015, %v1011
        %v1216 = vpack.c.b16 %v1016, %v1012
        %v1217 = vpack.c.b16 %v1021, %v1017
        %v1218 = vpack.c.b16 %v1022, %v1018
        %v1219 = vpack.c.b16 %v1023, %v1019
        %v1220 = vpack.c.b16 %v1024, %v1020
        %v1221 = vpack.c.b16 %v1029, %v1025
        %v1222 = vpack.c.b16 %v1030, %v1026
        %v1223 = vpack.c.b16 %v1031, %v1027
        %v1224 = vpack.c.b16 %v1032, %v1028
        %v1225 = vpack.c.b16 %v1037, %v1033
        %v1226 = vpack.c.b16 %v1038, %v1034
        %v1227 = vpack.c.b16 %v1039, %v1035
        %v1228 = vpack.c.b16 %v1040, %v1036
        %v1229 = vpack.c.b16 %v1045, %v1041
        %v1230 = vpack.c.b16 %v1046, %v1042
        %v1231 = vpack.c.b16 %v1047, %v1043
        %v1232 = vpack.c.b16 %v1048, %v1044
        %v1233 = vpack.c.b16 %v1053, %v1049
        %v1234 = vpack.c.b16 %v1054, %v1050
        %v1235 = vpack.c.b16 %v1055, %v1051
        %v1236 = vpack.c.b16 %v1056, %v1052
        %v1237 = vpack.c.b16 %v1061, %v1057
        %v1238 = vpack.c.b16 %v1062, %v1058
        %v1239 = vpack.c.b16 %v1063, %v1059
        %v1240 = vpack.c.b16 %v1064, %v1060
        %v1241 = vpack.c.b16 %v1069, %v1065
        %v1242 = vpack.c.b16 %v1070, %v1066
        %v1243 = vpack.c.b16 %v1071, %v1067
        %v1244 = vpack.c.b16 %v1072, %v1068
        %v1245 = vpack.c.b16 %v1077, %v1073
        %v1246 = vpack.c.b16 %v1078, %v1074
        %v1247 = vpack.c.b16 %v1079, %v1075
        %v1248 = vpack.c.b16 %v1080, %v1076
        %v1249 = vpack.c.b16 %v1085, %v1081
        %v1250 = vpack.c.b16 %v1086, %v1082
        %v1251 = vpack.c.b16 %v1087, %v1083
        %v1252 = vpack.c.b16 %v1088, %v1084
        %v1253 = vpack.c.b16 %v1093, %v1089
        %v1254 = vpack.c.b16 %v1094, %v1090
        %v1255 = vpack.c.b16 %v1095, %v1091
        %v1256 = vpack.c.b16 %v1096, %v1092
        %v1257 = vpack.c.b16 %v1101, %v1097
        %v1258 = vpack.c.b16 %v1102, %v1098
        %v1259 = vpack.c.b16 %v1103, %v1099
        %v1260 = vpack.c.b16 %v1104, %v1100
        %v1261 = vpack.c.b16 %v1109, %v1105
        %v1262 = vpack.c.b16 %v1110, %v1106
        %v1263 = vpack.c.b16 %v1111, %v1107
        %v1264 = vpack.c.b16 %v1112, %v1108
        %v1265 = vpack.c.b16 %v1117, %v1113
        %v1266 = vpack.c.b16 %v1118, %v1114
        %v1267 = vpack.c.b16 %v1119, %v1115
        %v1268 = vpack.c.b16 %v1120, %v1116
        %v1269 = vpack.c.b16 %v1125, %v1121
        %v1270 = vpack.c.b16 %v1126, %v1122
        %v1271 = vpack.c.b16 %v1127, %v1123
        %v1272 = vpack.c.b16 %v1128, %v1124
        %v1273 = vpack.c.b16 %v1133, %v1129
        %v1274 = vpack.c.b16 %v1134, %v1130
        %v1275 = vpack.c.b16 %v1135, %v1131
        %v1276 = vpack.c.b16 %v1136, %v1132
        %v1277 = vpack.c.b16 %v1141, %v1137
        %v1278 = vpack.c.b16 %v1142, %v1138
        %v1279 = vpack.c.b16 %v1143, %v1139
        %v1280 = vpack.c.b16 %v1144, %v1140
        %v1281 = vpack.c.b16 %v1149, %v1145
        %v1282 = vpack.c.b16 %v1150, %v1146
        %v1283 = vpack.c.b16 %v1151, %v1147
        %v1284 = vpack.c.b16 %v1152, %v1148
        %v1285 = vpack.c.b16 %v1157, %v1153
        %v1286 = vpack.c.b16 %v1158, %v1154
        %v1287 = vpack.c.b16 %v1159, %v1155
        %v1288 = vpack.c.b16 %v1160, %v1156
        %1417 = vmatpush.bf16.msra.mxu0 %v1189
        %1418 = vmatpush.bf16.msra.mxu0 %v1185
        %1419 = vmatpush.bf16.msra.mxu0 %v1181
        %1420 = vmatpush.bf16.msra.mxu0 %v1177
        %1421 = vmatpush.bf16.msra.mxu0 %v1173
        %1422 = vmatpush.bf16.msra.mxu0 %v1169
        %1423 = vmatpush.bf16.msra.mxu0 %v1165
        %1424 = vmatpush.bf16.msra.mxu0 %v1161
        %1425 = vmatmul.bf16.gmra.mxu0 %v635
        %v1426 = vpop.f32.mrf.mxu0
        %v1427 = vadd.f32 %v769, %v1426
        %v1428 = vpop.f32.mrf.mxu0
        %1429 = vdwg.mxu0
        %1430 = vmatpush.bf16.msra.mxu0 %v1221
        %1431 = vmatpush.bf16.msra.mxu0 %v1217
        %1432 = vmatpush.bf16.msra.mxu0 %v1213
        %1433 = vmatpush.bf16.msra.mxu0 %v1209
        %1434 = vmatpush.bf16.msra.mxu0 %v1205
        %1435 = vmatpush.bf16.msra.mxu0 %v1201
        %1436 = vmatpush.bf16.msra.mxu0 %v1197
        %1437 = vmatpush.bf16.msra.mxu0 %v1193
        %1438 = vmatmul.bf16.gmra.mxu0 %v636
        %v1439 = vpop.f32.mrf.mxu0
        %v1440 = vadd.f32 %v1427, %v1439
        %v1441 = vpop.f32.mrf.mxu0
        %1442 = vdwg.mxu0
        %1443 = vmatpush.bf16.msra.mxu0 %v1253
        %1444 = vmatpush.bf16.msra.mxu0 %v1249
        %1445 = vmatpush.bf16.msra.mxu0 %v1245
        %1446 = vmatpush.bf16.msra.mxu0 %v1241
        %1447 = vmatpush.bf16.msra.mxu0 %v1237
        %1448 = vmatpush.bf16.msra.mxu0 %v1233
        %1449 = vmatpush.bf16.msra.mxu0 %v1229
        %1450 = vmatpush.bf16.msra.mxu0 %v1225
        %1451 = vmatmul.bf16.gmra.mxu0 %v637
        %v1452 = vpop.f32.mrf.mxu0
        %v1453 = vadd.f32 %v1440, %v1452
        %v1454 = vpop.f32.mrf.mxu0
        %1455 = vdwg.mxu0
        %1456 = vmatpush.bf16.msra.mxu0 %v1285
        %1457 = vmatpush.bf16.msra.mxu0 %v1281
        %1458 = vmatpush.bf16.msra.mxu0 %v1277
        %1459 = vmatpush.bf16.msra.mxu0 %v1273
        %1460 = vmatpush.bf16.msra.mxu0 %v1269
        %1461 = vmatpush.bf16.msra.mxu0 %v1265
        %1462 = vmatpush.bf16.msra.mxu0 %v1261
        %1463 = vmatpush.bf16.msra.mxu0 %v1257
        %1464 = vmatmul.bf16.gmra.mxu0 %v638
        %v1465 = vpop.f32.mrf.mxu0
        %v1466 = vadd.f32 %v1453, %v1465
        %v1467 = vpop.f32.mrf.mxu0
        %1468 = vdwg.mxu0
        %1469 = vmatpush.bf16.msra.mxu0 %v1190
        %1470 = vmatpush.bf16.msra.mxu0 %v1186
        %1471 = vmatpush.bf16.msra.mxu0 %v1182
        %1472 = vmatpush.bf16.msra.mxu0 %v1178
        %1473 = vmatpush.bf16.msra.mxu0 %v1174
        %1474 = vmatpush.bf16.msra.mxu0 %v1170
        %1475 = vmatpush.bf16.msra.mxu0 %v1166
        %1476 = vmatpush.bf16.msra.mxu0 %v1162
        %1477 = vmatmul.bf16.gmra.mxu0 %v635
        %v1478 = vpop.f32.mrf.mxu0
        %v1479 = vadd.f32 %v770, %v1478
        %v1480 = vpop.f32.mrf.mxu0
        %1481 = vdwg.mxu0
        %1482 = vmatpush.bf16.msra.mxu0 %v1222
        %1483 = vmatpush.bf16.msra.mxu0 %v1218
        %1484 = vmatpush.bf16.msra.mxu0 %v1214
        %1485 = vmatpush.bf16.msra.mxu0 %v1210
        %1486 = vmatpush.bf16.msra.mxu0 %v1206
        %1487 = vmatpush.bf16.msra.mxu0 %v1202
        %1488 = vmatpush.bf16.msra.mxu0 %v1198
        %1489 = vmatpush.bf16.msra.mxu0 %v1194
        %1490 = vmatmul.bf16.gmra.mxu0 %v636
        %v1491 = vpop.f32.mrf.mxu0
        %v1492 = vadd.f32 %v1479, %v1491
        %v1493 = vpop.f32.mrf.mxu0
        %1494 = vdwg.mxu0
        %1495 = vmatpush.bf16.msra.mxu0 %v1254
        %1496 = vmatpush.bf16.msra.mxu0 %v1250
        %1497 = vmatpush.bf16.msra.mxu0 %v1246
        %1498 = vmatpush.bf16.msra.mxu0 %v1242
        %1499 = vmatpush.bf16.msra.mxu0 %v1238
        %1500 = vmatpush.bf16.msra.mxu0 %v1234
        %1501 = vmatpush.bf16.msra.mxu0 %v1230
        %1502 = vmatpush.bf16.msra.mxu0 %v1226
        %1503 = vmatmul.bf16.gmra.mxu0 %v637
        %v1504 = vpop.f32.mrf.mxu0
        %v1505 = vadd.f32 %v1492, %v1504
        %v1506 = vpop.f32.mrf.mxu0
        %1507 = vdwg.mxu0
        %1508 = vmatpush.bf16.msra.mxu0 %v1286
        %1509 = vmatpush.bf16.msra.mxu0 %v1282
        %1510 = vmatpush.bf16.msra.mxu0 %v1278
        %1511 = vmatpush.bf16.msra.mxu0 %v1274
        %1512 = vmatpush.bf16.msra.mxu0 %v1270
        %1513 = vmatpush.bf16.msra.mxu0 %v1266
        %1514 = vmatpush.bf16.msra.mxu0 %v1262
        %1515 = vmatpush.bf16.msra.mxu0 %v1258
        %1516 = vmatmul.bf16.gmra.mxu0 %v638
        %v1517 = vpop.f32.mrf.mxu0
        %v1518 = vadd.f32 %v1505, %v1517
        %v1519 = vpop.f32.mrf.mxu0
        %1520 = vdwg.mxu0
        %1521 = vmatpush.bf16.msra.mxu0 %v1191
        %1522 = vmatpush.bf16.msra.mxu0 %v1187
        %1523 = vmatpush.bf16.msra.mxu0 %v1183
        %1524 = vmatpush.bf16.msra.mxu0 %v1179
        %1525 = vmatpush.bf16.msra.mxu0 %v1175
        %1526 = vmatpush.bf16.msra.mxu0 %v1171
        %1527 = vmatpush.bf16.msra.mxu0 %v1167
        %1528 = vmatpush.bf16.msra.mxu0 %v1163
        %1529 = vmatmul.bf16.gmra.mxu0 %v635
        %v1530 = vpop.f32.mrf.mxu0
        %v1531 = vadd.f32 %v771, %v1530
        %v1532 = vpop.f32.mrf.mxu0
        %1533 = vdwg.mxu0
        %1534 = vmatpush.bf16.msra.mxu0 %v1223
        %1535 = vmatpush.bf16.msra.mxu0 %v1219
        %1536 = vmatpush.bf16.msra.mxu0 %v1215
        %1537 = vmatpush.bf16.msra.mxu0 %v1211
        %1538 = vmatpush.bf16.msra.mxu0 %v1207
        %1539 = vmatpush.bf16.msra.mxu0 %v1203
        %1540 = vmatpush.bf16.msra.mxu0 %v1199
        %1541 = vmatpush.bf16.msra.mxu0 %v1195
        %1542 = vmatmul.bf16.gmra.mxu0 %v636
        %v1543 = vpop.f32.mrf.mxu0
        %v1544 = vadd.f32 %v1531, %v1543
        %v1545 = vpop.f32.mrf.mxu0
        %1546 = vdwg.mxu0
        %1547 = vmatpush.bf16.msra.mxu0 %v1255
        %1548 = vmatpush.bf16.msra.mxu0 %v1251
        %1549 = vmatpush.bf16.msra.mxu0 %v1247
        %1550 = vmatpush.bf16.msra.mxu0 %v1243
        %1551 = vmatpush.bf16.msra.mxu0 %v1239
        %1552 = vmatpush.bf16.msra.mxu0 %v1235
        %1553 = vmatpush.bf16.msra.mxu0 %v1231
        %1554 = vmatpush.bf16.msra.mxu0 %v1227
        %1555 = vmatmul.bf16.gmra.mxu0 %v637
        %v1556 = vpop.f32.mrf.mxu0
        %v1557 = vadd.f32 %v1544, %v1556
        %v1558 = vpop.f32.mrf.mxu0
        %1559 = vdwg.mxu0
        %1560 = vmatpush.bf16.msra.mxu0 %v1287
        %1561 = vmatpush.bf16.msra.mxu0 %v1283
        %1562 = vmatpush.bf16.msra.mxu0 %v1279
        %1563 = vmatpush.bf16.msra.mxu0 %v1275
        %1564 = vmatpush.bf16.msra.mxu0 %v1271
        %1565 = vmatpush.bf16.msra.mxu0 %v1267
        %1566 = vmatpush.bf16.msra.mxu0 %v1263
        %1567 = vmatpush.bf16.msra.mxu0 %v1259
        %1568 = vmatmul.bf16.gmra.mxu0 %v638
        %v1569 = vpop.f32.mrf.mxu0
        %v1570 = vadd.f32 %v1557, %v1569
        %v1571 = vpop.f32.mrf.mxu0
        %1572 = vdwg.mxu0
        %1573 = vmatpush.bf16.msra.mxu0 %v1192
        %1574 = vmatpush.bf16.msra.mxu0 %v1188
        %1575 = vmatpush.bf16.msra.mxu0 %v1184
        %1576 = vmatpush.bf16.msra.mxu0 %v1180
        %1577 = vmatpush.bf16.msra.mxu0 %v1176
        %1578 = vmatpush.bf16.msra.mxu0 %v1172
        %1579 = vmatpush.bf16.msra.mxu0 %v1168
        %1580 = vmatpush.bf16.msra.mxu0 %v1164
        %1581 = vmatmul.bf16.gmra.mxu0 %v635
        %v1582 = vpop.f32.mrf.mxu0
        %v1583 = vadd.f32 %v772, %v1582
        %v1584 = vpop.f32.mrf.mxu0
        %1585 = vdwg.mxu0
        %1586 = vmatpush.bf16.msra.mxu0 %v1224
        %1587 = vmatpush.bf16.msra.mxu0 %v1220
        %1588 = vmatpush.bf16.msra.mxu0 %v1216
        %1589 = vmatpush.bf16.msra.mxu0 %v1212
        %1590 = vmatpush.bf16.msra.mxu0 %v1208
        %1591 = vmatpush.bf16.msra.mxu0 %v1204
        %1592 = vmatpush.bf16.msra.mxu0 %v1200
        %1593 = vmatpush.bf16.msra.mxu0 %v1196
        %1594 = vmatmul.bf16.gmra.mxu0 %v636
        %v1595 = vpop.f32.mrf.mxu0
        %v1596 = vadd.f32 %v1583, %v1595
        %v1597 = vpop.f32.mrf.mxu0
        %1598 = vdwg.mxu0
        %1599 = vmatpush.bf16.msra.mxu0 %v1256
        %1600 = vmatpush.bf16.msra.mxu0 %v1252
        %1601 = vmatpush.bf16.msra.mxu0 %v1248
        %1602 = vmatpush.bf16.msra.mxu0 %v1244
        %1603 = vmatpush.bf16.msra.mxu0 %v1240
        %1604 = vmatpush.bf16.msra.mxu0 %v1236
        %1605 = vmatpush.bf16.msra.mxu0 %v1232
        %1606 = vmatpush.bf16.msra.mxu0 %v1228
        %1607 = vmatmul.bf16.gmra.mxu0 %v637
        %v1608 = vpop.f32.mrf.mxu0
        %v1609 = vadd.f32 %v1596, %v1608
        %v1610 = vpop.f32.mrf.mxu0
        %1611 = vdwg.mxu0
        %1612 = vmatpush.bf16.msra.mxu0 %v1288
        %1613 = vmatpush.bf16.msra.mxu0 %v1284
        %1614 = vmatpush.bf16.msra.mxu0 %v1280
        %1615 = vmatpush.bf16.msra.mxu0 %v1276
        %1616 = vmatpush.bf16.msra.mxu0 %v1272
        %1617 = vmatpush.bf16.msra.mxu0 %v1268
        %1618 = vmatpush.bf16.msra.mxu0 %v1264
        %1619 = vmatpush.bf16.msra.mxu0 %v1260
        %1620 = vmatmul.bf16.gmra.mxu0 %v638
        %v1621 = vpop.f32.mrf.mxu0
        %v1622 = vadd.f32 %v1609, %v1621
        %v1623 = vpop.f32.mrf.mxu0
        %1624 = vdwg.mxu0
        %v1625 = vmax.f32 %v1466, 0.0
        %v1626 = vmax.f32 %v1518, 0.0
        %v1627 = vmax.f32 %v1570, 0.0
        %v1628 = vmax.f32 %v1622, 0.0
        %v1629 = vpack.c.bf16 %v1625, %v1625
        %v1630 = vpack.c.bf16 %v1626, %v1626
        %v1631 = vpack.c.bf16 %v1627, %v1627
        %v1632 = vpack.c.bf16 %v1628, %v1628
        %v1633 = vld [vmem:[#allocation11] sm:$0xf]
        %v1634 = vld [vmem:[#allocation11 + $0x4] sm:$0xf]
        %v1635 = vld [vmem:[#allocation11 + $0x8] sm:$0xf]
        %v1636 = vld [vmem:[#allocation11 + $0xc] sm:$0xf]
        %v1637 = vld [vmem:[#allocation11 + $0x10] sm:$0xf]
        %v1638 = vld [vmem:[#allocation11 + $0x14] sm:$0xf]
        %v1639 = vld [vmem:[#allocation11 + $0x18] sm:$0xf]
        %v1640 = vld [vmem:[#allocation11 + $0x1c] sm:$0xf]
        %v1641 = vld [vmem:[#allocation11 + $0x20] sm:$0xf]
        %v1642 = vld [vmem:[#allocation11 + $0x24] sm:$0xf]
        %v1643 = vld [vmem:[#allocation11 + $0x28] sm:$0xf]
        %v1644 = vld [vmem:[#allocation11 + $0x2c] sm:$0xf]
        %v1645 = vld [vmem:[#allocation11 + $0x30] sm:$0xf]
        %v1646 = vld [vmem:[#allocation11 + $0x34] sm:$0xf]
        %v1647 = vld [vmem:[#allocation11 + $0x38] sm:$0xf]
        %v1648 = vld [vmem:[#allocation11 + $0x3c] sm:$0xf]
        %v1649 = vld [vmem:[#allocation11 + $0x40] sm:$0xf]
        %v1650 = vld [vmem:[#allocation11 + $0x44] sm:$0xf]
        %v1651 = vld [vmem:[#allocation11 + $0x48] sm:$0xf]
        %v1652 = vld [vmem:[#allocation11 + $0x4c] sm:$0xf]
        %v1653 = vld [vmem:[#allocation11 + $0x50] sm:$0xf]
        %v1654 = vld [vmem:[#allocation11 + $0x54] sm:$0xf]
        %v1655 = vld [vmem:[#allocation11 + $0x58] sm:$0xf]
        %v1656 = vld [vmem:[#allocation11 + $0x5c] sm:$0xf]
        %v1657 = vld [vmem:[#allocation11 + $0x60] sm:$0xf]
        %v1658 = vld [vmem:[#allocation11 + $0x64] sm:$0xf]
        %v1659 = vld [vmem:[#allocation11 + $0x68] sm:$0xf]
        %v1660 = vld [vmem:[#allocation11 + $0x6c] sm:$0xf]
        %v1661 = vld [vmem:[#allocation11 + $0x70] sm:$0xf]
        %v1662 = vld [vmem:[#allocation11 + $0x74] sm:$0xf]
        %v1663 = vld [vmem:[#allocation11 + $0x78] sm:$0xf]
        %v1664 = vld [vmem:[#allocation11 + $0x7c] sm:$0xf]
        %v1665 = vld [vmem:[#allocation11 + $0x80] sm:$0xf]
        %v1666 = vld [vmem:[#allocation11 + $0x84] sm:$0xf]
        %v1667 = vld [vmem:[#allocation11 + $0x88] sm:$0xf]
        %v1668 = vld [vmem:[#allocation11 + $0x8c] sm:$0xf]
        %v1669 = vld [vmem:[#allocation11 + $0x90] sm:$0xf]
        %v1670 = vld [vmem:[#allocation11 + $0x94] sm:$0xf]
        %v1671 = vld [vmem:[#allocation11 + $0x98] sm:$0xf]
        %v1672 = vld [vmem:[#allocation11 + $0x9c] sm:$0xf]
        %v1673 = vld [vmem:[#allocation11 + $0xa0] sm:$0xf]
        %v1674 = vld [vmem:[#allocation11 + $0xa4] sm:$0xf]
        %v1675 = vld [vmem:[#allocation11 + $0xa8] sm:$0xf]
        %v1676 = vld [vmem:[#allocation11 + $0xac] sm:$0xf]
        %v1677 = vld [vmem:[#allocation11 + $0xb0] sm:$0xf]
        %v1678 = vld [vmem:[#allocation11 + $0xb4] sm:$0xf]
        %v1679 = vld [vmem:[#allocation11 + $0xb8] sm:$0xf]
        %v1680 = vld [vmem:[#allocation11 + $0xbc] sm:$0xf]
        %v1681 = vld [vmem:[#allocation11 + $0xc0] sm:$0xf]
        %v1682 = vld [vmem:[#allocation11 + $0xc4] sm:$0xf]
        %v1683 = vld [vmem:[#allocation11 + $0xc8] sm:$0xf]
        %v1684 = vld [vmem:[#allocation11 + $0xcc] sm:$0xf]
        %v1685 = vld [vmem:[#allocation11 + $0xd0] sm:$0xf]
        %v1686 = vld [vmem:[#allocation11 + $0xd4] sm:$0xf]
        %v1687 = vld [vmem:[#allocation11 + $0xd8] sm:$0xf]
        %v1688 = vld [vmem:[#allocation11 + $0xdc] sm:$0xf]
        %v1689 = vld [vmem:[#allocation11 + $0xe0] sm:$0xf]
        %v1690 = vld [vmem:[#allocation11 + $0xe4] sm:$0xf]
        %v1691 = vld [vmem:[#allocation11 + $0xe8] sm:$0xf]
        %v1692 = vld [vmem:[#allocation11 + $0xec] sm:$0xf]
        %v1693 = vld [vmem:[#allocation11 + $0xf0] sm:$0xf]
        %v1694 = vld [vmem:[#allocation11 + $0xf4] sm:$0xf]
        %v1695 = vld [vmem:[#allocation11 + $0xf8] sm:$0xf]
        %v1696 = vld [vmem:[#allocation11 + $0xfc] sm:$0xf]
        %v1697 = vld [vmem:[%s6] sm:$0x1]
        %v1699 = vperm.slane %v1697, 0
        %v1765 = vunpack.c.l.b16 %v1633
        %v1766 = vunpack.c.l.b16 %v1634
        %v1767 = vunpack.c.l.b16 %v1635
        %v1768 = vunpack.c.l.b16 %v1636
        %v1769 = vunpack.c.l.b16 %v1637
        %v1770 = vunpack.c.l.b16 %v1638
        %v1771 = vunpack.c.l.b16 %v1639
        %v1772 = vunpack.c.l.b16 %v1640
        %v1773 = vunpack.c.l.b16 %v1641
        %v1774 = vunpack.c.l.b16 %v1642
        %v1775 = vunpack.c.l.b16 %v1643
        %v1776 = vunpack.c.l.b16 %v1644
        %v1777 = vunpack.c.l.b16 %v1645
        %v1778 = vunpack.c.l.b16 %v1646
        %v1779 = vunpack.c.l.b16 %v1647
        %v1780 = vunpack.c.l.b16 %v1648
        %v1781 = vunpack.c.l.b16 %v1649
        %v1782 = vunpack.c.l.b16 %v1650
        %v1783 = vunpack.c.l.b16 %v1651
        %v1784 = vunpack.c.l.b16 %v1652
        %v1785 = vunpack.c.l.b16 %v1653
        %v1786 = vunpack.c.l.b16 %v1654
        %v1787 = vunpack.c.l.b16 %v1655
        %v1788 = vunpack.c.l.b16 %v1656
        %v1789 = vunpack.c.l.b16 %v1657
        %v1790 = vunpack.c.l.b16 %v1658
        %v1791 = vunpack.c.l.b16 %v1659
        %v1792 = vunpack.c.l.b16 %v1660
        %v1793 = vunpack.c.l.b16 %v1661
        %v1794 = vunpack.c.l.b16 %v1662
        %v1795 = vunpack.c.l.b16 %v1663
        %v1796 = vunpack.c.l.b16 %v1664
        %v1797 = vunpack.c.l.b16 %v1665
        %v1798 = vunpack.c.l.b16 %v1666
        %v1799 = vunpack.c.l.b16 %v1667
        %v1800 = vunpack.c.l.b16 %v1668
        %v1801 = vunpack.c.l.b16 %v1669
        %v1802 = vunpack.c.l.b16 %v1670
        %v1803 = vunpack.c.l.b16 %v1671
        %v1804 = vunpack.c.l.b16 %v1672
        %v1805 = vunpack.c.l.b16 %v1673
        %v1806 = vunpack.c.l.b16 %v1674
        %v1807 = vunpack.c.l.b16 %v1675
        %v1808 = vunpack.c.l.b16 %v1676
        %v1809 = vunpack.c.l.b16 %v1677
        %v1810 = vunpack.c.l.b16 %v1678
        %v1811 = vunpack.c.l.b16 %v1679
        %v1812 = vunpack.c.l.b16 %v1680
        %v1813 = vunpack.c.l.b16 %v1681
        %v1814 = vunpack.c.l.b16 %v1682
        %v1815 = vunpack.c.l.b16 %v1683
        %v1816 = vunpack.c.l.b16 %v1684
        %v1817 = vunpack.c.l.b16 %v1685
        %v1818 = vunpack.c.l.b16 %v1686
        %v1819 = vunpack.c.l.b16 %v1687
        %v1820 = vunpack.c.l.b16 %v1688
        %v1821 = vunpack.c.l.b16 %v1689
        %v1822 = vunpack.c.l.b16 %v1690
        %v1823 = vunpack.c.l.b16 %v1691
        %v1824 = vunpack.c.l.b16 %v1692
        %v1825 = vunpack.c.l.b16 %v1693
        %v1826 = vunpack.c.l.b16 %v1694
        %v1827 = vunpack.c.l.b16 %v1695
        %v1828 = vunpack.c.l.b16 %v1696
        %v1829 = vpack.c.b16 %v1766, %v1765
        %v1830 = vpack.c.b16 %v1768, %v1767
        %v1831 = vpack.c.b16 %v1770, %v1769
        %v1832 = vpack.c.b16 %v1772, %v1771
        %v1833 = vpack.c.b16 %v1774, %v1773
        %v1834 = vpack.c.b16 %v1776, %v1775
        %v1835 = vpack.c.b16 %v1778, %v1777
        %v1836 = vpack.c.b16 %v1780, %v1779
        %v1837 = vpack.c.b16 %v1782, %v1781
        %v1838 = vpack.c.b16 %v1784, %v1783
        %v1839 = vpack.c.b16 %v1786, %v1785
        %v1840 = vpack.c.b16 %v1788, %v1787
        %v1841 = vpack.c.b16 %v1790, %v1789
        %v1842 = vpack.c.b16 %v1792, %v1791
        %v1843 = vpack.c.b16 %v1794, %v1793
        %v1844 = vpack.c.b16 %v1796, %v1795
        %v1845 = vpack.c.b16 %v1798, %v1797
        %v1846 = vpack.c.b16 %v1800, %v1799
        %v1847 = vpack.c.b16 %v1802, %v1801
        %v1848 = vpack.c.b16 %v1804, %v1803
        %v1849 = vpack.c.b16 %v1806, %v1805
        %v1850 = vpack.c.b16 %v1808, %v1807
        %v1851 = vpack.c.b16 %v1810, %v1809
        %v1852 = vpack.c.b16 %v1812, %v1811
        %v1853 = vpack.c.b16 %v1814, %v1813
        %v1854 = vpack.c.b16 %v1816, %v1815
        %v1855 = vpack.c.b16 %v1818, %v1817
        %v1856 = vpack.c.b16 %v1820, %v1819
        %v1857 = vpack.c.b16 %v1822, %v1821
        %v1858 = vpack.c.b16 %v1824, %v1823
        %v1859 = vpack.c.b16 %v1826, %v1825
        %v1860 = vpack.c.b16 %v1828, %v1827
        %1893 = vmatpush.bf16.msra.mxu0 %v1836
        %1894 = vmatpush.bf16.msra.mxu0 %v1835
        %1895 = vmatpush.bf16.msra.mxu0 %v1834
        %1896 = vmatpush.bf16.msra.mxu0 %v1833
        %1897 = vmatpush.bf16.msra.mxu0 %v1832
        %1898 = vmatpush.bf16.msra.mxu0 %v1831
        %1899 = vmatpush.bf16.msra.mxu0 %v1830
        %1900 = vmatpush.bf16.msra.mxu0 %v1829
        %1901 = vmatmul.bf16.gmra.mxu0 %v1629
        %v1902 = vpop.f32.mrf.mxu0
        %v1903 = vadd.f32 %v1699, %v1902
        %v1904 = vpop.f32.mrf.mxu0
        %1905 = vdwg.mxu0
        %1906 = vmatpush.bf16.msra.mxu0 %v1844
        %1907 = vmatpush.bf16.msra.mxu0 %v1843
        %1908 = vmatpush.bf16.msra.mxu0 %v1842
        %1909 = vmatpush.bf16.msra.mxu0 %v1841
        %1910 = vmatpush.bf16.msra.mxu0 %v1840
        %1911 = vmatpush.bf16.msra.mxu0 %v1839
        %1912 = vmatpush.bf16.msra.mxu0 %v1838
        %1913 = vmatpush.bf16.msra.mxu0 %v1837
        %1914 = vmatmul.bf16.gmra.mxu0 %v1630
        %v1915 = vpop.f32.mrf.mxu0
        %v1916 = vadd.f32 %v1903, %v1915
        %v1917 = vpop.f32.mrf.mxu0
        %1918 = vdwg.mxu0
        %1919 = vmatpush.bf16.msra.mxu0 %v1852
        %1920 = vmatpush.bf16.msra.mxu0 %v1851
        %1921 = vmatpush.bf16.msra.mxu0 %v1850
        %1922 = vmatpush.bf16.msra.mxu0 %v1849
        %1923 = vmatpush.bf16.msra.mxu0 %v1848
        %1924 = vmatpush.bf16.msra.mxu0 %v1847
        %1925 = vmatpush.bf16.msra.mxu0 %v1846
        %1926 = vmatpush.bf16.msra.mxu0 %v1845
        %1927 = vmatmul.bf16.gmra.mxu0 %v1631
        %v1928 = vpop.f32.mrf.mxu0
        %v1929 = vadd.f32 %v1916, %v1928
        %v1930 = vpop.f32.mrf.mxu0
        %1931 = vdwg.mxu0
        %1932 = vmatpush.bf16.msra.mxu0 %v1860
        %1933 = vmatpush.bf16.msra.mxu0 %v1859
        %1934 = vmatpush.bf16.msra.mxu0 %v1858
        %1935 = vmatpush.bf16.msra.mxu0 %v1857
        %1936 = vmatpush.bf16.msra.mxu0 %v1856
        %1937 = vmatpush.bf16.msra.mxu0 %v1855
        %1938 = vmatpush.bf16.msra.mxu0 %v1854
        %1939 = vmatpush.bf16.msra.mxu0 %v1853
        %1940 = vmatmul.bf16.gmra.mxu0 %v1632
        %v1941 = vpop.f32.mrf.mxu0
        %v1942 = vadd.f32 %v1929, %v1941
        %v1943 = vpop.f32.mrf.mxu0
        %1944 = vdwg.mxu0
        %v1945 = vtanh.pop %v1942
        %1946 = vst [vmem:[%s374] sm:$0xff] %v1945
        %s1947 = sand.u32 %s187, 1
        %s1948 = scalar_lea.sflag [#allocation4], %s1947
        %s1949 = sand.u32 %s187, 1
        %s1950 = smul.addr %s1949, 8
        %s1951 = scalar_lea.vmem [#allocation13], %s1950
        // Predicated region
        $region73: #{tpu_custom_call.1} parent=47 // pred_check
          %p1952 = pneg %p197
        $region74: #{tpu_custom_call.1} parent=47 // pred_check_branch
          %1954 = sbr.rel (%p1952) target = $region76
        $region75: #{tpu_custom_call.1} parent=47 // pred_region
          %1956 = vsyncadd %s1948, 0
          %s1957 = smul.addr %s27, 8
          %s1958 = scalar_lea.hbm %s7, %s1957
          %s1960 = sshll.u32 %s1951, 4
          %s1961 = int_to_ptr.vmem [resolvable:$true] %s1960
          %s1962 = sshll.u32 %s1958, 4
          %s1963 = int_to_ptr.hbm [resolvable:$true] %s1962
          %1965 = dma.vmem_to_hbm [thread:$0]  %s1961, 128, %s1963, %s1948
        $region76: #{tpu_custom_call.1} parent=47 // pred_fallthru
          _
      $region48: #{tpu_custom_call.1} parent=5 // pred_fallthru
        _
      %p1966 = scmp.le.s32.totalorder 2, %s22
      // Predicated region
      $region77: #{tpu_custom_call.1} parent=5 // pred_check
        %p1967 = pneg %p1966
      $region78: #{tpu_custom_call.1} parent=5 // pred_check_branch
        %1969 = sbr.rel (%p1967) target = $region80
      $region79: #{tpu_custom_call.1} parent=5 // pred_region
        %s1970 = ssub.s32 %s22, 2
        // Predicated region
        $region81: #{tpu_custom_call.1} parent=79 // pred_check
          %p1971 = pneg %p203
        $region82: #{tpu_custom_call.1} parent=79 // pred_check_branch
          %1973 = sbr.rel (%p1971) target = $region84
        $region83: #{tpu_custom_call.1} parent=79 // pred_region
          %s1974 = sand.u32 %s188, 1
          %s1975 = scalar_lea.sflag [#allocation4], %s1974
          %s1976 = sand.u32 %s188, 1
          %s1977 = smul.addr %s1976, 8
          %s1978 = scalar_lea.vmem [#allocation13], %s1977
          %1980 = dma.done %s1975, 128
        $region84: #{tpu_custom_call.1} parent=79 // pred_fallthru
          _
      $region80: #{tpu_custom_call.1} parent=5 // pred_fallthru
        _
    $region6: #{tpu_custom_call.1} parent=1 // loop_footer
      %s26 = sadd.s32 1, %s22
    $region7: #{tpu_custom_call.1} parent=1 // loop_footer_branch
      %21 = sbr.rel target = $region3
    $region8: #{tpu_custom_call.1} parent=1 // loop_exit
      _
    %1981 = vsyncpa [#allocation3], 1
    %s1982 = scalar_lea.sflag [#allocation3], 1
    %1983 = vsyncpa %s1982, 1
    %1984 = vsyncpa [#allocation6], 1
    %1985 = vsyncpa [#allocation9], 1
    %1986 = vsyncpa [#allocation12], 1
    %1987 = vsyncpa [#allocation4], 1
    %s1988 = scalar_lea.sflag [#allocation4], 1
    %1989 = vsyncpa %s1988, 1

</llo_original>
